<compile_context>
chip_gen: v5e
topology: v5e:2x2
jax: 0.10.0
libtpu: 0.0.40
codegen_flags: <defaults>
</compile_context>

<pallas_src>
import jax
import jax.numpy as jnp
from jax.experimental import pallas as pl
from jax.experimental.pallas import tpu as pltpu

EPS = 1e-5  # nn.BatchNorm2d default eps


# ---------------------------------------------------------------------------
# in-kernel helpers
# ---------------------------------------------------------------------------
def _zero_halo(pad_ref):
    """Zero ONLY the 1-pixel border strips of the padded VMEM scratch."""
    Hp, Wp, C = pad_ref.shape
    zrow = jnp.zeros((1, Wp, C), jnp.float32)
    zcol = jnp.zeros((Hp, 1, C), jnp.float32)
    pad_ref[0:1, :, :] = zrow
    pad_ref[Hp - 1:Hp, :, :] = zrow
    pad_ref[:, 0:1, :] = zcol
    pad_ref[:, Wp - 1:Wp, :] = zcol


def _im2col_conv(pad_ref, patch_ref, w_ref, H, W, Cin):
    """3x3 'same' conv as a single MXU matmul.

    Builds the (H*W, 9*Cin) patch matrix once in VMEM scratch, then one
    jnp.dot against the (9*Cin, Cout) reshaped weight -> 9x fewer MXU
    pushes / result-FIFO drains than 9 separate K=Cin matmuls, and no
    per-tap broadcast-adds.
    """
    for kh in range(3):
        for kw in range(3):
            tap = kh * 3 + kw
            win = pad_ref[kh:kh + H, kw:kw + W, :]              # (H, W, Cin)
            patch_ref[:, tap * Cin:(tap + 1) * Cin] = win.reshape(H * W, Cin)
    return jnp.dot(patch_ref[...], w_ref[...],
                   preferred_element_type=jnp.float32)          # (H*W, Cout)


def _write_stats(stats_ref, y, Cout):
    """Partial BatchNorm statistics for this block: [sum | sum-of-squares]."""
    stats_ref[:, :, :Cout] = jnp.sum(y, axis=0, keepdims=True).reshape(1, 1, Cout)
    stats_ref[:, :, Cout:] = jnp.sum(y * y, axis=0, keepdims=True).reshape(1, 1, Cout)


# ---------------------------------------------------------------------------
# kernels
# ---------------------------------------------------------------------------
def conv1_kernel(x_ref, w_ref, y_ref, stats_ref, pad_ref, patch_ref):
    """conv1 (bias dropped - cancelled by batch-norm) + partial BN1 stats."""
    _, H, W, Cin = x_ref.shape
    Cout = y_ref.shape[-1]
    _zero_halo(pad_ref)
    pad_ref[1:H + 1, 1:W + 1, :] = x_ref[0]        # pad in VMEM, not in HBM
    y = _im2col_conv(pad_ref, patch_ref, w_ref, H, W, Cin)      # (H*W, Cout)
    y_ref[...] = y.reshape(1, H, W, Cout)
    _write_stats(stats_ref, y, Cout)


def bn1_conv2_kernel(y1_ref, s_ref, t_ref, w_ref, y_ref, stats_ref,
                     pad_ref, patch_ref):
    """fused BN1 (one scale/shift) + ReLU -> conv2 + partial BN2 stats."""
    _, H, W, C = y1_ref.shape
    Cout = y_ref.shape[-1]
    _zero_halo(pad_ref)
    h = jnp.maximum(y1_ref[0].reshape(H * W, C) * s_ref[...] + t_ref[...], 0.0)
    pad_ref[1:H + 1, 1:W + 1, :] = h.reshape(H, W, C)
    y = _im2col_conv(pad_ref, patch_ref, w_ref, H, W, C)        # (H*W, Cout)
    y_ref[...] = y.reshape(1, H, W, Cout)
    _write_stats(stats_ref, y, Cout)


def bn2_kernel(y2_ref, s_ref, t_ref, o_ref):
    """fused BN2 (one scale/shift) + ReLU."""
    _, H, W, C = y2_ref.shape
    h = jnp.maximum(y2_ref[0].reshape(H * W, C) * s_ref[...] + t_ref[...], 0.0)
    o_ref[...] = h.reshape(1, H, W, C)


# ---------------------------------------------------------------------------
# wrapper
# ---------------------------------------------------------------------------
def _scale_shift(stats, gamma, beta, count):
    """Fold batch statistics into one per-channel affine: y = x*s + t."""
    tot = jnp.sum(stats, axis=(0, 1))                           # (2*C,)
    C = gamma.shape[0]
    mean = tot[:C] / count
    var = jnp.maximum(tot[C:] / count - mean * mean, 0.0)       # biased var
    s = gamma * jax.lax.rsqrt(var + EPS)
    t = beta - mean * s
    return (s.reshape(1, C).astype(jnp.float32),
            t.reshape(1, C).astype(jnp.float32))


@jax.jit
def conv_block_forward(x_nchw, params):
    """Pallas forward. x_nchw: (N, Cin, H, W) f32. Returns (N, Cout, H, W)."""
    (w1, b1, g1, beta1, w2, b2, g2, beta2) = params
    del b1, b2   # conv bias is exactly cancelled by training-mode batch-norm
    N, Cin, H, W = x_nchw.shape
    Cout = w1.shape[-1]

    x = jnp.transpose(x_nchw, (0, 2, 3, 1)).astype(jnp.float32)     # NHWC
    w1r = w1.reshape(9 * Cin, Cout).astype(jnp.float32)             # (kh,kw,cin) flat
    w2r = w2.reshape(9 * Cout, Cout).astype(jnp.float32)
    # TODO(synk): at production UNet sizes (H=W=512) add an H-tile grid axis
    # with a halo and cast matmul operands to bf16 (f32 accumulate) on v6e/v7x.

    cparams = pltpu.CompilerParams(
        dimension_semantics=("parallel",),        # batch axis -> both TCs on v7x
        vmem_limit_bytes=32 * 1024 * 1024)
    count = float(N * H * W)

    # ---- pass A: conv1 + partial BN1 stats ---------------------------------
    y1, st1 = pl.pallas_call(
        conv1_kernel,
        grid=(N,),
        in_specs=[
            pl.BlockSpec((1, H, W, Cin), lambda n: (n, 0, 0, 0)),
            pl.BlockSpec((9 * Cin, Cout), lambda n: (0, 0)),
        ],
        out_specs=[
            pl.BlockSpec((1, H, W, Cout), lambda n: (n, 0, 0, 0)),
            pl.BlockSpec((1, 1, 2 * Cout), lambda n: (n, 0, 0)),
        ],
        out_shape=[
            jax.ShapeDtypeStruct((N, H, W, Cout), jnp.float32),
            jax.ShapeDtypeStruct((N, 1, 2 * Cout), jnp.float32),
        ],
        scratch_shapes=[
            pltpu.VMEM((H + 2, W + 2, Cin), jnp.float32),   # padded-input halo
            pltpu.VMEM((H * W, 9 * Cin), jnp.float32),      # im2col patches
        ],
        compiler_params=cparams,
    )(x, w1r)
    s1, t1 = _scale_shift(st1, g1, beta1, count)

    # ---- pass B: fused BN1+ReLU -> conv2 + partial BN2 stats ---------------
    y2, st2 = pl.pallas_call(
        bn1_conv2_kernel,
        grid=(N,),
        in_specs=[
            pl.BlockSpec((1, H, W, Cout), lambda n: (n, 0, 0, 0)),
            pl.BlockSpec((1, Cout), lambda n: (0, 0)),
            pl.BlockSpec((1, Cout), lambda n: (0, 0)),
            pl.BlockSpec((9 * Cout, Cout), lambda n: (0, 0)),
        ],
        out_specs=[
            pl.BlockSpec((1, H, W, Cout), lambda n: (n, 0, 0, 0)),
            pl.BlockSpec((1, 1, 2 * Cout), lambda n: (n, 0, 0)),
        ],
        out_shape=[
            jax.ShapeDtypeStruct((N, H, W, Cout), jnp.float32),
            jax.ShapeDtypeStruct((N, 1, 2 * Cout), jnp.float32),
        ],
        scratch_shapes=[
            pltpu.VMEM((H + 2, W + 2, Cout), jnp.float32),
            pltpu.VMEM((H * W, 9 * Cout), jnp.float32),
        ],
        compiler_params=cparams,
    )(y1, s1, t1, w2r)
    s2, t2 = _scale_shift(st2, g2, beta2, count)

    # ---- pass C: fused BN2 + ReLU ------------------------------------------
    out_nhwc = pl.pallas_call(
        bn2_kernel,
        grid=(N,),
        in_specs=[
            pl.BlockSpec((1, H, W, Cout), lambda n: (n, 0, 0, 0)),
            pl.BlockSpec((1, Cout), lambda n: (0, 0)),
            pl.BlockSpec((1, Cout), lambda n: (0, 0)),
        ],
        out_specs=pl.BlockSpec((1, H, W, Cout), lambda n: (n, 0, 0, 0)),
        out_shape=jax.ShapeDtypeStruct((N, H, W, Cout), jnp.float32),
        compiler_params=cparams,
    )(y2, s2, t2)

    return jnp.transpose(out_nhwc, (0, 3, 1, 2))                # back to NCHW


# ---------------------------------------------------------------------------
# pure-JAX reference (PyTorch training-mode forward semantics, with biases)
# ---------------------------------------------------------------------------
def conv_block_reference(x_nchw, params):
    (w1, b1, g1, beta1, w2, b2, g2, beta2) = params
    x = jnp.transpose(x_nchw, (0, 2, 3, 1)).astype(jnp.float32)

    def conv(x, w, b):
        y = jax.lax.conv_general_dilated(
            x, w, window_strides=(1, 1), padding="SAME",
            dimension_numbers=("NHWC", "HWIO", "NHWC"),
            precision=jax.lax.Precision.HIGHEST)
        return y + b.reshape(1, 1, 1, -1)

    def bn_relu(x, g, beta):
        mean = jnp.mean(x, axis=(0, 1, 2), keepdims=True)
        var = jnp.mean(jnp.square(x - mean), axis=(0, 1, 2), keepdims=True)
        y = (x - mean) * jax.lax.rsqrt(var + EPS)
        y = y * g.reshape(1, 1, 1, -1) + beta.reshape(1, 1, 1, -1)
        return jnp.maximum(y, 0.0)

    h = bn_relu(conv(x, w1, b1), g1, beta1)
    h = bn_relu(conv(h, w2, b2), g2, beta2)
    return jnp.transpose(h, (0, 3, 1, 2))


def init_params(key, in_c, out_c):
    ks = jax.random.split(key, 8)
    w1 = 0.1 * jax.random.normal(ks[0], (3, 3, in_c, out_c), jnp.float32)
    b1 = 0.1 * jax.random.normal(ks[1], (out_c,), jnp.float32)
    g1 = 1.0 + 0.1 * jax.random.normal(ks[2], (out_c,), jnp.float32)
    beta1 = 0.1 * jax.random.normal(ks[3], (out_c,), jnp.float32)
    w2 = 0.1 * jax.random.normal(ks[4], (3, 3, out_c, out_c), jnp.float32)
    b2 = 0.1 * jax.random.normal(ks[5], (out_c,), jnp.float32)
    g2 = 1.0 + 0.1 * jax.random.normal(ks[6], (out_c,), jnp.float32)
    beta2 = 0.1 * jax.random.normal(ks[7], (out_c,), jnp.float32)
    return (w1, b1, g1, beta1, w2, b2, g2, beta2)


if __name__ == "__main__":
    key = jax.random.PRNGKey(0)
    k_x, k_p = jax.random.split(key)

    # Small demo shapes. Cout=128 (a real UNet channel width) keeps every
    # matmul output column and HBM store lane-dense (last dim multiple of 128).
    N, Cin, Cout, H, W = 2, 4, 128, 16, 16
    x = jax.random.normal(k_x, (N, Cin, H, W), jnp.float32)     # NCHW like PyTorch
    params = init_params(k_p, Cin, Cout)

    out = jax.block_until_ready(conv_block_forward(x, params))
    ref = jax.block_until_ready(conv_block_reference(x, params))

    assert out.shape == (N, Cout, H, W)
    err = float(jnp.max(jnp.abs(out - ref)))
    assert err < 1e-3, err
    print("KERNEL_OK")
</pallas_src>

<mosaic_0001>
module attributes {stable_mosaic.version = 11 : i64} {
  func.func @conv1_kernel(%arg0: i32, %arg1: memref<1x16x16x4xf32, #tpu.memory_space<vmem>>, %arg2: memref<36x128xf32, #tpu.memory_space<vmem>>, %arg3: memref<1x16x16x128xf32, #tpu.memory_space<vmem>>, %arg4: memref<1x1x256xf32, #tpu.memory_space<vmem>>, %arg5: memref<18x18x4xf32, #tpu.memory_space<vmem>>, %arg6: memref<256x36xf32, #tpu.memory_space<vmem>>) attributes {dimension_semantics = [#tpu.dimension_semantics<parallel>], iteration_bounds = array<i64: 2>, scalar_prefetch = 0 : i64, scratch_operands = 2 : i64, tpu.core_type = #tpu.core_type<tc>, window_params = [{transform_indices = @transform_0, window_bounds = array<i64: 1, 16, 16, 4>}, {pipeline_mode = #tpu.pipeline_mode<synchronous>, transform_indices = @transform_1, window_bounds = array<i64: 36, 128>}, {transform_indices = @transform_2, window_bounds = array<i64: 1, 16, 16, 128>}, {transform_indices = @transform_3, window_bounds = array<i64: 1, 1, 256>}]} {
    %cst = arith.constant 0.000000e+00 : f32
    %0 = vector.broadcast %cst : f32 to vector<1x18x4xf32>
    %cst_0 = arith.constant 0.000000e+00 : f32
    %1 = vector.broadcast %cst_0 : f32 to vector<18x1x4xf32>
    %c0 = arith.constant 0 : index
    %c0_1 = arith.constant 0 : index
    %c0_2 = arith.constant 0 : index
    %2 = vector.load %arg5[%c0, %c0_1, %c0_2] : memref<18x18x4xf32, #tpu.memory_space<vmem>>, vector<1x18x4xf32>
    tpu.vector_store %arg5[%c0, %c0_1, %c0_2], %0 {strides = array<i32>} : memref<18x18x4xf32, #tpu.memory_space<vmem>>, vector<1x18x4xf32>,
    %c17 = arith.constant 17 : index
    %c0_3 = arith.constant 0 : index
    %c0_4 = arith.constant 0 : index
    %3 = vector.load %arg5[%c17, %c0_3, %c0_4] : memref<18x18x4xf32, #tpu.memory_space<vmem>>, vector<1x18x4xf32>
    tpu.vector_store %arg5[%c17, %c0_3, %c0_4], %0 {strides = array<i32>} : memref<18x18x4xf32, #tpu.memory_space<vmem>>, vector<1x18x4xf32>,
    %c0_5 = arith.constant 0 : index
    %c0_6 = arith.constant 0 : index
    %c0_7 = arith.constant 0 : index
    %4 = vector.load %arg5[%c0_5, %c0_6, %c0_7] : memref<18x18x4xf32, #tpu.memory_space<vmem>>, vector<18x1x4xf32>
    tpu.vector_store %arg5[%c0_5, %c0_6, %c0_7], %1 {strides = array<i32>} : memref<18x18x4xf32, #tpu.memory_space<vmem>>, vector<18x1x4xf32>,
    %c0_8 = arith.constant 0 : index
    %c17_9 = arith.constant 17 : index
    %c0_10 = arith.constant 0 : index
    %5 = vector.load %arg5[%c0_8, %c17_9, %c0_10] : memref<18x18x4xf32, #tpu.memory_space<vmem>>, vector<18x1x4xf32>
    tpu.vector_store %arg5[%c0_8, %c17_9, %c0_10], %1 {strides = array<i32>} : memref<18x18x4xf32, #tpu.memory_space<vmem>>, vector<18x1x4xf32>,
    %c0_11 = arith.constant 0 : index
    %c0_12 = arith.constant 0 : index
    %c0_13 = arith.constant 0 : index
    %c0_14 = arith.constant 0 : index
    %6 = vector.load %arg1[%c0_11, %c0_12, %c0_13, %c0_14] : memref<1x16x16x4xf32, #tpu.memory_space<vmem>>, vector<1x16x16x4xf32>
    %7 = vector.shape_cast %6 : vector<1x16x16x4xf32> to vector<16x16x4xf32>
    %c1 = arith.constant 1 : index
    %c1_15 = arith.constant 1 : index
    %c0_16 = arith.constant 0 : index
    %8 = vector.load %arg5[%c1, %c1_15, %c0_16] : memref<18x18x4xf32, #tpu.memory_space<vmem>>, vector<16x16x4xf32>
    tpu.vector_store %arg5[%c1, %c1_15, %c0_16], %7 {strides = array<i32>} : memref<18x18x4xf32, #tpu.memory_space<vmem>>, vector<16x16x4xf32>,
    %c0_17 = arith.constant 0 : index
    %c0_18 = arith.constant 0 : index
    %c0_19 = arith.constant 0 : index
    %9 = vector.load %arg5[%c0_17, %c0_18, %c0_19] : memref<18x18x4xf32, #tpu.memory_space<vmem>>, vector<16x16x4xf32>
    %10 = vector.shape_cast %9 : vector<16x16x4xf32> to vector<256x4xf32>
    %c0_20 = arith.constant 0 : index
    %c0_21 = arith.constant 0 : index
    %11 = vector.load %arg6[%c0_20, %c0_21] : memref<256x36xf32, #tpu.memory_space<vmem>>, vector<256x4xf32>
    tpu.vector_store %arg6[%c0_20, %c0_21], %10 {strides = array<i32>} : memref<256x36xf32, #tpu.memory_space<vmem>>, vector<256x4xf32>,
    %c0_22 = arith.constant 0 : index
    %c1_23 = arith.constant 1 : index
    %c0_24 = arith.constant 0 : index
    %12 = vector.load %arg5[%c0_22, %c1_23, %c0_24] : memref<18x18x4xf32, #tpu.memory_space<vmem>>, vector<16x16x4xf32>
    %13 = vector.shape_cast %12 : vector<16x16x4xf32> to vector<256x4xf32>
    %c0_25 = arith.constant 0 : index
    %c4 = arith.constant 4 : index
    %14 = vector.load %arg6[%c0_25, %c4] : memref<256x36xf32, #tpu.memory_space<vmem>>, vector<256x4xf32>
    tpu.vector_store %arg6[%c0_25, %c4], %13 {strides = array<i32>} : memref<256x36xf32, #tpu.memory_space<vmem>>, vector<256x4xf32>,
    %c0_26 = arith.constant 0 : index
    %c2 = arith.constant 2 : index
    %c0_27 = arith.constant 0 : index
    %15 = vector.load %arg5[%c0_26, %c2, %c0_27] : memref<18x18x4xf32, #tpu.memory_space<vmem>>, vector<16x16x4xf32>
    %16 = vector.shape_cast %15 : vector<16x16x4xf32> to vector<256x4xf32>
    %c0_28 = arith.constant 0 : index
    %c8 = arith.constant 8 : index
    %17 = vector.load %arg6[%c0_28, %c8] : memref<256x36xf32, #tpu.memory_space<vmem>>, vector<256x4xf32>
    tpu.vector_store %arg6[%c0_28, %c8], %16 {strides = array<i32>} : memref<256x36xf32, #tpu.memory_space<vmem>>, vector<256x4xf32>,
    %c1_29 = arith.constant 1 : index
    %c0_30 = arith.constant 0 : index
    %c0_31 = arith.constant 0 : index
    %18 = vector.load %arg5[%c1_29, %c0_30, %c0_31] : memref<18x18x4xf32, #tpu.memory_space<vmem>>, vector<16x16x4xf32>
    %19 = vector.shape_cast %18 : vector<16x16x4xf32> to vector<256x4xf32>
    %c0_32 = arith.constant 0 : index
    %c12 = arith.constant 12 : index
    %20 = vector.load %arg6[%c0_32, %c12] : memref<256x36xf32, #tpu.memory_space<vmem>>, vector<256x4xf32>
    tpu.vector_store %arg6[%c0_32, %c12], %19 {strides = array<i32>} : memref<256x36xf32, #tpu.memory_space<vmem>>, vector<256x4xf32>,
    %c1_33 = arith.constant 1 : index
    %c1_34 = arith.constant 1 : index
    %c0_35 = arith.constant 0 : index
    %21 = vector.load %arg5[%c1_33, %c1_34, %c0_35] : memref<18x18x4xf32, #tpu.memory_space<vmem>>, vector<16x16x4xf32>
    %22 = vector.shape_cast %21 : vector<16x16x4xf32> to vector<256x4xf32>
    %c0_36 = arith.constant 0 : index
    %c16 = arith.constant 16 : index
    %23 = vector.load %arg6[%c0_36, %c16] : memref<256x36xf32, #tpu.memory_space<vmem>>, vector<256x4xf32>
    tpu.vector_store %arg6[%c0_36, %c16], %22 {strides = array<i32>} : memref<256x36xf32, #tpu.memory_space<vmem>>, vector<256x4xf32>,
    %c1_37 = arith.constant 1 : index
    %c2_38 = arith.constant 2 : index
    %c0_39 = arith.constant 0 : index
    %24 = vector.load %arg5[%c1_37, %c2_38, %c0_39] : memref<18x18x4xf32, #tpu.memory_space<vmem>>, vector<16x16x4xf32>
    %25 = vector.shape_cast %24 : vector<16x16x4xf32> to vector<256x4xf32>
    %c0_40 = arith.constant 0 : index
    %c20 = arith.constant 20 : index
    %26 = vector.load %arg6[%c0_40, %c20] : memref<256x36xf32, #tpu.memory_space<vmem>>, vector<256x4xf32>
    tpu.vector_store %arg6[%c0_40, %c20], %25 {strides = array<i32>} : memref<256x36xf32, #tpu.memory_space<vmem>>, vector<256x4xf32>,
    %c2_41 = arith.constant 2 : index
    %c0_42 = arith.constant 0 : index
    %c0_43 = arith.constant 0 : index
    %27 = vector.load %arg5[%c2_41, %c0_42, %c0_43] : memref<18x18x4xf32, #tpu.memory_space<vmem>>, vector<16x16x4xf32>
    %28 = vector.shape_cast %27 : vector<16x16x4xf32> to vector<256x4xf32>
    %c0_44 = arith.constant 0 : index
    %c24 = arith.constant 24 : index
    %29 = vector.load %arg6[%c0_44, %c24] : memref<256x36xf32, #tpu.memory_space<vmem>>, vector<256x4xf32>
    tpu.vector_store %arg6[%c0_44, %c24], %28 {strides = array<i32>} : memref<256x36xf32, #tpu.memory_space<vmem>>, vector<256x4xf32>,
    %c2_45 = arith.constant 2 : index
    %c1_46 = arith.constant 1 : index
    %c0_47 = arith.constant 0 : index
    %30 = vector.load %arg5[%c2_45, %c1_46, %c0_47] : memref<18x18x4xf32, #tpu.memory_space<vmem>>, vector<16x16x4xf32>
    %31 = vector.shape_cast %30 : vector<16x16x4xf32> to vector<256x4xf32>
    %c0_48 = arith.constant 0 : index
    %c28 = arith.constant 28 : index
    %32 = vector.load %arg6[%c0_48, %c28] : memref<256x36xf32, #tpu.memory_space<vmem>>, vector<256x4xf32>
    tpu.vector_store %arg6[%c0_48, %c28], %31 {strides = array<i32>} : memref<256x36xf32, #tpu.memory_space<vmem>>, vector<256x4xf32>,
    %c2_49 = arith.constant 2 : index
    %c2_50 = arith.constant 2 : index
    %c0_51 = arith.constant 0 : index
    %33 = vector.load %arg5[%c2_49, %c2_50, %c0_51] : memref<18x18x4xf32, #tpu.memory_space<vmem>>, vector<16x16x4xf32>
    %34 = vector.shape_cast %33 : vector<16x16x4xf32> to vector<256x4xf32>
    %c0_52 = arith.constant 0 : index
    %c32 = arith.constant 32 : index
    %35 = vector.load %arg6[%c0_52, %c32] : memref<256x36xf32, #tpu.memory_space<vmem>>, vector<256x4xf32>
    tpu.vector_store %arg6[%c0_52, %c32], %34 {strides = array<i32>} : memref<256x36xf32, #tpu.memory_space<vmem>>, vector<256x4xf32>,
    %c0_53 = arith.constant 0 : index
    %c0_54 = arith.constant 0 : index
    %36 = vector.load %arg6[%c0_53, %c0_54] : memref<256x36xf32, #tpu.memory_space<vmem>>, vector<256x36xf32>
    %c0_55 = arith.constant 0 : index
    %c0_56 = arith.constant 0 : index
    %37 = vector.load %arg2[%c0_55, %c0_56] : memref<36x128xf32, #tpu.memory_space<vmem>>, vector<36x128xf32>
    %cst_57 = arith.constant dense<0.000000e+00> : vector<256x128xf32>
    %38 = tpu.matmul %36, %37, %cst_57 {dimension_numbers = #tpu.dot_dimension_numbers<[1], [0], [0], [1], [0, 0, 1, 1], [], []>} : vector<256x36xf32>, vector<36x128xf32>, vector<256x128xf32> -> vector<256x128xf32>
    %39 = vector.shape_cast %38 : vector<256x128xf32> to vector<1x16x16x128xf32>
    %c0_58 = arith.constant 0 : index
    %c0_59 = arith.constant 0 : index
    %c0_60 = arith.constant 0 : index
    %c0_61 = arith.constant 0 : index
    %40 = vector.load %arg3[%c0_58, %c0_59, %c0_60, %c0_61] : memref<1x16x16x128xf32, #tpu.memory_space<vmem>>, vector<1x16x16x128xf32>
    tpu.vector_store %arg3[%c0_58, %c0_59, %c0_60, %c0_61], %39 {strides = array<i32>} : memref<1x16x16x128xf32, #tpu.memory_space<vmem>>, vector<1x16x16x128xf32>,
    %cst_62 = arith.constant dense<0.000000e+00> : vector<128xf32>
    %41 = vector.multi_reduction <add>, %38, %cst_62 [0] : vector<256x128xf32> to vector<128xf32>
    %42 = vector.shape_cast %41 : vector<128xf32> to vector<1x128xf32>
    %43 = vector.shape_cast %42 : vector<1x128xf32> to vector<1x1x128xf32>
    %c0_63 = arith.constant 0 : index
    %c0_64 = arith.constant 0 : index
    %c0_65 = arith.constant 0 : index
    %44 = vector.load %arg4[%c0_63, %c0_64, %c0_65] : memref<1x1x256xf32, #tpu.memory_space<vmem>>, vector<1x1x128xf32>
    tpu.vector_store %arg4[%c0_63, %c0_64, %c0_65], %43 {strides = array<i32>} : memref<1x1x256xf32, #tpu.memory_space<vmem>>, vector<1x1x128xf32>,
    %45 = arith.mulf %38, %38 : vector<256x128xf32>
    %cst_66 = arith.constant dense<0.000000e+00> : vector<128xf32>
    %46 = vector.multi_reduction <add>, %45, %cst_66 [0] : vector<256x128xf32> to vector<128xf32>
    %47 = vector.shape_cast %46 : vector<128xf32> to vector<1x128xf32>
    %48 = vector.shape_cast %47 : vector<1x128xf32> to vector<1x1x128xf32>
    %c0_67 = arith.constant 0 : index
    %c0_68 = arith.constant 0 : index
    %c128 = arith.constant 128 : index
    %49 = vector.load %arg4[%c0_67, %c0_68, %c128] : memref<1x1x256xf32, #tpu.memory_space<vmem>>, vector<1x1x128xf32>
    tpu.vector_store %arg4[%c0_67, %c0_68, %c128], %48 {strides = array<i32>} : memref<1x1x256xf32, #tpu.memory_space<vmem>>, vector<1x1x128xf32>,
    return
  }
  func.func @transform_0(%arg0: i32) -> (i32, i32, i32, i32) {
    %c0_i32 = arith.constant 0 : i32
    %c0_i32_0 = arith.constant 0 : i32
    %c0_i32_1 = arith.constant 0 : i32
    %c0_i32_2 = arith.constant 0 : i32
    return %arg0, %c0_i32, %c0_i32_0, %c0_i32_1 : i32, i32, i32, i32
  }
  func.func @transform_1(%arg0: i32) -> (i32, i32) {
    %c0_i32 = arith.constant 0 : i32
    %c0_i32_0 = arith.constant 0 : i32
    %c0_i32_1 = arith.constant 0 : i32
    return %c0_i32, %c0_i32_0 : i32, i32
  }
  func.func @transform_2(%arg0: i32) -> (i32, i32, i32, i32) {
    %c0_i32 = arith.constant 0 : i32
    %c0_i32_0 = arith.constant 0 : i32
    %c0_i32_1 = arith.constant 0 : i32
    %c0_i32_2 = arith.constant 0 : i32
    return %arg0, %c0_i32, %c0_i32_0, %c0_i32_1 : i32, i32, i32, i32
  }
  func.func @transform_3(%arg0: i32) -> (i32, i32, i32) {
    %c0_i32 = arith.constant 0 : i32
    %c0_i32_0 = arith.constant 0 : i32
    %c0_i32_1 = arith.constant 0 : i32
    return %arg0, %c0_i32, %c0_i32_0 : i32, i32, i32
  }
}

module attributes {stable_mosaic.version = 11 : i64} {
  func.func @bn2_kernel(%arg0: i32, %arg1: memref<1x16x16x128xf32, #tpu.memory_space<vmem>>, %arg2: memref<1x128xf32, #tpu.memory_space<vmem>>, %arg3: memref<1x128xf32, #tpu.memory_space<vmem>>, %arg4: memref<1x16x16x128xf32, #tpu.memory_space<vmem>>) attributes {dimension_semantics = [#tpu.dimension_semantics<parallel>], iteration_bounds = array<i64: 2>, scalar_prefetch = 0 : i64, scratch_operands = 0 : i64, tpu.core_type = #tpu.core_type<tc>, window_params = [{transform_indices = @transform_0, window_bounds = array<i64: 1, 16, 16, 128>}, {pipeline_mode = #tpu.pipeline_mode<synchronous>, transform_indices = @transform_1, window_bounds = array<i64: 1, 128>}, {pipeline_mode = #tpu.pipeline_mode<synchronous>, transform_indices = @transform_2, window_bounds = array<i64: 1, 128>}, {transform_indices = @transform_3, window_bounds = array<i64: 1, 16, 16, 128>}]} {
    %c0 = arith.constant 0 : index
    %c0_0 = arith.constant 0 : index
    %c0_1 = arith.constant 0 : index
    %c0_2 = arith.constant 0 : index
    %0 = vector.load %arg1[%c0, %c0_0, %c0_1, %c0_2] : memref<1x16x16x128xf32, #tpu.memory_space<vmem>>, vector<1x16x16x128xf32>
    %1 = vector.shape_cast %0 : vector<1x16x16x128xf32> to vector<16x16x128xf32>
    %2 = vector.shape_cast %1 : vector<16x16x128xf32> to vector<256x128xf32>
    %c0_3 = arith.constant 0 : index
    %c0_4 = arith.constant 0 : index
    %3 = vector.load %arg2[%c0_3, %c0_4] : memref<1x128xf32, #tpu.memory_space<vmem>>, vector<1x128xf32>
    %4 = vector.broadcast %3 : vector<1x128xf32> to vector<256x128xf32>
    %5 = arith.mulf %2, %4 : vector<256x128xf32>
    %c0_5 = arith.constant 0 : index
    %c0_6 = arith.constant 0 : index
    %6 = vector.load %arg3[%c0_5, %c0_6] : memref<1x128xf32, #tpu.memory_space<vmem>>, vector<1x128xf32>
    %7 = vector.broadcast %6 : vector<1x128xf32> to vector<256x128xf32>
    %8 = arith.addf %5, %7 : vector<256x128xf32>
    %cst = arith.constant 0.000000e+00 : f32
    %9 = vector.broadcast %cst : f32 to vector<256x128xf32>
    %10 = arith.maximumf %8, %9 : vector<256x128xf32>
    %11 = vector.shape_cast %10 : vector<256x128xf32> to vector<1x16x16x128xf32>
    %c0_7 = arith.constant 0 : index
    %c0_8 = arith.constant 0 : index
    %c0_9 = arith.constant 0 : index
    %c0_10 = arith.constant 0 : index
    %12 = vector.load %arg4[%c0_7, %c0_8, %c0_9, %c0_10] : memref<1x16x16x128xf32, #tpu.memory_space<vmem>>, vector<1x16x16x128xf32>
    tpu.vector_store %arg4[%c0_7, %c0_8, %c0_9, %c0_10], %11 {strides = array<i32>} : memref<1x16x16x128xf32, #tpu.memory_space<vmem>>, vector<1x16x16x128xf32>,
    return
  }
  func.func @transform_0(%arg0: i32) -> (i32, i32, i32, i32) {
    %c0_i32 = arith.constant 0 : i32
    %c0_i32_0 = arith.constant 0 : i32
    %c0_i32_1 = arith.constant 0 : i32
    %c0_i32_2 = arith.constant 0 : i32
    return %arg0, %c0_i32, %c0_i32_0, %c0_i32_1 : i32, i32, i32, i32
  }
  func.func @transform_1(%arg0: i32) -> (i32, i32) {
    %c0_i32 = arith.constant 0 : i32
    %c0_i32_0 = arith.constant 0 : i32
    %c0_i32_1 = arith.constant 0 : i32
    return %c0_i32, %c0_i32_0 : i32, i32
  }
  func.func @transform_2(%arg0: i32) -> (i32, i32) {
    %c0_i32 = arith.constant 0 : i32
    %c0_i32_0 = arith.constant 0 : i32
    %c0_i32_1 = arith.constant 0 : i32
    return %c0_i32, %c0_i32_0 : i32, i32
  }
  func.func @transform_3(%arg0: i32) -> (i32, i32, i32, i32) {
    %c0_i32 = arith.constant 0 : i32
    %c0_i32_0 = arith.constant 0 : i32
    %c0_i32_1 = arith.constant 0 : i32
    %c0_i32_2 = arith.constant 0 : i32
    return %arg0, %c0_i32, %c0_i32_0, %c0_i32_1 : i32, i32, i32, i32
  }
}

module attributes {stable_mosaic.version = 11 : i64} {
  func.func @bn1_conv2_kernel(%arg0: i32, %arg1: memref<1x16x16x128xf32, #tpu.memory_space<vmem>>, %arg2: memref<1x128xf32, #tpu.memory_space<vmem>>, %arg3: memref<1x128xf32, #tpu.memory_space<vmem>>, %arg4: memref<1152x128xf32, #tpu.memory_space<vmem>>, %arg5: memref<1x16x16x128xf32, #tpu.memory_space<vmem>>, %arg6: memref<1x1x256xf32, #tpu.memory_space<vmem>>, %arg7: memref<18x18x128xf32, #tpu.memory_space<vmem>>, %arg8: memref<256x1152xf32, #tpu.memory_space<vmem>>) attributes {dimension_semantics = [#tpu.dimension_semantics<parallel>], iteration_bounds = array<i64: 2>, scalar_prefetch = 0 : i64, scratch_operands = 2 : i64, tpu.core_type = #tpu.core_type<tc>, window_params = [{transform_indices = @transform_0, window_bounds = array<i64: 1, 16, 16, 128>}, {pipeline_mode = #tpu.pipeline_mode<synchronous>, transform_indices = @transform_1, window_bounds = array<i64: 1, 128>}, {pipeline_mode = #tpu.pipeline_mode<synchronous>, transform_indices = @transform_2, window_bounds = array<i64: 1, 128>}, {pipeline_mode = #tpu.pipeline_mode<synchronous>, transform_indices = @transform_3, window_bounds = array<i64: 1152, 128>}, {transform_indices = @transform_4, window_bounds = array<i64: 1, 16, 16, 128>}, {transform_indices = @transform_5, window_bounds = array<i64: 1, 1, 256>}]} {
    %cst = arith.constant 0.000000e+00 : f32
    %0 = vector.broadcast %cst : f32 to vector<1x18x128xf32>
    %cst_0 = arith.constant 0.000000e+00 : f32
    %1 = vector.broadcast %cst_0 : f32 to vector<18x1x128xf32>
    %c0 = arith.constant 0 : index
    %c0_1 = arith.constant 0 : index
    %c0_2 = arith.constant 0 : index
    %2 = vector.load %arg7[%c0, %c0_1, %c0_2] : memref<18x18x128xf32, #tpu.memory_space<vmem>>, vector<1x18x128xf32>
    tpu.vector_store %arg7[%c0, %c0_1, %c0_2], %0 {strides = array<i32>} : memref<18x18x128xf32, #tpu.memory_space<vmem>>, vector<1x18x128xf32>,
    %c17 = arith.constant 17 : index
    %c0_3 = arith.constant 0 : index
    %c0_4 = arith.constant 0 : index
    %3 = vector.load %arg7[%c17, %c0_3, %c0_4] : memref<18x18x128xf32, #tpu.memory_space<vmem>>, vector<1x18x128xf32>
    tpu.vector_store %arg7[%c17, %c0_3, %c0_4], %0 {strides = array<i32>} : memref<18x18x128xf32, #tpu.memory_space<vmem>>, vector<1x18x128xf32>,
    %c0_5 = arith.constant 0 : index
    %c0_6 = arith.constant 0 : index
    %c0_7 = arith.constant 0 : index
    %4 = vector.load %arg7[%c0_5, %c0_6, %c0_7] : memref<18x18x128xf32, #tpu.memory_space<vmem>>, vector<18x1x128xf32>
    tpu.vector_store %arg7[%c0_5, %c0_6, %c0_7], %1 {strides = array<i32>} : memref<18x18x128xf32, #tpu.memory_space<vmem>>, vector<18x1x128xf32>,
    %c0_8 = arith.constant 0 : index
    %c17_9 = arith.constant 17 : index
    %c0_10 = arith.constant 0 : index
    %5 = vector.load %arg7[%c0_8, %c17_9, %c0_10] : memref<18x18x128xf32, #tpu.memory_space<vmem>>, vector<18x1x128xf32>
    tpu.vector_store %arg7[%c0_8, %c17_9, %c0_10], %1 {strides = array<i32>} : memref<18x18x128xf32, #tpu.memory_space<vmem>>, vector<18x1x128xf32>,
    %c0_11 = arith.constant 0 : index
    %c0_12 = arith.constant 0 : index
    %c0_13 = arith.constant 0 : index
    %c0_14 = arith.constant 0 : index
    %6 = vector.load %arg1[%c0_11, %c0_12, %c0_13, %c0_14] : memref<1x16x16x128xf32, #tpu.memory_space<vmem>>, vector<1x16x16x128xf32>
    %7 = vector.shape_cast %6 : vector<1x16x16x128xf32> to vector<16x16x128xf32>
    %8 = vector.shape_cast %7 : vector<16x16x128xf32> to vector<256x128xf32>
    %c0_15 = arith.constant 0 : index
    %c0_16 = arith.constant 0 : index
    %9 = vector.load %arg2[%c0_15, %c0_16] : memref<1x128xf32, #tpu.memory_space<vmem>>, vector<1x128xf32>
    %10 = vector.broadcast %9 : vector<1x128xf32> to vector<256x128xf32>
    %11 = arith.mulf %8, %10 : vector<256x128xf32>
    %c0_17 = arith.constant 0 : index
    %c0_18 = arith.constant 0 : index
    %12 = vector.load %arg3[%c0_17, %c0_18] : memref<1x128xf32, #tpu.memory_space<vmem>>, vector<1x128xf32>
    %13 = vector.broadcast %12 : vector<1x128xf32> to vector<256x128xf32>
    %14 = arith.addf %11, %13 : vector<256x128xf32>
    %cst_19 = arith.constant 0.000000e+00 : f32
    %15 = vector.broadcast %cst_19 : f32 to vector<256x128xf32>
    %16 = arith.maximumf %14, %15 : vector<256x128xf32>
    %17 = vector.shape_cast %16 : vector<256x128xf32> to vector<16x16x128xf32>
    %c1 = arith.constant 1 : index
    %c1_20 = arith.constant 1 : index
    %c0_21 = arith.constant 0 : index
    %18 = vector.load %arg7[%c1, %c1_20, %c0_21] : memref<18x18x128xf32, #tpu.memory_space<vmem>>, vector<16x16x128xf32>
    tpu.vector_store %arg7[%c1, %c1_20, %c0_21], %17 {strides = array<i32>} : memref<18x18x128xf32, #tpu.memory_space<vmem>>, vector<16x16x128xf32>,
    %c0_22 = arith.constant 0 : index
    %c0_23 = arith.constant 0 : index
    %c0_24 = arith.constant 0 : index
    %19 = vector.load %arg7[%c0_22, %c0_23, %c0_24] : memref<18x18x128xf32, #tpu.memory_space<vmem>>, vector<16x16x128xf32>
    %20 = vector.shape_cast %19 : vector<16x16x128xf32> to vector<256x128xf32>
    %c0_25 = arith.constant 0 : index
    %c0_26 = arith.constant 0 : index
    %21 = vector.load %arg8[%c0_25, %c0_26] : memref<256x1152xf32, #tpu.memory_space<vmem>>, vector<256x128xf32>
    tpu.vector_store %arg8[%c0_25, %c0_26], %20 {strides = array<i32>} : memref<256x1152xf32, #tpu.memory_space<vmem>>, vector<256x128xf32>,
    %c0_27 = arith.constant 0 : index
    %c1_28 = arith.constant 1 : index
    %c0_29 = arith.constant 0 : index
    %22 = vector.load %arg7[%c0_27, %c1_28, %c0_29] : memref<18x18x128xf32, #tpu.memory_space<vmem>>, vector<16x16x128xf32>
    %23 = vector.shape_cast %22 : vector<16x16x128xf32> to vector<256x128xf32>
    %c0_30 = arith.constant 0 : index
    %c128 = arith.constant 128 : index
    %24 = vector.load %arg8[%c0_30, %c128] : memref<256x1152xf32, #tpu.memory_space<vmem>>, vector<256x128xf32>
    tpu.vector_store %arg8[%c0_30, %c128], %23 {strides = array<i32>} : memref<256x1152xf32, #tpu.memory_space<vmem>>, vector<256x128xf32>,
    %c0_31 = arith.constant 0 : index
    %c2 = arith.constant 2 : index
    %c0_32 = arith.constant 0 : index
    %25 = vector.load %arg7[%c0_31, %c2, %c0_32] : memref<18x18x128xf32, #tpu.memory_space<vmem>>, vector<16x16x128xf32>
    %26 = vector.shape_cast %25 : vector<16x16x128xf32> to vector<256x128xf32>
    %c0_33 = arith.constant 0 : index
    %c256 = arith.constant 256 : index
    %27 = vector.load %arg8[%c0_33, %c256] : memref<256x1152xf32, #tpu.memory_space<vmem>>, vector<256x128xf32>
    tpu.vector_store %arg8[%c0_33, %c256], %26 {strides = array<i32>} : memref<256x1152xf32, #tpu.memory_space<vmem>>, vector<256x128xf32>,
    %c1_34 = arith.constant 1 : index
    %c0_35 = arith.constant 0 : index
    %c0_36 = arith.constant 0 : index
    %28 = vector.load %arg7[%c1_34, %c0_35, %c0_36] : memref<18x18x128xf32, #tpu.memory_space<vmem>>, vector<16x16x128xf32>
    %29 = vector.shape_cast %28 : vector<16x16x128xf32> to vector<256x128xf32>
    %c0_37 = arith.constant 0 : index
    %c384 = arith.constant 384 : index
    %30 = vector.load %arg8[%c0_37, %c384] : memref<256x1152xf32, #tpu.memory_space<vmem>>, vector<256x128xf32>
    tpu.vector_store %arg8[%c0_37, %c384], %29 {strides = array<i32>} : memref<256x1152xf32, #tpu.memory_space<vmem>>, vector<256x128xf32>,
    %c1_38 = arith.constant 1 : index
    %c1_39 = arith.constant 1 : index
    %c0_40 = arith.constant 0 : index
    %31 = vector.load %arg7[%c1_38, %c1_39, %c0_40] : memref<18x18x128xf32, #tpu.memory_space<vmem>>, vector<16x16x128xf32>
    %32 = vector.shape_cast %31 : vector<16x16x128xf32> to vector<256x128xf32>
    %c0_41 = arith.constant 0 : index
    %c512 = arith.constant 512 : index
    %33 = vector.load %arg8[%c0_41, %c512] : memref<256x1152xf32, #tpu.memory_space<vmem>>, vector<256x128xf32>
    tpu.vector_store %arg8[%c0_41, %c512], %32 {strides = array<i32>} : memref<256x1152xf32, #tpu.memory_space<vmem>>, vector<256x128xf32>,
    %c1_42 = arith.constant 1 : index
    %c2_43 = arith.constant 2 : index
    %c0_44 = arith.constant 0 : index
    %34 = vector.load %arg7[%c1_42, %c2_43, %c0_44] : memref<18x18x128xf32, #tpu.memory_space<vmem>>, vector<16x16x128xf32>
    %35 = vector.shape_cast %34 : vector<16x16x128xf32> to vector<256x128xf32>
    %c0_45 = arith.constant 0 : index
    %c640 = arith.constant 640 : index
    %36 = vector.load %arg8[%c0_45, %c640] : memref<256x1152xf32, #tpu.memory_space<vmem>>, vector<256x128xf32>
    tpu.vector_store %arg8[%c0_45, %c640], %35 {strides = array<i32>} : memref<256x1152xf32, #tpu.memory_space<vmem>>, vector<256x128xf32>,
    %c2_46 = arith.constant 2 : index
    %c0_47 = arith.constant 0 : index
    %c0_48 = arith.constant 0 : index
    %37 = vector.load %arg7[%c2_46, %c0_47, %c0_48] : memref<18x18x128xf32, #tpu.memory_space<vmem>>, vector<16x16x128xf32>
    %38 = vector.shape_cast %37 : vector<16x16x128xf32> to vector<256x128xf32>
    %c0_49 = arith.constant 0 : index
    %c768 = arith.constant 768 : index
    %39 = vector.load %arg8[%c0_49, %c768] : memref<256x1152xf32, #tpu.memory_space<vmem>>, vector<256x128xf32>
    tpu.vector_store %arg8[%c0_49, %c768], %38 {strides = array<i32>} : memref<256x1152xf32, #tpu.memory_space<vmem>>, vector<256x128xf32>,
    %c2_50 = arith.constant 2 : index
    %c1_51 = arith.constant 1 : index
    %c0_52 = arith.constant 0 : index
    %40 = vector.load %arg7[%c2_50, %c1_51, %c0_52] : memref<18x18x128xf32, #tpu.memory_space<vmem>>, vector<16x16x128xf32>
    %41 = vector.shape_cast %40 : vector<16x16x128xf32> to vector<256x128xf32>
    %c0_53 = arith.constant 0 : index
    %c896 = arith.constant 896 : index
    %42 = vector.load %arg8[%c0_53, %c896] : memref<256x1152xf32, #tpu.memory_space<vmem>>, vector<256x128xf32>
    tpu.vector_store %arg8[%c0_53, %c896], %41 {strides = array<i32>} : memref<256x1152xf32, #tpu.memory_space<vmem>>, vector<256x128xf32>,
    %c2_54 = arith.constant 2 : index
    %c2_55 = arith.constant 2 : index
    %c0_56 = arith.constant 0 : index
    %43 = vector.load %arg7[%c2_54, %c2_55, %c0_56] : memref<18x18x128xf32, #tpu.memory_space<vmem>>, vector<16x16x128xf32>
    %44 = vector.shape_cast %43 : vector<16x16x128xf32> to vector<256x128xf32>
    %c0_57 = arith.constant 0 : index
    %c1024 = arith.constant 1024 : index
    %45 = vector.load %arg8[%c0_57, %c1024] : memref<256x1152xf32, #tpu.memory_space<vmem>>, vector<256x128xf32>
    tpu.vector_store %arg8[%c0_57, %c1024], %44 {strides = array<i32>} : memref<256x1152xf32, #tpu.memory_space<vmem>>, vector<256x128xf32>,
    %c0_58 = arith.constant 0 : index
    %c0_59 = arith.constant 0 : index
    %46 = vector.load %arg8[%c0_58, %c0_59] : memref<256x1152xf32, #tpu.memory_space<vmem>>, vector<256x1152xf32>
    %c0_60 = arith.constant 0 : index
    %c0_61 = arith.constant 0 : index
    %47 = vector.load %arg4[%c0_60, %c0_61] : memref<1152x128xf32, #tpu.memory_space<vmem>>, vector<1152x128xf32>
    %cst_62 = arith.constant dense<0.000000e+00> : vector<256x128xf32>
    %48 = tpu.matmul %46, %47, %cst_62 {dimension_numbers = #tpu.dot_dimension_numbers<[1], [0], [0], [1], [0, 0, 1, 1], [], []>} : vector<256x1152xf32>, vector<1152x128xf32>, vector<256x128xf32> -> vector<256x128xf32>
    %49 = vector.shape_cast %48 : vector<256x128xf32> to vector<1x16x16x128xf32>
    %c0_63 = arith.constant 0 : index
    %c0_64 = arith.constant 0 : index
    %c0_65 = arith.constant 0 : index
    %c0_66 = arith.constant 0 : index
    %50 = vector.load %arg5[%c0_63, %c0_64, %c0_65, %c0_66] : memref<1x16x16x128xf32, #tpu.memory_space<vmem>>, vector<1x16x16x128xf32>
    tpu.vector_store %arg5[%c0_63, %c0_64, %c0_65, %c0_66], %49 {strides = array<i32>} : memref<1x16x16x128xf32, #tpu.memory_space<vmem>>, vector<1x16x16x128xf32>,
    %cst_67 = arith.constant dense<0.000000e+00> : vector<128xf32>
    %51 = vector.multi_reduction <add>, %48, %cst_67 [0] : vector<256x128xf32> to vector<128xf32>
    %52 = vector.shape_cast %51 : vector<128xf32> to vector<1x128xf32>
    %53 = vector.shape_cast %52 : vector<1x128xf32> to vector<1x1x128xf32>
    %c0_68 = arith.constant 0 : index
    %c0_69 = arith.constant 0 : index
    %c0_70 = arith.constant 0 : index
    %54 = vector.load %arg6[%c0_68, %c0_69, %c0_70] : memref<1x1x256xf32, #tpu.memory_space<vmem>>, vector<1x1x128xf32>
    tpu.vector_store %arg6[%c0_68, %c0_69, %c0_70], %53 {strides = array<i32>} : memref<1x1x256xf32, #tpu.memory_space<vmem>>, vector<1x1x128xf32>,
    %55 = arith.mulf %48, %48 : vector<256x128xf32>
    %cst_71 = arith.constant dense<0.000000e+00> : vector<128xf32>
    %56 = vector.multi_reduction <add>, %55, %cst_71 [0] : vector<256x128xf32> to vector<128xf32>
    %57 = vector.shape_cast %56 : vector<128xf32> to vector<1x128xf32>
    %58 = vector.shape_cast %57 : vector<1x128xf32> to vector<1x1x128xf32>
    %c0_72 = arith.constant 0 : index
    %c0_73 = arith.constant 0 : index
    %c128_74 = arith.constant 128 : index
    %59 = vector.load %arg6[%c0_72, %c0_73, %c128_74] : memref<1x1x256xf32, #tpu.memory_space<vmem>>, vector<1x1x128xf32>
    tpu.vector_store %arg6[%c0_72, %c0_73, %c128_74], %58 {strides = array<i32>} : memref<1x1x256xf32, #tpu.memory_space<vmem>>, vector<1x1x128xf32>,
    return
  }
  func.func @transform_0(%arg0: i32) -> (i32, i32, i32, i32) {
    %c0_i32 = arith.constant 0 : i32
    %c0_i32_0 = arith.constant 0 : i32
    %c0_i32_1 = arith.constant 0 : i32
    %c0_i32_2 = arith.constant 0 : i32
    return %arg0, %c0_i32, %c0_i32_0, %c0_i32_1 : i32, i32, i32, i32
  }
  func.func @transform_1(%arg0: i32) -> (i32, i32) {
    %c0_i32 = arith.constant 0 : i32
    %c0_i32_0 = arith.constant 0 : i32
    %c0_i32_1 = arith.constant 0 : i32
    return %c0_i32, %c0_i32_0 : i32, i32
  }
  func.func @transform_2(%arg0: i32) -> (i32, i32) {
    %c0_i32 = arith.constant 0 : i32
    %c0_i32_0 = arith.constant 0 : i32
    %c0_i32_1 = arith.constant 0 : i32
    return %c0_i32, %c0_i32_0 : i32, i32
  }
  func.func @transform_3(%arg0: i32) -> (i32, i32) {
    %c0_i32 = arith.constant 0 : i32
    %c0_i32_0 = arith.constant 0 : i32
    %c0_i32_1 = arith.constant 0 : i32
    return %c0_i32, %c0_i32_0 : i32, i32
  }
  func.func @transform_4(%arg0: i32) -> (i32, i32, i32, i32) {
    %c0_i32 = arith.constant 0 : i32
    %c0_i32_0 = arith.constant 0 : i32
    %c0_i32_1 = arith.constant 0 : i32
    %c0_i32_2 = arith.constant 0 : i32
    return %arg0, %c0_i32, %c0_i32_0, %c0_i32_1 : i32, i32, i32, i32
  }
  func.func @transform_5(%arg0: i32) -> (i32, i32, i32) {
    %c0_i32 = arith.constant 0 : i32
    %c0_i32_0 = arith.constant 0 : i32
    %c0_i32_1 = arith.constant 0 : i32
    return %arg0, %c0_i32, %c0_i32_0 : i32, i32, i32
  }
}

</mosaic_0001>

<llo_original>
// kernel: conv_block_forward.5
$region0: #{conv_block_forward.5}
  #allocation0 [shape = 'u32[]', space=smem, size = 0x4, offset = 0x4, fixed_abs, tag = 'smem constant byte address 0x4 - core index']
  #allocation1 [shape = 'u32[72,128]{1,0:T(1,128)}', space=vmem, size = 0x9000, scoped, tag = 'internal scratch']
  %s0 = inlined_call_operand.vmem [shape: f32[2,16,16,128], index: 0, kind: input, shape index: {}]
  %s1 = inlined_call_operand.vmem [shape: f32[1,128], index: 1, kind: input, shape index: {}]
  %s2 = inlined_call_operand.vmem [shape: f32[1,128], index: 2, kind: input, shape index: {}]
  %s3 = inlined_call_operand.hbm [shape: f32[2,16,16,128], index: 3, kind: output, shape index: {}]
  %s4 = sld [smem:[#allocation0]]
  $region45: #{conv_block_forward.5} parent=0
    _
  %s6 = ssub.s32 1, %s4
  %s7 = scalar_select 0, %s6, %s4
  $region1: #{conv_block_forward.5} parent=0
    #allocation2 [shape = 'u8[262144]{0}', space=vmem, size = 0x40000, scoped, tag = 'output window, operand 0']
    #allocation3 [shape = 's32[2]{0}', space=sflag, size = 0x8, scoped, tag = 'scoped memory for conv_block_forward.5']
    %8 = vsyncpa [#allocation3], 0
    %s9 = scalar_lea.sflag [#allocation3], 1
    %10 = vsyncpa %s9, 0
    loop: start=0, step=1, limit=4
    $region2: #{conv_block_forward.5} parent=1 // loop_pre_header
      _
    $region3: #{conv_block_forward.5} parent=1 // loop_header
      %s12 = sphi 0, %s16
      %p13 = scmp.ge.s32.totalorder %s12, 4
      %s22 = sphi 0, %s24
      %s25 = sphi 0, %s22
      %s26 = sphi 0, %s25
      %s42 = sphi 0, %s26
      %s46 = sphi 0, %s46
      %s48 = sphi 0, %s46
      %s49 = sphi 0, %s48
      %s63 = sphi 0, %s49
      %s67 = sphi 0, %s67
      %s69 = sphi 0, %s67
      %s70 = sphi 0, %s69
      %s84 = sphi 0, %s70
      %s90 = sphi 0, %s92
      %s93 = sphi 0, %s90
      %s94 = sphi 0, %s93
      %s110 = sphi 0, %s94
    $region4: #{conv_block_forward.5} parent=1 // loop_header_branch
      %15 = sbr.rel (%p13) target = $region8
    $region5: #{conv_block_forward.5} parent=1 // loop_body
      %s17 = ssub.s32 %s12, 1
      %s18 = ssub.s32 %s12, 2
      %s19 = sadd.s32 %s12, 1
      %s20 = ssub.s32 %s12, %s19
      %p21 = scmp.eq.s32.totalorder %s20, 0
      %s23 = sadd.s32 %s22, 1
      %s24 = scalar_select %p21, %s22, %s23
      %p27 = pneg %p21
      %p28 = scmp.eq.s32.totalorder %s12, 1
      %p29 = por %p27, %p28
      %p30 = scmp.ne.s32.totalorder %s22, %s25
      %p31 = scmp.eq.s32.totalorder %s12, 0
      %p32 = por %p30, %p31
      %p33 = scmp.ne.s32.totalorder %s22, %s25
      %p34 = scmp.eq.s32.totalorder %s17, 1
      %p35 = por %p33, %p34
      %p36 = scmp.ne.s32.totalorder %s25, %s26
      %p37 = scmp.eq.s32.totalorder %s17, 0
      %p38 = por %p36, %p37
      %p39 = scmp.ne.s32.totalorder %s25, %s26
      %p40 = scmp.eq.s32.totalorder %s18, 1
      %p41 = por %p39, %p40
      %p43 = scmp.ne.s32.totalorder %s26, %s42
      %p44 = scmp.eq.s32.totalorder %s18, 0
      %p45 = por %p43, %p44
      %s47 = sadd.s32 %s46, 1
      %p50 = scmp.eq.s32.totalorder %s12, 1
      %p51 = scmp.ne.s32.totalorder %s46, %s48
      %p52 = scmp.eq.s32.totalorder %s12, 0
      %p53 = por %p51, %p52
      %p54 = scmp.ne.s32.totalorder %s46, %s48
      %p55 = scmp.eq.s32.totalorder %s17, 1
      %p56 = por %p54, %p55
      %p57 = scmp.ne.s32.totalorder %s48, %s49
      %p58 = scmp.eq.s32.totalorder %s17, 0
      %p59 = por %p57, %p58
      %p60 = scmp.ne.s32.totalorder %s48, %s49
      %p61 = scmp.eq.s32.totalorder %s18, 1
      %p62 = por %p60, %p61
      %p64 = scmp.ne.s32.totalorder %s49, %s63
      %p65 = scmp.eq.s32.totalorder %s18, 0
      %p66 = por %p64, %p65
      %s68 = sadd.s32 %s67, 1
      %p71 = scmp.eq.s32.totalorder %s12, 1
      %p72 = scmp.ne.s32.totalorder %s67, %s69
      %p73 = scmp.eq.s32.totalorder %s12, 0
      %p74 = por %p72, %p73
      %p75 = scmp.ne.s32.totalorder %s67, %s69
      %p76 = scmp.eq.s32.totalorder %s17, 1
      %p77 = por %p75, %p76
      %p78 = scmp.ne.s32.totalorder %s69, %s70
      %p79 = scmp.eq.s32.totalorder %s17, 0
      %p80 = por %p78, %p79
      %p81 = scmp.ne.s32.totalorder %s69, %s70
      %p82 = scmp.eq.s32.totalorder %s18, 1
      %p83 = por %p81, %p82
      %p85 = scmp.ne.s32.totalorder %s70, %s84
      %p86 = scmp.eq.s32.totalorder %s18, 0
      %p87 = por %p85, %p86
      %s88 = ssub.s32 %s12, %s19
      %p89 = scmp.eq.s32.totalorder %s88, 0
      %s91 = sadd.s32 %s90, 1
      %s92 = scalar_select %p89, %s90, %s91
      %p95 = pneg %p89
      %p96 = scmp.eq.s32.totalorder %s12, 1
      %p97 = por %p95, %p96
      %p98 = scmp.ne.s32.totalorder %s90, %s93
      %p99 = scmp.eq.s32.totalorder %s12, 0
      %p100 = por %p98, %p99
      %p101 = scmp.ne.s32.totalorder %s90, %s93
      %p102 = scmp.eq.s32.totalorder %s17, 1
      %p103 = por %p101, %p102
      %p104 = scmp.ne.s32.totalorder %s93, %s94
      %p105 = scmp.eq.s32.totalorder %s17, 0
      %p106 = por %p104, %p105
      %p107 = scmp.ne.s32.totalorder %s93, %s94
      %p108 = scmp.eq.s32.totalorder %s18, 1
      %p109 = por %p107, %p108
      %p111 = scmp.ne.s32.totalorder %s94, %s110
      %p112 = scmp.eq.s32.totalorder %s18, 0
      %p113 = por %p111, %p112
      %p114 = scmp.le.s32.totalorder 1, %s12
      %p115 = scmp.lt.s32.totalorder %s12, 3
      %p116 = pnand %p114, %p115
      %p117 = pneg %p116
      // Predicated region
      $region9: #{conv_block_forward.5} parent=5 // pred_check
        _
      $region10: #{conv_block_forward.5} parent=5 // pred_check_branch
        %119 = sbr.rel (%p116) target = $region12
      $region11: #{conv_block_forward.5} parent=5 // pred_region
        %s120 = ssub.s32 %s12, 1
        // Predicated region
        $region13: #{conv_block_forward.5} parent=11 // pred_check
          %p121 = pneg %p59
        $region14: #{conv_block_forward.5} parent=11 // pred_check_branch
          %123 = sbr.rel (%p121) target = $region16
        $region15: #{conv_block_forward.5} parent=11 // pred_region
          _
        $region16: #{conv_block_forward.5} parent=11 // pred_fallthru
          _
        // Predicated region
        $region17: #{conv_block_forward.5} parent=11 // pred_check
          %p124 = pneg %p80
        $region18: #{conv_block_forward.5} parent=11 // pred_check_branch
          %126 = sbr.rel (%p124) target = $region20
        $region19: #{conv_block_forward.5} parent=11 // pred_region
          _
        $region20: #{conv_block_forward.5} parent=11 // pred_fallthru
          _
      $region12: #{conv_block_forward.5} parent=5 // pred_fallthru
        _
      %p127 = scmp.lt.s32.totalorder %s12, 2
      // Predicated region
      $region21: #{conv_block_forward.5} parent=5 // pred_check
        %p128 = pneg %p127
      $region22: #{conv_block_forward.5} parent=5 // pred_check_branch
        %130 = sbr.rel (%p128) target = $region24
      $region23: #{conv_block_forward.5} parent=5 // pred_region
        // Predicated region
        $region25: #{conv_block_forward.5} parent=23 // pred_check
          %p131 = pneg %p32
        $region26: #{conv_block_forward.5} parent=23 // pred_check_branch
          %133 = sbr.rel (%p131) target = $region28
        $region27: #{conv_block_forward.5} parent=23 // pred_region
          %p134 = scmp.lt.s32.totalorder %s12, 1
          %s135 = scalar_select %p134, %s12, 1
          %s136 = smul.addr %s135, 32
          %s137 = smul.addr %s136, 8
          %s138 = scalar_lea.vmem %s0, %s137
        $region28: #{conv_block_forward.5} parent=23 // pred_fallthru
          _
      $region24: #{conv_block_forward.5} parent=5 // pred_fallthru
        _
      %p139 = scmp.le.s32.totalorder 1, %s12
      %p140 = scmp.lt.s32.totalorder %s12, 3
      %p141 = pnand %p139, %p140
      %p142 = pneg %p141
      // Predicated region
      $region29: #{conv_block_forward.5} parent=5 // pred_check
        _
      $region30: #{conv_block_forward.5} parent=5 // pred_check_branch
        %144 = sbr.rel (%p141) target = $region32
      $region31: #{conv_block_forward.5} parent=5 // pred_region
        %s145 = ssub.s32 %s12, 1
        %p146 = scmp.lt.s32.totalorder %s17, 1
        %s147 = scalar_select %p146, %s17, 1
        %s148 = smul.addr %s147, 32
        %s149 = smul.addr %s148, 8
        %s150 = scalar_lea.vmem %s0, %s149
        %p151 = pneg %p38
        %p152 = pneg %p35
        %p153 = pneg %p59
        %p154 = pneg %p56
        %p155 = pneg %p80
        %p156 = pneg %p77
        %p157 = pneg %p106
        %p158 = pneg %p103
        %s159 = sand.u32 %s93, 1
        %s160 = scalar_lea.sflag [#allocation3], %s159
        %s161 = sand.u32 %s93, 1
        %s162 = smul.addr %s161, 256
        %s163 = scalar_lea.vmem [#allocation2], %s162
        %p164 = scmp.lt.s32.totalorder %s17, 1
        %s165 = scalar_select %p164, %s17, 1
        %s166 = smul.addr %s165, 32
        %s167 = smul.addr %s166, 8
        %s168 = scalar_lea.vmem %s0, %s167
        %v169 = vld [vmem:[%s168] sm:$0xff]
        %v170 = vld [vmem:[%s168 + $0x8] sm:$0xff]
        %v171 = vld [vmem:[%s168 + $0x10] sm:$0xff]
        %v172 = vld [vmem:[%s168 + $0x18] sm:$0xff]
        %v173 = vld [vmem:[%s168 + $0x20] sm:$0xff]
        %v174 = vld [vmem:[%s168 + $0x28] sm:$0xff]
        %v175 = vld [vmem:[%s168 + $0x30] sm:$0xff]
        %v176 = vld [vmem:[%s168 + $0x38] sm:$0xff]
        %v177 = vld [vmem:[%s168 + $0x40] sm:$0xff]
        %v178 = vld [vmem:[%s168 + $0x48] sm:$0xff]
        %v179 = vld [vmem:[%s168 + $0x50] sm:$0xff]
        %v180 = vld [vmem:[%s168 + $0x58] sm:$0xff]
        %v181 = vld [vmem:[%s168 + $0x60] sm:$0xff]
        %v182 = vld [vmem:[%s168 + $0x68] sm:$0xff]
        %v183 = vld [vmem:[%s168 + $0x70] sm:$0xff]
        %v184 = vld [vmem:[%s168 + $0x78] sm:$0xff]
        %v185 = vld [vmem:[%s168 + $0x80] sm:$0xff]
        %v186 = vld [vmem:[%s168 + $0x88] sm:$0xff]
        %v187 = vld [vmem:[%s168 + $0x90] sm:$0xff]
        %v188 = vld [vmem:[%s168 + $0x98] sm:$0xff]
        %v189 = vld [vmem:[%s168 + $0xa0] sm:$0xff]
        %v190 = vld [vmem:[%s168 + $0xa8] sm:$0xff]
        %v191 = vld [vmem:[%s168 + $0xb0] sm:$0xff]
        %v192 = vld [vmem:[%s168 + $0xb8] sm:$0xff]
        %v193 = vld [vmem:[%s168 + $0xc0] sm:$0xff]
        %v194 = vld [vmem:[%s168 + $0xc8] sm:$0xff]
        %v195 = vld [vmem:[%s168 + $0xd0] sm:$0xff]
        %v196 = vld [vmem:[%s168 + $0xd8] sm:$0xff]
        %v197 = vld [vmem:[%s168 + $0xe0] sm:$0xff]
        %v198 = vld [vmem:[%s168 + $0xe8] sm:$0xff]
        %v199 = vld [vmem:[%s168 + $0xf0] sm:$0xff]
        %v200 = vld [vmem:[%s168 + $0xf8] sm:$0xff]
        %v201 = vld [vmem:[%s1] sm:$0x1]
        %v203 = vperm.slane %v201, 0
        %v205 = vmul.f32 %v169, %v203
        %v206 = vmul.f32 %v170, %v203
        %v207 = vmul.f32 %v171, %v203
        %v208 = vmul.f32 %v172, %v203
        %v209 = vmul.f32 %v173, %v203
        %v210 = vmul.f32 %v174, %v203
        %v211 = vmul.f32 %v175, %v203
        %v212 = vmul.f32 %v176, %v203
        %v213 = vmul.f32 %v177, %v203
        %v214 = vmul.f32 %v178, %v203
        %v215 = vmul.f32 %v179, %v203
        %v216 = vmul.f32 %v180, %v203
        %v217 = vmul.f32 %v181, %v203
        %v218 = vmul.f32 %v182, %v203
        %v219 = vmul.f32 %v183, %v203
        %v220 = vmul.f32 %v184, %v203
        %v221 = vmul.f32 %v185, %v203
        %v222 = vmul.f32 %v186, %v203
        %v223 = vmul.f32 %v187, %v203
        %v224 = vmul.f32 %v188, %v203
        %v225 = vmul.f32 %v189, %v203
        %v226 = vmul.f32 %v190, %v203
        %v227 = vmul.f32 %v191, %v203
        %v228 = vmul.f32 %v192, %v203
        %v229 = vmul.f32 %v193, %v203
        %v230 = vmul.f32 %v194, %v203
        %v231 = vmul.f32 %v195, %v203
        %v232 = vmul.f32 %v196, %v203
        %v233 = vmul.f32 %v197, %v203
        %v234 = vmul.f32 %v198, %v203
        %v235 = vmul.f32 %v199, %v203
        %v236 = vmul.f32 %v200, %v203
        %v237 = vld [vmem:[%s2] sm:$0x1]
        %v239 = vperm.slane %v237, 0
        %v241 = vadd.f32 %v205, %v239
        %v242 = vadd.f32 %v206, %v239
        %v243 = vadd.f32 %v207, %v239
        %v244 = vadd.f32 %v208, %v239
        %v245 = vadd.f32 %v209, %v239
        %v246 = vadd.f32 %v210, %v239
        %v247 = vadd.f32 %v211, %v239
        %v248 = vadd.f32 %v212, %v239
        %v249 = vadd.f32 %v213, %v239
        %v250 = vadd.f32 %v214, %v239
        %v251 = vadd.f32 %v215, %v239
        %v252 = vadd.f32 %v216, %v239
        %v253 = vadd.f32 %v217, %v239
        %v254 = vadd.f32 %v218, %v239
        %v255 = vadd.f32 %v219, %v239
        %v256 = vadd.f32 %v220, %v239
        %v257 = vadd.f32 %v221, %v239
        %v258 = vadd.f32 %v222, %v239
        %v259 = vadd.f32 %v223, %v239
        %v260 = vadd.f32 %v224, %v239
        %v261 = vadd.f32 %v225, %v239
        %v262 = vadd.f32 %v226, %v239
        %v263 = vadd.f32 %v227, %v239
        %v264 = vadd.f32 %v228, %v239
        %v265 = vadd.f32 %v229, %v239
        %v266 = vadd.f32 %v230, %v239
        %v267 = vadd.f32 %v231, %v239
        %v268 = vadd.f32 %v232, %v239
        %v269 = vadd.f32 %v233, %v239
        %v270 = vadd.f32 %v234, %v239
        %v271 = vadd.f32 %v235, %v239
        %v272 = vadd.f32 %v236, %v239
        %v273 = vmax.f32 %v241, 0.0
        %v274 = vmax.f32 %v242, 0.0
        %v275 = vmax.f32 %v243, 0.0
        %v276 = vmax.f32 %v244, 0.0
        %v277 = vmax.f32 %v245, 0.0
        %v278 = vmax.f32 %v246, 0.0
        %v279 = vmax.f32 %v247, 0.0
        %v280 = vmax.f32 %v248, 0.0
        %v281 = vmax.f32 %v249, 0.0
        %v282 = vmax.f32 %v250, 0.0
        %v283 = vmax.f32 %v251, 0.0
        %v284 = vmax.f32 %v252, 0.0
        %v285 = vmax.f32 %v253, 0.0
        %v286 = vmax.f32 %v254, 0.0
        %v287 = vmax.f32 %v255, 0.0
        %v288 = vmax.f32 %v256, 0.0
        %v289 = vmax.f32 %v257, 0.0
        %v290 = vmax.f32 %v258, 0.0
        %v291 = vmax.f32 %v259, 0.0
        %v292 = vmax.f32 %v260, 0.0
        %v293 = vmax.f32 %v261, 0.0
        %v294 = vmax.f32 %v262, 0.0
        %v295 = vmax.f32 %v263, 0.0
        %v296 = vmax.f32 %v264, 0.0
        %v297 = vmax.f32 %v265, 0.0
        %v298 = vmax.f32 %v266, 0.0
        %v299 = vmax.f32 %v267, 0.0
        %v300 = vmax.f32 %v268, 0.0
        %v301 = vmax.f32 %v269, 0.0
        %v302 = vmax.f32 %v270, 0.0
        %v303 = vmax.f32 %v271, 0.0
        %v304 = vmax.f32 %v272, 0.0
        %305 = vst [vmem:[%s163] sm:$0xff] %v273
        %306 = vst [vmem:[%s163 + $0x8] sm:$0xff] %v274
        %307 = vst [vmem:[%s163 + $0x10] sm:$0xff] %v275
        %308 = vst [vmem:[%s163 + $0x18] sm:$0xff] %v276
        %309 = vst [vmem:[%s163 + $0x20] sm:$0xff] %v277
        %310 = vst [vmem:[%s163 + $0x28] sm:$0xff] %v278
        %311 = vst [vmem:[%s163 + $0x30] sm:$0xff] %v279
        %312 = vst [vmem:[%s163 + $0x38] sm:$0xff] %v280
        %313 = vst [vmem:[%s163 + $0x40] sm:$0xff] %v281
        %314 = vst [vmem:[%s163 + $0x48] sm:$0xff] %v282
        %315 = vst [vmem:[%s163 + $0x50] sm:$0xff] %v283
        %316 = vst [vmem:[%s163 + $0x58] sm:$0xff] %v284
        %317 = vst [vmem:[%s163 + $0x60] sm:$0xff] %v285
        %318 = vst [vmem:[%s163 + $0x68] sm:$0xff] %v286
        %319 = vst [vmem:[%s163 + $0x70] sm:$0xff] %v287
        %320 = vst [vmem:[%s163 + $0x78] sm:$0xff] %v288
        %321 = vst [vmem:[%s163 + $0x80] sm:$0xff] %v289
        %322 = vst [vmem:[%s163 + $0x88] sm:$0xff] %v290
        %323 = vst [vmem:[%s163 + $0x90] sm:$0xff] %v291
        %324 = vst [vmem:[%s163 + $0x98] sm:$0xff] %v292
        %325 = vst [vmem:[%s163 + $0xa0] sm:$0xff] %v293
        %326 = vst [vmem:[%s163 + $0xa8] sm:$0xff] %v294
        %327 = vst [vmem:[%s163 + $0xb0] sm:$0xff] %v295
        %328 = vst [vmem:[%s163 + $0xb8] sm:$0xff] %v296
        %329 = vst [vmem:[%s163 + $0xc0] sm:$0xff] %v297
        %330 = vst [vmem:[%s163 + $0xc8] sm:$0xff] %v298
        %331 = vst [vmem:[%s163 + $0xd0] sm:$0xff] %v299
        %332 = vst [vmem:[%s163 + $0xd8] sm:$0xff] %v300
        %333 = vst [vmem:[%s163 + $0xe0] sm:$0xff] %v301
        %334 = vst [vmem:[%s163 + $0xe8] sm:$0xff] %v302
        %335 = vst [vmem:[%s163 + $0xf0] sm:$0xff] %v303
        %336 = vst [vmem:[%s163 + $0xf8] sm:$0xff] %v304
        %s337 = sand.u32 %s93, 1
        %s338 = scalar_lea.sflag [#allocation3], %s337
        %s339 = sand.u32 %s93, 1
        %s340 = smul.addr %s339, 256
        %s341 = scalar_lea.vmem [#allocation2], %s340
        // Predicated region
        $region33: #{conv_block_forward.5} parent=31 // pred_check
          %p342 = pneg %p103
        $region34: #{conv_block_forward.5} parent=31 // pred_check_branch
          %344 = sbr.rel (%p342) target = $region36
        $region35: #{conv_block_forward.5} parent=31 // pred_region
          %346 = vsyncadd %s338, 0
          %s347 = smul.addr %s17, 32
          %s348 = smul.addr %s347, 8
          %s349 = scalar_lea.hbm %s3, %s348
          %s350 = sshll.u32 %s341, 4
          %s351 = int_to_ptr.vmem [resolvable:$true] %s350
          %s352 = sshll.u32 %s349, 4
          %s353 = int_to_ptr.hbm [resolvable:$true] %s352
          %358 = dma.vmem_to_hbm [thread:$0]  %s351, 4096, %s353, %s338, 128, 128, 8
        $region36: #{conv_block_forward.5} parent=31 // pred_fallthru
          _
      $region32: #{conv_block_forward.5} parent=5 // pred_fallthru
        _
      %p359 = scmp.le.s32.totalorder 2, %s12
      // Predicated region
      $region37: #{conv_block_forward.5} parent=5 // pred_check
        %p360 = pneg %p359
      $region38: #{conv_block_forward.5} parent=5 // pred_check_branch
        %362 = sbr.rel (%p360) target = $region40
      $region39: #{conv_block_forward.5} parent=5 // pred_region
        %s363 = ssub.s32 %s12, 2
        // Predicated region
        $region41: #{conv_block_forward.5} parent=39 // pred_check
          %p364 = pneg %p109
        $region42: #{conv_block_forward.5} parent=39 // pred_check_branch
          %366 = sbr.rel (%p364) target = $region44
        $region43: #{conv_block_forward.5} parent=39 // pred_region
          %s367 = sand.u32 %s94, 1
          %s368 = scalar_lea.sflag [#allocation3], %s367
          %s369 = sand.u32 %s94, 1
          %s370 = smul.addr %s369, 256
          %s371 = scalar_lea.vmem [#allocation2], %s370
          %373 = dma.done %s368, 4096
        $region44: #{conv_block_forward.5} parent=39 // pred_fallthru
          _
      $region40: #{conv_block_forward.5} parent=5 // pred_fallthru
        _
    $region6: #{conv_block_forward.5} parent=1 // loop_footer
      %s16 = sadd.s32 1, %s12
    $region7: #{conv_block_forward.5} parent=1 // loop_footer_branch
      %11 = sbr.rel target = $region3
    $region8: #{conv_block_forward.5} parent=1 // loop_exit
      _
    %374 = vsyncpa [#allocation3], 1
    %s375 = scalar_lea.sflag [#allocation3], 1
    %376 = vsyncpa %s375, 1

// kernel: conv_block_forward.3
$region0: #{conv_block_forward.3}
  #allocation0 [shape = 'u32[]', space=smem, size = 0x4, offset = 0x4, fixed_abs, tag = 'smem constant byte address 0x4 - core index']
  #allocation1 [shape = 'u32[72,128]{1,0:T(1,128)}', space=vmem, size = 0x9000, scoped, tag = 'internal scratch']
  #allocation2 [shape = 'f32[18,18,4]{2,1,0:T(8,128)}', space=vmem, size = 0x36000, scoped, tag = 'scratch operand']
  #allocation3 [shape = 'f32[256,36]{1,0:T(8,128)}', space=vmem, size = 0x20000, scoped, tag = 'scratch operand']
  %s0 = inlined_call_operand.vmem [shape: f32[2,16,16,4], index: 0, kind: input, shape index: {}]
  %s1 = inlined_call_operand.vmem [shape: f32[36,128], index: 1, kind: input, shape index: {}]
  %s2 = inlined_call_operand.vmem [shape: f32[2,16,16,128], index: 2, kind: output, shape index: {0}]
  %s3 = inlined_call_operand.vmem [shape: f32[2,1,256], index: 3, kind: output, shape index: {1}]
  %4 = xla_tuple %s2, %s3
  %s5 = sld [smem:[#allocation0]]
  $region49: #{conv_block_forward.3} parent=0
    _
  %s7 = ssub.s32 1, %s5
  %s8 = scalar_select 0, %s7, %s5
  loop: start=0, step=1, limit=4
  $region2: #{conv_block_forward.3} parent=0 // loop_pre_header
    _
  $region3: #{conv_block_forward.3} parent=0 // loop_header
    %s10 = sphi 0, %s14
    %p11 = scmp.ge.s32.totalorder %s10, 4
    %s20 = sphi 0, %s22
    %s23 = sphi 0, %s20
    %s24 = sphi 0, %s23
    %s40 = sphi 0, %s24
    %s44 = sphi 0, %s44
    %s46 = sphi 0, %s44
    %s47 = sphi 0, %s46
    %s61 = sphi 0, %s47
    %s67 = sphi 0, %s69
    %s70 = sphi 0, %s67
    %s71 = sphi 0, %s70
    %s87 = sphi 0, %s71
    %s93 = sphi 0, %s95
    %s96 = sphi 0, %s93
    %s97 = sphi 0, %s96
    %s113 = sphi 0, %s97
  $region4: #{conv_block_forward.3} parent=0 // loop_header_branch
    %13 = sbr.rel (%p11) target = $region8
  $region5: #{conv_block_forward.3} parent=0 // loop_body
    %s15 = ssub.s32 %s10, 1
    %s16 = ssub.s32 %s10, 2
    %s17 = sadd.s32 %s10, 1
    %s18 = ssub.s32 %s10, %s17
    %p19 = scmp.eq.s32.totalorder %s18, 0
    %s21 = sadd.s32 %s20, 1
    %s22 = scalar_select %p19, %s20, %s21
    %p25 = pneg %p19
    %p26 = scmp.eq.s32.totalorder %s10, 1
    %p27 = por %p25, %p26
    %p28 = scmp.ne.s32.totalorder %s20, %s23
    %p29 = scmp.eq.s32.totalorder %s10, 0
    %p30 = por %p28, %p29
    %p31 = scmp.ne.s32.totalorder %s20, %s23
    %p32 = scmp.eq.s32.totalorder %s15, 1
    %p33 = por %p31, %p32
    %p34 = scmp.ne.s32.totalorder %s23, %s24
    %p35 = scmp.eq.s32.totalorder %s15, 0
    %p36 = por %p34, %p35
    %p37 = scmp.ne.s32.totalorder %s23, %s24
    %p38 = scmp.eq.s32.totalorder %s16, 1
    %p39 = por %p37, %p38
    %p41 = scmp.ne.s32.totalorder %s24, %s40
    %p42 = scmp.eq.s32.totalorder %s16, 0
    %p43 = por %p41, %p42
    %s45 = sadd.s32 %s44, 1
    %p48 = scmp.eq.s32.totalorder %s10, 1
    %p49 = scmp.ne.s32.totalorder %s44, %s46
    %p50 = scmp.eq.s32.totalorder %s10, 0
    %p51 = por %p49, %p50
    %p52 = scmp.ne.s32.totalorder %s44, %s46
    %p53 = scmp.eq.s32.totalorder %s15, 1
    %p54 = por %p52, %p53
    %p55 = scmp.ne.s32.totalorder %s46, %s47
    %p56 = scmp.eq.s32.totalorder %s15, 0
    %p57 = por %p55, %p56
    %p58 = scmp.ne.s32.totalorder %s46, %s47
    %p59 = scmp.eq.s32.totalorder %s16, 1
    %p60 = por %p58, %p59
    %p62 = scmp.ne.s32.totalorder %s47, %s61
    %p63 = scmp.eq.s32.totalorder %s16, 0
    %p64 = por %p62, %p63
    %s65 = ssub.s32 %s10, %s17
    %p66 = scmp.eq.s32.totalorder %s65, 0
    %s68 = sadd.s32 %s67, 1
    %s69 = scalar_select %p66, %s67, %s68
    %p72 = pneg %p66
    %p73 = scmp.eq.s32.totalorder %s10, 1
    %p74 = por %p72, %p73
    %p75 = scmp.ne.s32.totalorder %s67, %s70
    %p76 = scmp.eq.s32.totalorder %s10, 0
    %p77 = por %p75, %p76
    %p78 = scmp.ne.s32.totalorder %s67, %s70
    %p79 = scmp.eq.s32.totalorder %s15, 1
    %p80 = por %p78, %p79
    %p81 = scmp.ne.s32.totalorder %s70, %s71
    %p82 = scmp.eq.s32.totalorder %s15, 0
    %p83 = por %p81, %p82
    %p84 = scmp.ne.s32.totalorder %s70, %s71
    %p85 = scmp.eq.s32.totalorder %s16, 1
    %p86 = por %p84, %p85
    %p88 = scmp.ne.s32.totalorder %s71, %s87
    %p89 = scmp.eq.s32.totalorder %s16, 0
    %p90 = por %p88, %p89
    %s91 = ssub.s32 %s10, %s17
    %p92 = scmp.eq.s32.totalorder %s91, 0
    %s94 = sadd.s32 %s93, 1
    %s95 = scalar_select %p92, %s93, %s94
    %p98 = pneg %p92
    %p99 = scmp.eq.s32.totalorder %s10, 1
    %p100 = por %p98, %p99
    %p101 = scmp.ne.s32.totalorder %s93, %s96
    %p102 = scmp.eq.s32.totalorder %s10, 0
    %p103 = por %p101, %p102
    %p104 = scmp.ne.s32.totalorder %s93, %s96
    %p105 = scmp.eq.s32.totalorder %s15, 1
    %p106 = por %p104, %p105
    %p107 = scmp.ne.s32.totalorder %s96, %s97
    %p108 = scmp.eq.s32.totalorder %s15, 0
    %p109 = por %p107, %p108
    %p110 = scmp.ne.s32.totalorder %s96, %s97
    %p111 = scmp.eq.s32.totalorder %s16, 1
    %p112 = por %p110, %p111
    %p114 = scmp.ne.s32.totalorder %s97, %s113
    %p115 = scmp.eq.s32.totalorder %s16, 0
    %p116 = por %p114, %p115
    %p117 = scmp.le.s32.totalorder 1, %s10
    %p118 = scmp.lt.s32.totalorder %s10, 3
    %p119 = pnand %p117, %p118
    %p120 = pneg %p119
    // Predicated region
    $region9: #{conv_block_forward.3} parent=5 // pred_check
      _
    $region10: #{conv_block_forward.3} parent=5 // pred_check_branch
      %122 = sbr.rel (%p119) target = $region12
    $region11: #{conv_block_forward.3} parent=5 // pred_region
      %s123 = ssub.s32 %s10, 1
      // Predicated region
      $region13: #{conv_block_forward.3} parent=11 // pred_check
        %p124 = pneg %p57
      $region14: #{conv_block_forward.3} parent=11 // pred_check_branch
        %126 = sbr.rel (%p124) target = $region16
      $region15: #{conv_block_forward.3} parent=11 // pred_region
        _
      $region16: #{conv_block_forward.3} parent=11 // pred_fallthru
        _
    $region12: #{conv_block_forward.3} parent=5 // pred_fallthru
      _
    %p127 = scmp.lt.s32.totalorder %s10, 2
    // Predicated region
    $region17: #{conv_block_forward.3} parent=5 // pred_check
      %p128 = pneg %p127
    $region18: #{conv_block_forward.3} parent=5 // pred_check_branch
      %130 = sbr.rel (%p128) target = $region20
    $region19: #{conv_block_forward.3} parent=5 // pred_region
      // Predicated region
      $region21: #{conv_block_forward.3} parent=19 // pred_check
        %p131 = pneg %p30
      $region22: #{conv_block_forward.3} parent=19 // pred_check_branch
        %133 = sbr.rel (%p131) target = $region24
      $region23: #{conv_block_forward.3} parent=19 // pred_region
        %p134 = scmp.lt.s32.totalorder %s10, 1
        %s135 = scalar_select %p134, %s10, 1
        %s136 = smul.addr %s135, 32
        %s137 = smul.addr %s136, 8
        %s138 = scalar_lea.vmem %s0, %s137
      $region24: #{conv_block_forward.3} parent=19 // pred_fallthru
        _
    $region20: #{conv_block_forward.3} parent=5 // pred_fallthru
      _
    %p139 = scmp.le.s32.totalorder 1, %s10
    %p140 = scmp.lt.s32.totalorder %s10, 3
    %p141 = pnand %p139, %p140
    %p142 = pneg %p141
    // Predicated region
    $region25: #{conv_block_forward.3} parent=5 // pred_check
      _
    $region26: #{conv_block_forward.3} parent=5 // pred_check_branch
      %144 = sbr.rel (%p141) target = $region28
    $region27: #{conv_block_forward.3} parent=5 // pred_region
      %s145 = ssub.s32 %s10, 1
      %p146 = scmp.lt.s32.totalorder %s15, 1
      %s147 = scalar_select %p146, %s15, 1
      %s148 = smul.addr %s147, 32
      %s149 = smul.addr %s148, 8
      %s150 = scalar_lea.vmem %s0, %s149
      %p151 = pneg %p36
      %p152 = pneg %p33
      %p153 = pneg %p57
      %p154 = pneg %p54
      %p155 = pneg %p83
      %p156 = pneg %p80
      %p157 = scmp.lt.s32.totalorder %s15, 1
      %s158 = scalar_select %p157, %s15, 1
      %s159 = smul.addr %s158, 32
      %s160 = smul.addr %s159, 8
      %s161 = scalar_lea.vmem %s2, %s160
      %p162 = pneg %p109
      %p163 = pneg %p106
      %p164 = scmp.lt.s32.totalorder %s15, 1
      %s165 = scalar_select %p164, %s15, 1
      %s166 = smul.addr %s165, 2
      %s167 = scalar_lea.vmem %s3, %s166
      %p168 = scmp.lt.s32.totalorder %s15, 1
      %s169 = scalar_select %p168, %s15, 1
      %s170 = smul.addr %s169, 32
      %s171 = smul.addr %s170, 8
      %s172 = scalar_lea.vmem %s0, %s171
      %p173 = scmp.lt.s32.totalorder %s15, 1
      %s174 = scalar_select %p173, %s15, 1
      %s175 = smul.addr %s174, 32
      %s176 = smul.addr %s175, 8
      %s177 = scalar_lea.vmem %s2, %s176
      %p178 = scmp.lt.s32.totalorder %s15, 1
      %s179 = scalar_select %p178, %s15, 1
      %s180 = smul.addr %s179, 2
      %s181 = scalar_lea.vmem %s3, %s180
      %vm182 = vcmask 31744
      %183 = vst.msk [vmem:[#allocation2] sm:$0xff] %vm182, 0.0
      %184 = vst.msk [vmem:[#allocation2 + $0x8] sm:$0xff] %vm182, 0.0
      %vm185 = vcmask 25600
      %186 = vst.msk [vmem:[#allocation2 + $0x10] sm:$0x3] %vm185, 0.0
      %s187 = scalar_lea.vmem [#allocation2], 408
      %188 = vst.msk [vmem:[%s187] sm:$0xff] %vm182, 0.0
      %189 = vst.msk [vmem:[%s187 + $0x8] sm:$0xff] %vm182, 0.0
      %190 = vst.msk [vmem:[%s187 + $0x10] sm:$0x3] %vm185, 0.0
      %vm191 = vcmask 24576
      %192 = vst.msk [vmem:[#allocation2] sm:$0x1] %vm191, 0.0
      %193 = vst.msk [vmem:[#allocation2 + $0x18] sm:$0x1] %vm191, 0.0
      %194 = vst.msk [vmem:[#allocation2 + $0x30] sm:$0x1] %vm191, 0.0
      %195 = vst.msk [vmem:[#allocation2 + $0x48] sm:$0x1] %vm191, 0.0
      %196 = vst.msk [vmem:[#allocation2 + $0x60] sm:$0x1] %vm191, 0.0
      %197 = vst.msk [vmem:[#allocation2 + $0x78] sm:$0x1] %vm191, 0.0
      %198 = vst.msk [vmem:[#allocation2 + $0x90] sm:$0x1] %vm191, 0.0
      %199 = vst.msk [vmem:[#allocation2 + $0xa8] sm:$0x1] %vm191, 0.0
      %200 = vst.msk [vmem:[#allocation2 + $0xc0] sm:$0x1] %vm191, 0.0
      %201 = vst.msk [vmem:[#allocation2 + $0xd8] sm:$0x1] %vm191, 0.0
      %202 = vst.msk [vmem:[#allocation2 + $0xf0] sm:$0x1] %vm191, 0.0
      %203 = vst.msk [vmem:[#allocation2 + $0x108] sm:$0x1] %vm191, 0.0
      %204 = vst.msk [vmem:[#allocation2 + $0x120] sm:$0x1] %vm191, 0.0
      %205 = vst.msk [vmem:[#allocation2 + $0x138] sm:$0x1] %vm191, 0.0
      %206 = vst.msk [vmem:[#allocation2 + $0x150] sm:$0x1] %vm191, 0.0
      %207 = vst.msk [vmem:[#allocation2 + $0x168] sm:$0x1] %vm191, 0.0
      %208 = vst.msk [vmem:[#allocation2 + $0x180] sm:$0x1] %vm191, 0.0
      %209 = vst.msk [vmem:[#allocation2 + $0x198] sm:$0x1] %vm191, 0.0
      %210 = vst.msk [vmem:[#allocation2 + $0x11] sm:$0x1] %vm191, 0.0
      %211 = vst.msk [vmem:[#allocation2 + $0x29] sm:$0x1] %vm191, 0.0
      %212 = vst.msk [vmem:[#allocation2 + $0x41] sm:$0x1] %vm191, 0.0
      %213 = vst.msk [vmem:[#allocation2 + $0x59] sm:$0x1] %vm191, 0.0
      %214 = vst.msk [vmem:[#allocation2 + $0x71] sm:$0x1] %vm191, 0.0
      %215 = vst.msk [vmem:[#allocation2 + $0x89] sm:$0x1] %vm191, 0.0
      %216 = vst.msk [vmem:[#allocation2 + $0xa1] sm:$0x1] %vm191, 0.0
      %217 = vst.msk [vmem:[#allocation2 + $0xb9] sm:$0x1] %vm191, 0.0
      %218 = vst.msk [vmem:[#allocation2 + $0xd1] sm:$0x1] %vm191, 0.0
      %219 = vst.msk [vmem:[#allocation2 + $0xe9] sm:$0x1] %vm191, 0.0
      %220 = vst.msk [vmem:[#allocation2 + $0x101] sm:$0x1] %vm191, 0.0
      %221 = vst.msk [vmem:[#allocation2 + $0x119] sm:$0x1] %vm191, 0.0
      %222 = vst.msk [vmem:[#allocation2 + $0x131] sm:$0x1] %vm191, 0.0
      %223 = vst.msk [vmem:[#allocation2 + $0x149] sm:$0x1] %vm191, 0.0
      %224 = vst.msk [vmem:[#allocation2 + $0x161] sm:$0x1] %vm191, 0.0
      %225 = vst.msk [vmem:[#allocation2 + $0x179] sm:$0x1] %vm191, 0.0
      %226 = vst.msk [vmem:[#allocation2 + $0x191] sm:$0x1] %vm191, 0.0
      %227 = vst.msk [vmem:[#allocation2 + $0x1a9] sm:$0x1] %vm191, 0.0
      %v228 = vld [vmem:[%s172] sm:$0xff]
      %v229 = vld [vmem:[%s172 + $0x8] sm:$0xff]
      %v230 = vld [vmem:[%s172 + $0x10] sm:$0xff]
      %v231 = vld [vmem:[%s172 + $0x18] sm:$0xff]
      %v232 = vld [vmem:[%s172 + $0x20] sm:$0xff]
      %v233 = vld [vmem:[%s172 + $0x28] sm:$0xff]
      %v234 = vld [vmem:[%s172 + $0x30] sm:$0xff]
      %v235 = vld [vmem:[%s172 + $0x38] sm:$0xff]
      %v236 = vld [vmem:[%s172 + $0x40] sm:$0xff]
      %v237 = vld [vmem:[%s172 + $0x48] sm:$0xff]
      %v238 = vld [vmem:[%s172 + $0x50] sm:$0xff]
      %v239 = vld [vmem:[%s172 + $0x58] sm:$0xff]
      %v240 = vld [vmem:[%s172 + $0x60] sm:$0xff]
      %v241 = vld [vmem:[%s172 + $0x68] sm:$0xff]
      %v242 = vld [vmem:[%s172 + $0x70] sm:$0xff]
      %v243 = vld [vmem:[%s172 + $0x78] sm:$0xff]
      %v244 = vld [vmem:[%s172 + $0x80] sm:$0xff]
      %v245 = vld [vmem:[%s172 + $0x88] sm:$0xff]
      %v246 = vld [vmem:[%s172 + $0x90] sm:$0xff]
      %v247 = vld [vmem:[%s172 + $0x98] sm:$0xff]
      %v248 = vld [vmem:[%s172 + $0xa0] sm:$0xff]
      %v249 = vld [vmem:[%s172 + $0xa8] sm:$0xff]
      %v250 = vld [vmem:[%s172 + $0xb0] sm:$0xff]
      %v251 = vld [vmem:[%s172 + $0xb8] sm:$0xff]
      %v252 = vld [vmem:[%s172 + $0xc0] sm:$0xff]
      %v253 = vld [vmem:[%s172 + $0xc8] sm:$0xff]
      %v254 = vld [vmem:[%s172 + $0xd0] sm:$0xff]
      %v255 = vld [vmem:[%s172 + $0xd8] sm:$0xff]
      %v256 = vld [vmem:[%s172 + $0xe0] sm:$0xff]
      %v257 = vld [vmem:[%s172 + $0xe8] sm:$0xff]
      %v258 = vld [vmem:[%s172 + $0xf0] sm:$0xff]
      %v259 = vld [vmem:[%s172 + $0xf8] sm:$0xff]
      %s260 = scalar_lea.vmem [#allocation2], 24
      %261 = vst.msk [vmem:[%s260 + $0x1] sm:$0xff] %vm182, %v228
      %262 = vst.msk [vmem:[%s260 + $0x9] sm:$0xff] %vm182, %v229
      %263 = vst.msk [vmem:[%s260 + $0x19] sm:$0xff] %vm182, %v230
      %264 = vst.msk [vmem:[%s260 + $0x21] sm:$0xff] %vm182, %v231
      %265 = vst.msk [vmem:[%s260 + $0x31] sm:$0xff] %vm182, %v232
      %266 = vst.msk [vmem:[%s260 + $0x39] sm:$0xff] %vm182, %v233
      %267 = vst.msk [vmem:[%s260 + $0x49] sm:$0xff] %vm182, %v234
      %268 = vst.msk [vmem:[%s260 + $0x51] sm:$0xff] %vm182, %v235
      %269 = vst.msk [vmem:[%s260 + $0x61] sm:$0xff] %vm182, %v236
      %270 = vst.msk [vmem:[%s260 + $0x69] sm:$0xff] %vm182, %v237
      %271 = vst.msk [vmem:[%s260 + $0x79] sm:$0xff] %vm182, %v238
      %272 = vst.msk [vmem:[%s260 + $0x81] sm:$0xff] %vm182, %v239
      %273 = vst.msk [vmem:[%s260 + $0x91] sm:$0xff] %vm182, %v240
      %274 = vst.msk [vmem:[%s260 + $0x99] sm:$0xff] %vm182, %v241
      %275 = vst.msk [vmem:[%s260 + $0xa9] sm:$0xff] %vm182, %v242
      %276 = vst.msk [vmem:[%s260 + $0xb1] sm:$0xff] %vm182, %v243
      %277 = vst.msk [vmem:[%s260 + $0xc1] sm:$0xff] %vm182, %v244
      %278 = vst.msk [vmem:[%s260 + $0xc9] sm:$0xff] %vm182, %v245
      %279 = vst.msk [vmem:[%s260 + $0xd9] sm:$0xff] %vm182, %v246
      %280 = vst.msk [vmem:[%s260 + $0xe1] sm:$0xff] %vm182, %v247
      %281 = vst.msk [vmem:[%s260 + $0xf1] sm:$0xff] %vm182, %v248
      %282 = vst.msk [vmem:[%s260 + $0xf9] sm:$0xff] %vm182, %v249
      %283 = vst.msk [vmem:[%s260 + $0x109] sm:$0xff] %vm182, %v250
      %284 = vst.msk [vmem:[%s260 + $0x111] sm:$0xff] %vm182, %v251
      %285 = vst.msk [vmem:[%s260 + $0x121] sm:$0xff] %vm182, %v252
      %286 = vst.msk [vmem:[%s260 + $0x129] sm:$0xff] %vm182, %v253
      %287 = vst.msk [vmem:[%s260 + $0x139] sm:$0xff] %vm182, %v254
      %288 = vst.msk [vmem:[%s260 + $0x141] sm:$0xff] %vm182, %v255
      %289 = vst.msk [vmem:[%s260 + $0x151] sm:$0xff] %vm182, %v256
      %290 = vst.msk [vmem:[%s260 + $0x159] sm:$0xff] %vm182, %v257
      %291 = vst.msk [vmem:[%s260 + $0x169] sm:$0xff] %vm182, %v258
      %292 = vst.msk [vmem:[%s260 + $0x171] sm:$0xff] %vm182, %v259
      %v293 = vld [vmem:[#allocation2] sm:$0xff]
      %v294 = vld [vmem:[#allocation2 + $0x8] sm:$0xff]
      %v295 = vld [vmem:[#allocation2 + $0x18] sm:$0xff]
      %v296 = vld [vmem:[#allocation2 + $0x20] sm:$0xff]
      %v297 = vld [vmem:[#allocation2 + $0x30] sm:$0xff]
      %v298 = vld [vmem:[#allocation2 + $0x38] sm:$0xff]
      %v299 = vld [vmem:[#allocation2 + $0x48] sm:$0xff]
      %v300 = vld [vmem:[#allocation2 + $0x50] sm:$0xff]
      %v301 = vld [vmem:[#allocation2 + $0x60] sm:$0xff]
      %v302 = vld [vmem:[#allocation2 + $0x68] sm:$0xff]
      %v303 = vld [vmem:[#allocation2 + $0x78] sm:$0xff]
      %v304 = vld [vmem:[#allocation2 + $0x80] sm:$0xff]
      %v305 = vld [vmem:[#allocation2 + $0x90] sm:$0xff]
      %v306 = vld [vmem:[#allocation2 + $0x98] sm:$0xff]
      %v307 = vld [vmem:[#allocation2 + $0xa8] sm:$0xff]
      %v308 = vld [vmem:[#allocation2 + $0xb0] sm:$0xff]
      %v309 = vld [vmem:[#allocation2 + $0xc0] sm:$0xff]
      %v310 = vld [vmem:[#allocation2 + $0xc8] sm:$0xff]
      %v311 = vld [vmem:[#allocation2 + $0xd8] sm:$0xff]
      %v312 = vld [vmem:[#allocation2 + $0xe0] sm:$0xff]
      %v313 = vld [vmem:[#allocation2 + $0xf0] sm:$0xff]
      %v314 = vld [vmem:[#allocation2 + $0xf8] sm:$0xff]
      %v315 = vld [vmem:[#allocation2 + $0x108] sm:$0xff]
      %v316 = vld [vmem:[#allocation2 + $0x110] sm:$0xff]
      %v317 = vld [vmem:[#allocation2 + $0x120] sm:$0xff]
      %v318 = vld [vmem:[#allocation2 + $0x128] sm:$0xff]
      %v319 = vld [vmem:[#allocation2 + $0x138] sm:$0xff]
      %v320 = vld [vmem:[#allocation2 + $0x140] sm:$0xff]
      %v321 = vld [vmem:[#allocation2 + $0x150] sm:$0xff]
      %v322 = vld [vmem:[#allocation2 + $0x158] sm:$0xff]
      %v323 = vld [vmem:[#allocation2 + $0x168] sm:$0xff]
      %v324 = vld [vmem:[#allocation2 + $0x170] sm:$0xff]
      %325 = vst.msk [vmem:[#allocation3] sm:$0xff] %vm182, %v293
      %326 = vst.msk [vmem:[#allocation3 + $0x8] sm:$0xff] %vm182, %v294
      %327 = vst.msk [vmem:[#allocation3 + $0x10] sm:$0xff] %vm182, %v295
      %328 = vst.msk [vmem:[#allocation3 + $0x18] sm:$0xff] %vm182, %v296
      %329 = vst.msk [vmem:[#allocation3 + $0x20] sm:$0xff] %vm182, %v297
      %330 = vst.msk [vmem:[#allocation3 + $0x28] sm:$0xff] %vm182, %v298
      %331 = vst.msk [vmem:[#allocation3 + $0x30] sm:$0xff] %vm182, %v299
      %332 = vst.msk [vmem:[#allocation3 + $0x38] sm:$0xff] %vm182, %v300
      %333 = vst.msk [vmem:[#allocation3 + $0x40] sm:$0xff] %vm182, %v301
      %334 = vst.msk [vmem:[#allocation3 + $0x48] sm:$0xff] %vm182, %v302
      %335 = vst.msk [vmem:[#allocation3 + $0x50] sm:$0xff] %vm182, %v303
      %336 = vst.msk [vmem:[#allocation3 + $0x58] sm:$0xff] %vm182, %v304
      %337 = vst.msk [vmem:[#allocation3 + $0x60] sm:$0xff] %vm182, %v305
      %338 = vst.msk [vmem:[#allocation3 + $0x68] sm:$0xff] %vm182, %v306
      %339 = vst.msk [vmem:[#allocation3 + $0x70] sm:$0xff] %vm182, %v307
      %340 = vst.msk [vmem:[#allocation3 + $0x78] sm:$0xff] %vm182, %v308
      %341 = vst.msk [vmem:[#allocation3 + $0x80] sm:$0xff] %vm182, %v309
      %342 = vst.msk [vmem:[#allocation3 + $0x88] sm:$0xff] %vm182, %v310
      %343 = vst.msk [vmem:[#allocation3 + $0x90] sm:$0xff] %vm182, %v311
      %344 = vst.msk [vmem:[#allocation3 + $0x98] sm:$0xff] %vm182, %v312
      %345 = vst.msk [vmem:[#allocation3 + $0xa0] sm:$0xff] %vm182, %v313
      %346 = vst.msk [vmem:[#allocation3 + $0xa8] sm:$0xff] %vm182, %v314
      %347 = vst.msk [vmem:[#allocation3 + $0xb0] sm:$0xff] %vm182, %v315
      %348 = vst.msk [vmem:[#allocation3 + $0xb8] sm:$0xff] %vm182, %v316
      %349 = vst.msk [vmem:[#allocation3 + $0xc0] sm:$0xff] %vm182, %v317
      %350 = vst.msk [vmem:[#allocation3 + $0xc8] sm:$0xff] %vm182, %v318
      %351 = vst.msk [vmem:[#allocation3 + $0xd0] sm:$0xff] %vm182, %v319
      %352 = vst.msk [vmem:[#allocation3 + $0xd8] sm:$0xff] %vm182, %v320
      %353 = vst.msk [vmem:[#allocation3 + $0xe0] sm:$0xff] %vm182, %v321
      %354 = vst.msk [vmem:[#allocation3 + $0xe8] sm:$0xff] %vm182, %v322
      %355 = vst.msk [vmem:[#allocation3 + $0xf0] sm:$0xff] %vm182, %v323
      %356 = vst.msk [vmem:[#allocation3 + $0xf8] sm:$0xff] %vm182, %v324
      %v357 = vld [vmem:[#allocation2 + $0x1] sm:$0xff]
      %v358 = vld [vmem:[#allocation2 + $0x9] sm:$0xff]
      %v359 = vld [vmem:[#allocation2 + $0x19] sm:$0xff]
      %v360 = vld [vmem:[#allocation2 + $0x21] sm:$0xff]
      %v361 = vld [vmem:[#allocation2 + $0x31] sm:$0xff]
      %v362 = vld [vmem:[#allocation2 + $0x39] sm:$0xff]
      %v363 = vld [vmem:[#allocation2 + $0x49] sm:$0xff]
      %v364 = vld [vmem:[#allocation2 + $0x51] sm:$0xff]
      %v365 = vld [vmem:[#allocation2 + $0x61] sm:$0xff]
      %v366 = vld [vmem:[#allocation2 + $0x69] sm:$0xff]
      %v367 = vld [vmem:[#allocation2 + $0x79] sm:$0xff]
      %v368 = vld [vmem:[#allocation2 + $0x81] sm:$0xff]
      %v369 = vld [vmem:[#allocation2 + $0x91] sm:$0xff]
      %v370 = vld [vmem:[#allocation2 + $0x99] sm:$0xff]
      %v371 = vld [vmem:[#allocation2 + $0xa9] sm:$0xff]
      %v372 = vld [vmem:[#allocation2 + $0xb1] sm:$0xff]
      %v373 = vld [vmem:[#allocation2 + $0xc1] sm:$0xff]
      %v374 = vld [vmem:[#allocation2 + $0xc9] sm:$0xff]
      %v375 = vld [vmem:[#allocation2 + $0xd9] sm:$0xff]
      %v376 = vld [vmem:[#allocation2 + $0xe1] sm:$0xff]
      %v377 = vld [vmem:[#allocation2 + $0xf1] sm:$0xff]
      %v378 = vld [vmem:[#allocation2 + $0xf9] sm:$0xff]
      %v379 = vld [vmem:[#allocation2 + $0x109] sm:$0xff]
      %v380 = vld [vmem:[#allocation2 + $0x111] sm:$0xff]
      %v381 = vld [vmem:[#allocation2 + $0x121] sm:$0xff]
      %v382 = vld [vmem:[#allocation2 + $0x129] sm:$0xff]
      %v383 = vld [vmem:[#allocation2 + $0x139] sm:$0xff]
      %v384 = vld [vmem:[#allocation2 + $0x141] sm:$0xff]
      %v385 = vld [vmem:[#allocation2 + $0x151] sm:$0xff]
      %v386 = vld [vmem:[#allocation2 + $0x159] sm:$0xff]
      %v387 = vld [vmem:[#allocation2 + $0x169] sm:$0xff]
      %v388 = vld [vmem:[#allocation2 + $0x171] sm:$0xff]
      %421 = vrot.lane.b32.xlu0 %v357, 4
      %v422 = vpop.permute.xlu0 %421
      %423 = vrot.lane.b32.xlu0 %v358, 4
      %v424 = vpop.permute.xlu0 %423
      %425 = vrot.lane.b32.xlu0 %v359, 4
      %v426 = vpop.permute.xlu0 %425
      %427 = vrot.lane.b32.xlu0 %v360, 4
      %v428 = vpop.permute.xlu0 %427
      %429 = vrot.lane.b32.xlu0 %v361, 4
      %v430 = vpop.permute.xlu0 %429
      %431 = vrot.lane.b32.xlu0 %v362, 4
      %v432 = vpop.permute.xlu0 %431
      %433 = vrot.lane.b32.xlu0 %v363, 4
      %v434 = vpop.permute.xlu0 %433
      %435 = vrot.lane.b32.xlu0 %v364, 4
      %v436 = vpop.permute.xlu0 %435
      %437 = vrot.lane.b32.xlu0 %v365, 4
      %v438 = vpop.permute.xlu0 %437
      %439 = vrot.lane.b32.xlu0 %v366, 4
      %v440 = vpop.permute.xlu0 %439
      %441 = vrot.lane.b32.xlu0 %v367, 4
      %v442 = vpop.permute.xlu0 %441
      %443 = vrot.lane.b32.xlu0 %v368, 4
      %v444 = vpop.permute.xlu0 %443
      %445 = vrot.lane.b32.xlu0 %v369, 4
      %v446 = vpop.permute.xlu0 %445
      %447 = vrot.lane.b32.xlu0 %v370, 4
      %v448 = vpop.permute.xlu0 %447
      %449 = vrot.lane.b32.xlu0 %v371, 4
      %v450 = vpop.permute.xlu0 %449
      %451 = vrot.lane.b32.xlu0 %v372, 4
      %v452 = vpop.permute.xlu0 %451
      %453 = vrot.lane.b32.xlu0 %v373, 4
      %v454 = vpop.permute.xlu0 %453
      %455 = vrot.lane.b32.xlu0 %v374, 4
      %v456 = vpop.permute.xlu0 %455
      %457 = vrot.lane.b32.xlu0 %v375, 4
      %v458 = vpop.permute.xlu0 %457
      %459 = vrot.lane.b32.xlu0 %v376, 4
      %v460 = vpop.permute.xlu0 %459
      %461 = vrot.lane.b32.xlu0 %v377, 4
      %v462 = vpop.permute.xlu0 %461
      %463 = vrot.lane.b32.xlu0 %v378, 4
      %v464 = vpop.permute.xlu0 %463
      %465 = vrot.lane.b32.xlu0 %v379, 4
      %v466 = vpop.permute.xlu0 %465
      %467 = vrot.lane.b32.xlu0 %v380, 4
      %v468 = vpop.permute.xlu0 %467
      %469 = vrot.lane.b32.xlu0 %v381, 4
      %v470 = vpop.permute.xlu0 %469
      %471 = vrot.lane.b32.xlu0 %v382, 4
      %v472 = vpop.permute.xlu0 %471
      %473 = vrot.lane.b32.xlu0 %v383, 4
      %v474 = vpop.permute.xlu0 %473
      %475 = vrot.lane.b32.xlu0 %v384, 4
      %v476 = vpop.permute.xlu0 %475
      %477 = vrot.lane.b32.xlu0 %v385, 4
      %v478 = vpop.permute.xlu0 %477
      %479 = vrot.lane.b32.xlu0 %v386, 4
      %v480 = vpop.permute.xlu0 %479
      %481 = vrot.lane.b32.xlu0 %v387, 4
      %v482 = vpop.permute.xlu0 %481
      %483 = vrot.lane.b32.xlu0 %v388, 4
      %v484 = vpop.permute.xlu0 %483
      %vm517 = vcmask 64544
      %518 = vst.msk [vmem:[#allocation3] sm:$0xff] %vm517, %v422
      %519 = vst.msk [vmem:[#allocation3 + $0x8] sm:$0xff] %vm517, %v424
      %520 = vst.msk [vmem:[#allocation3 + $0x10] sm:$0xff] %vm517, %v426
      %521 = vst.msk [vmem:[#allocation3 + $0x18] sm:$0xff] %vm517, %v428
      %522 = vst.msk [vmem:[#allocation3 + $0x20] sm:$0xff] %vm517, %v430
      %523 = vst.msk [vmem:[#allocation3 + $0x28] sm:$0xff] %vm517, %v432
      %524 = vst.msk [vmem:[#allocation3 + $0x30] sm:$0xff] %vm517, %v434
      %525 = vst.msk [vmem:[#allocation3 + $0x38] sm:$0xff] %vm517, %v436
      %526 = vst.msk [vmem:[#allocation3 + $0x40] sm:$0xff] %vm517, %v438
      %527 = vst.msk [vmem:[#allocation3 + $0x48] sm:$0xff] %vm517, %v440
      %528 = vst.msk [vmem:[#allocation3 + $0x50] sm:$0xff] %vm517, %v442
      %529 = vst.msk [vmem:[#allocation3 + $0x58] sm:$0xff] %vm517, %v444
      %530 = vst.msk [vmem:[#allocation3 + $0x60] sm:$0xff] %vm517, %v446
      %531 = vst.msk [vmem:[#allocation3 + $0x68] sm:$0xff] %vm517, %v448
      %532 = vst.msk [vmem:[#allocation3 + $0x70] sm:$0xff] %vm517, %v450
      %533 = vst.msk [vmem:[#allocation3 + $0x78] sm:$0xff] %vm517, %v452
      %534 = vst.msk [vmem:[#allocation3 + $0x80] sm:$0xff] %vm517, %v454
      %535 = vst.msk [vmem:[#allocation3 + $0x88] sm:$0xff] %vm517, %v456
      %536 = vst.msk [vmem:[#allocation3 + $0x90] sm:$0xff] %vm517, %v458
      %537 = vst.msk [vmem:[#allocation3 + $0x98] sm:$0xff] %vm517, %v460
      %538 = vst.msk [vmem:[#allocation3 + $0xa0] sm:$0xff] %vm517, %v462
      %539 = vst.msk [vmem:[#allocation3 + $0xa8] sm:$0xff] %vm517, %v464
      %540 = vst.msk [vmem:[#allocation3 + $0xb0] sm:$0xff] %vm517, %v466
      %541 = vst.msk [vmem:[#allocation3 + $0xb8] sm:$0xff] %vm517, %v468
      %542 = vst.msk [vmem:[#allocation3 + $0xc0] sm:$0xff] %vm517, %v470
      %543 = vst.msk [vmem:[#allocation3 + $0xc8] sm:$0xff] %vm517, %v472
      %544 = vst.msk [vmem:[#allocation3 + $0xd0] sm:$0xff] %vm517, %v474
      %545 = vst.msk [vmem:[#allocation3 + $0xd8] sm:$0xff] %vm517, %v476
      %546 = vst.msk [vmem:[#allocation3 + $0xe0] sm:$0xff] %vm517, %v478
      %547 = vst.msk [vmem:[#allocation3 + $0xe8] sm:$0xff] %vm517, %v480
      %548 = vst.msk [vmem:[#allocation3 + $0xf0] sm:$0xff] %vm517, %v482
      %549 = vst.msk [vmem:[#allocation3 + $0xf8] sm:$0xff] %vm517, %v484
      %v550 = vld [vmem:[#allocation2 + $0x2] sm:$0xff]
      %v551 = vld [vmem:[#allocation2 + $0xa] sm:$0xff]
      %v552 = vld [vmem:[#allocation2 + $0x1a] sm:$0xff]
      %v553 = vld [vmem:[#allocation2 + $0x22] sm:$0xff]
      %v554 = vld [vmem:[#allocation2 + $0x32] sm:$0xff]
      %v555 = vld [vmem:[#allocation2 + $0x3a] sm:$0xff]
      %v556 = vld [vmem:[#allocation2 + $0x4a] sm:$0xff]
      %v557 = vld [vmem:[#allocation2 + $0x52] sm:$0xff]
      %v558 = vld [vmem:[#allocation2 + $0x62] sm:$0xff]
      %v559 = vld [vmem:[#allocation2 + $0x6a] sm:$0xff]
      %v560 = vld [vmem:[#allocation2 + $0x7a] sm:$0xff]
      %v561 = vld [vmem:[#allocation2 + $0x82] sm:$0xff]
      %v562 = vld [vmem:[#allocation2 + $0x92] sm:$0xff]
      %v563 = vld [vmem:[#allocation2 + $0x9a] sm:$0xff]
      %v564 = vld [vmem:[#allocation2 + $0xaa] sm:$0xff]
      %v565 = vld [vmem:[#allocation2 + $0xb2] sm:$0xff]
      %v566 = vld [vmem:[#allocation2 + $0xc2] sm:$0xff]
      %v567 = vld [vmem:[#allocation2 + $0xca] sm:$0xff]
      %v568 = vld [vmem:[#allocation2 + $0xda] sm:$0xff]
      %v569 = vld [vmem:[#allocation2 + $0xe2] sm:$0xff]
      %v570 = vld [vmem:[#allocation2 + $0xf2] sm:$0xff]
      %v571 = vld [vmem:[#allocation2 + $0xfa] sm:$0xff]
      %v572 = vld [vmem:[#allocation2 + $0x10a] sm:$0xff]
      %v573 = vld [vmem:[#allocation2 + $0x112] sm:$0xff]
      %v574 = vld [vmem:[#allocation2 + $0x122] sm:$0xff]
      %v575 = vld [vmem:[#allocation2 + $0x12a] sm:$0xff]
      %v576 = vld [vmem:[#allocation2 + $0x13a] sm:$0xff]
      %v577 = vld [vmem:[#allocation2 + $0x142] sm:$0xff]
      %v578 = vld [vmem:[#allocation2 + $0x152] sm:$0xff]
      %v579 = vld [vmem:[#allocation2 + $0x15a] sm:$0xff]
      %v580 = vld [vmem:[#allocation2 + $0x16a] sm:$0xff]
      %v581 = vld [vmem:[#allocation2 + $0x172] sm:$0xff]
      %614 = vrot.lane.b32.xlu0 %v550, 8
      %v615 = vpop.permute.xlu0 %614
      %616 = vrot.lane.b32.xlu0 %v551, 8
      %v617 = vpop.permute.xlu0 %616
      %618 = vrot.lane.b32.xlu0 %v552, 8
      %v619 = vpop.permute.xlu0 %618
      %620 = vrot.lane.b32.xlu0 %v553, 8
      %v621 = vpop.permute.xlu0 %620
      %622 = vrot.lane.b32.xlu0 %v554, 8
      %v623 = vpop.permute.xlu0 %622
      %624 = vrot.lane.b32.xlu0 %v555, 8
      %v625 = vpop.permute.xlu0 %624
      %626 = vrot.lane.b32.xlu0 %v556, 8
      %v627 = vpop.permute.xlu0 %626
      %628 = vrot.lane.b32.xlu0 %v557, 8
      %v629 = vpop.permute.xlu0 %628
      %630 = vrot.lane.b32.xlu0 %v558, 8
      %v631 = vpop.permute.xlu0 %630
      %632 = vrot.lane.b32.xlu0 %v559, 8
      %v633 = vpop.permute.xlu0 %632
      %634 = vrot.lane.b32.xlu0 %v560, 8
      %v635 = vpop.permute.xlu0 %634
      %636 = vrot.lane.b32.xlu0 %v561, 8
      %v637 = vpop.permute.xlu0 %636
      %638 = vrot.lane.b32.xlu0 %v562, 8
      %v639 = vpop.permute.xlu0 %638
      %640 = vrot.lane.b32.xlu0 %v563, 8
      %v641 = vpop.permute.xlu0 %640
      %642 = vrot.lane.b32.xlu0 %v564, 8
      %v643 = vpop.permute.xlu0 %642
      %644 = vrot.lane.b32.xlu0 %v565, 8
      %v645 = vpop.permute.xlu0 %644
      %646 = vrot.lane.b32.xlu0 %v566, 8
      %v647 = vpop.permute.xlu0 %646
      %648 = vrot.lane.b32.xlu0 %v567, 8
      %v649 = vpop.permute.xlu0 %648
      %650 = vrot.lane.b32.xlu0 %v568, 8
      %v651 = vpop.permute.xlu0 %650
      %652 = vrot.lane.b32.xlu0 %v569, 8
      %v653 = vpop.permute.xlu0 %652
      %654 = vrot.lane.b32.xlu0 %v570, 8
      %v655 = vpop.permute.xlu0 %654
      %656 = vrot.lane.b32.xlu0 %v571, 8
      %v657 = vpop.permute.xlu0 %656
      %658 = vrot.lane.b32.xlu0 %v572, 8
      %v659 = vpop.permute.xlu0 %658
      %660 = vrot.lane.b32.xlu0 %v573, 8
      %v661 = vpop.permute.xlu0 %660
      %662 = vrot.lane.b32.xlu0 %v574, 8
      %v663 = vpop.permute.xlu0 %662
      %664 = vrot.lane.b32.xlu0 %v575, 8
      %v665 = vpop.permute.xlu0 %664
      %666 = vrot.lane.b32.xlu0 %v576, 8
      %v667 = vpop.permute.xlu0 %666
      %668 = vrot.lane.b32.xlu0 %v577, 8
      %v669 = vpop.permute.xlu0 %668
      %670 = vrot.lane.b32.xlu0 %v578, 8
      %v671 = vpop.permute.xlu0 %670
      %672 = vrot.lane.b32.xlu0 %v579, 8
      %v673 = vpop.permute.xlu0 %672
      %674 = vrot.lane.b32.xlu0 %v580, 8
      %v675 = vpop.permute.xlu0 %674
      %676 = vrot.lane.b32.xlu0 %v581, 8
      %v677 = vpop.permute.xlu0 %676
      %vm710 = vcmask 97344
      %711 = vst.msk [vmem:[#allocation3] sm:$0xff] %vm710, %v615
      %712 = vst.msk [vmem:[#allocation3 + $0x8] sm:$0xff] %vm710, %v617
      %713 = vst.msk [vmem:[#allocation3 + $0x10] sm:$0xff] %vm710, %v619
      %714 = vst.msk [vmem:[#allocation3 + $0x18] sm:$0xff] %vm710, %v621
      %715 = vst.msk [vmem:[#allocation3 + $0x20] sm:$0xff] %vm710, %v623
      %716 = vst.msk [vmem:[#allocation3 + $0x28] sm:$0xff] %vm710, %v625
      %717 = vst.msk [vmem:[#allocation3 + $0x30] sm:$0xff] %vm710, %v627
      %718 = vst.msk [vmem:[#allocation3 + $0x38] sm:$0xff] %vm710, %v629
      %719 = vst.msk [vmem:[#allocation3 + $0x40] sm:$0xff] %vm710, %v631
      %720 = vst.msk [vmem:[#allocation3 + $0x48] sm:$0xff] %vm710, %v633
      %721 = vst.msk [vmem:[#allocation3 + $0x50] sm:$0xff] %vm710, %v635
      %722 = vst.msk [vmem:[#allocation3 + $0x58] sm:$0xff] %vm710, %v637
      %723 = vst.msk [vmem:[#allocation3 + $0x60] sm:$0xff] %vm710, %v639
      %724 = vst.msk [vmem:[#allocation3 + $0x68] sm:$0xff] %vm710, %v641
      %725 = vst.msk [vmem:[#allocation3 + $0x70] sm:$0xff] %vm710, %v643
      %726 = vst.msk [vmem:[#allocation3 + $0x78] sm:$0xff] %vm710, %v645
      %727 = vst.msk [vmem:[#allocation3 + $0x80] sm:$0xff] %vm710, %v647
      %728 = vst.msk [vmem:[#allocation3 + $0x88] sm:$0xff] %vm710, %v649
      %729 = vst.msk [vmem:[#allocation3 + $0x90] sm:$0xff] %vm710, %v651
      %730 = vst.msk [vmem:[#allocation3 + $0x98] sm:$0xff] %vm710, %v653
      %731 = vst.msk [vmem:[#allocation3 + $0xa0] sm:$0xff] %vm710, %v655
      %732 = vst.msk [vmem:[#allocation3 + $0xa8] sm:$0xff] %vm710, %v657
      %733 = vst.msk [vmem:[#allocation3 + $0xb0] sm:$0xff] %vm710, %v659
      %734 = vst.msk [vmem:[#allocation3 + $0xb8] sm:$0xff] %vm710, %v661
      %735 = vst.msk [vmem:[#allocation3 + $0xc0] sm:$0xff] %vm710, %v663
      %736 = vst.msk [vmem:[#allocation3 + $0xc8] sm:$0xff] %vm710, %v665
      %737 = vst.msk [vmem:[#allocation3 + $0xd0] sm:$0xff] %vm710, %v667
      %738 = vst.msk [vmem:[#allocation3 + $0xd8] sm:$0xff] %vm710, %v669
      %739 = vst.msk [vmem:[#allocation3 + $0xe0] sm:$0xff] %vm710, %v671
      %740 = vst.msk [vmem:[#allocation3 + $0xe8] sm:$0xff] %vm710, %v673
      %741 = vst.msk [vmem:[#allocation3 + $0xf0] sm:$0xff] %vm710, %v675
      %742 = vst.msk [vmem:[#allocation3 + $0xf8] sm:$0xff] %vm710, %v677
      %v743 = vld [vmem:[%s260] sm:$0xff]
      %v744 = vld [vmem:[%s260 + $0x8] sm:$0xff]
      %v745 = vld [vmem:[%s260 + $0x18] sm:$0xff]
      %v746 = vld [vmem:[%s260 + $0x20] sm:$0xff]
      %v747 = vld [vmem:[%s260 + $0x30] sm:$0xff]
      %v748 = vld [vmem:[%s260 + $0x38] sm:$0xff]
      %v749 = vld [vmem:[%s260 + $0x48] sm:$0xff]
      %v750 = vld [vmem:[%s260 + $0x50] sm:$0xff]
      %v751 = vld [vmem:[%s260 + $0x60] sm:$0xff]
      %v752 = vld [vmem:[%s260 + $0x68] sm:$0xff]
      %v753 = vld [vmem:[%s260 + $0x78] sm:$0xff]
      %v754 = vld [vmem:[%s260 + $0x80] sm:$0xff]
      %v755 = vld [vmem:[%s260 + $0x90] sm:$0xff]
      %v756 = vld [vmem:[%s260 + $0x98] sm:$0xff]
      %v757 = vld [vmem:[%s260 + $0xa8] sm:$0xff]
      %v758 = vld [vmem:[%s260 + $0xb0] sm:$0xff]
      %v759 = vld [vmem:[%s260 + $0xc0] sm:$0xff]
      %v760 = vld [vmem:[%s260 + $0xc8] sm:$0xff]
      %v761 = vld [vmem:[%s260 + $0xd8] sm:$0xff]
      %v762 = vld [vmem:[%s260 + $0xe0] sm:$0xff]
      %v763 = vld [vmem:[%s260 + $0xf0] sm:$0xff]
      %v764 = vld [vmem:[%s260 + $0xf8] sm:$0xff]
      %v765 = vld [vmem:[%s260 + $0x108] sm:$0xff]
      %v766 = vld [vmem:[%s260 + $0x110] sm:$0xff]
      %v767 = vld [vmem:[%s260 + $0x120] sm:$0xff]
      %v768 = vld [vmem:[%s260 + $0x128] sm:$0xff]
      %v769 = vld [vmem:[%s260 + $0x138] sm:$0xff]
      %v770 = vld [vmem:[%s260 + $0x140] sm:$0xff]
      %v771 = vld [vmem:[%s260 + $0x150] sm:$0xff]
      %v772 = vld [vmem:[%s260 + $0x158] sm:$0xff]
      %v773 = vld [vmem:[%s260 + $0x168] sm:$0xff]
      %v774 = vld [vmem:[%s260 + $0x170] sm:$0xff]
      %807 = vrot.lane.b32.xlu0 %v743, 12
      %v808 = vpop.permute.xlu0 %807
      %809 = vrot.lane.b32.xlu0 %v744, 12
      %v810 = vpop.permute.xlu0 %809
      %811 = vrot.lane.b32.xlu0 %v745, 12
      %v812 = vpop.permute.xlu0 %811
      %813 = vrot.lane.b32.xlu0 %v746, 12
      %v814 = vpop.permute.xlu0 %813
      %815 = vrot.lane.b32.xlu0 %v747, 12
      %v816 = vpop.permute.xlu0 %815
      %817 = vrot.lane.b32.xlu0 %v748, 12
      %v818 = vpop.permute.xlu0 %817
      %819 = vrot.lane.b32.xlu0 %v749, 12
      %v820 = vpop.permute.xlu0 %819
      %821 = vrot.lane.b32.xlu0 %v750, 12
      %v822 = vpop.permute.xlu0 %821
      %823 = vrot.lane.b32.xlu0 %v751, 12
      %v824 = vpop.permute.xlu0 %823
      %825 = vrot.lane.b32.xlu0 %v752, 12
      %v826 = vpop.permute.xlu0 %825
      %827 = vrot.lane.b32.xlu0 %v753, 12
      %v828 = vpop.permute.xlu0 %827
      %829 = vrot.lane.b32.xlu0 %v754, 12
      %v830 = vpop.permute.xlu0 %829
      %831 = vrot.lane.b32.xlu0 %v755, 12
      %v832 = vpop.permute.xlu0 %831
      %833 = vrot.lane.b32.xlu0 %v756, 12
      %v834 = vpop.permute.xlu0 %833
      %835 = vrot.lane.b32.xlu0 %v757, 12
      %v836 = vpop.permute.xlu0 %835
      %837 = vrot.lane.b32.xlu0 %v758, 12
      %v838 = vpop.permute.xlu0 %837
      %839 = vrot.lane.b32.xlu0 %v759, 12
      %v840 = vpop.permute.xlu0 %839
      %841 = vrot.lane.b32.xlu0 %v760, 12
      %v842 = vpop.permute.xlu0 %841
      %843 = vrot.lane.b32.xlu0 %v761, 12
      %v844 = vpop.permute.xlu0 %843
      %845 = vrot.lane.b32.xlu0 %v762, 12
      %v846 = vpop.permute.xlu0 %845
      %847 = vrot.lane.b32.xlu0 %v763, 12
      %v848 = vpop.permute.xlu0 %847
      %849 = vrot.lane.b32.xlu0 %v764, 12
      %v850 = vpop.permute.xlu0 %849
      %851 = vrot.lane.b32.xlu0 %v765, 12
      %v852 = vpop.permute.xlu0 %851
      %853 = vrot.lane.b32.xlu0 %v766, 12
      %v854 = vpop.permute.xlu0 %853
      %855 = vrot.lane.b32.xlu0 %v767, 12
      %v856 = vpop.permute.xlu0 %855
      %857 = vrot.lane.b32.xlu0 %v768, 12
      %v858 = vpop.permute.xlu0 %857
      %859 = vrot.lane.b32.xlu0 %v769, 12
      %v860 = vpop.permute.xlu0 %859
      %861 = vrot.lane.b32.xlu0 %v770, 12
      %v862 = vpop.permute.xlu0 %861
      %863 = vrot.lane.b32.xlu0 %v771, 12
      %v864 = vpop.permute.xlu0 %863
      %865 = vrot.lane.b32.xlu0 %v772, 12
      %v866 = vpop.permute.xlu0 %865
      %867 = vrot.lane.b32.xlu0 %v773, 12
      %v868 = vpop.permute.xlu0 %867
      %869 = vrot.lane.b32.xlu0 %v774, 12
      %v870 = vpop.permute.xlu0 %869
      %vm903 = vcmask 130144
      %904 = vst.msk [vmem:[#allocation3] sm:$0xff] %vm903, %v808
      %905 = vst.msk [vmem:[#allocation3 + $0x8] sm:$0xff] %vm903, %v810
      %906 = vst.msk [vmem:[#allocation3 + $0x10] sm:$0xff] %vm903, %v812
      %907 = vst.msk [vmem:[#allocation3 + $0x18] sm:$0xff] %vm903, %v814
      %908 = vst.msk [vmem:[#allocation3 + $0x20] sm:$0xff] %vm903, %v816
      %909 = vst.msk [vmem:[#allocation3 + $0x28] sm:$0xff] %vm903, %v818
      %910 = vst.msk [vmem:[#allocation3 + $0x30] sm:$0xff] %vm903, %v820
      %911 = vst.msk [vmem:[#allocation3 + $0x38] sm:$0xff] %vm903, %v822
      %912 = vst.msk [vmem:[#allocation3 + $0x40] sm:$0xff] %vm903, %v824
      %913 = vst.msk [vmem:[#allocation3 + $0x48] sm:$0xff] %vm903, %v826
      %914 = vst.msk [vmem:[#allocation3 + $0x50] sm:$0xff] %vm903, %v828
      %915 = vst.msk [vmem:[#allocation3 + $0x58] sm:$0xff] %vm903, %v830
      %916 = vst.msk [vmem:[#allocation3 + $0x60] sm:$0xff] %vm903, %v832
      %917 = vst.msk [vmem:[#allocation3 + $0x68] sm:$0xff] %vm903, %v834
      %918 = vst.msk [vmem:[#allocation3 + $0x70] sm:$0xff] %vm903, %v836
      %919 = vst.msk [vmem:[#allocation3 + $0x78] sm:$0xff] %vm903, %v838
      %920 = vst.msk [vmem:[#allocation3 + $0x80] sm:$0xff] %vm903, %v840
      %921 = vst.msk [vmem:[#allocation3 + $0x88] sm:$0xff] %vm903, %v842
      %922 = vst.msk [vmem:[#allocation3 + $0x90] sm:$0xff] %vm903, %v844
      %923 = vst.msk [vmem:[#allocation3 + $0x98] sm:$0xff] %vm903, %v846
      %924 = vst.msk [vmem:[#allocation3 + $0xa0] sm:$0xff] %vm903, %v848
      %925 = vst.msk [vmem:[#allocation3 + $0xa8] sm:$0xff] %vm903, %v850
      %926 = vst.msk [vmem:[#allocation3 + $0xb0] sm:$0xff] %vm903, %v852
      %927 = vst.msk [vmem:[#allocation3 + $0xb8] sm:$0xff] %vm903, %v854
      %928 = vst.msk [vmem:[#allocation3 + $0xc0] sm:$0xff] %vm903, %v856
      %929 = vst.msk [vmem:[#allocation3 + $0xc8] sm:$0xff] %vm903, %v858
      %930 = vst.msk [vmem:[#allocation3 + $0xd0] sm:$0xff] %vm903, %v860
      %931 = vst.msk [vmem:[#allocation3 + $0xd8] sm:$0xff] %vm903, %v862
      %932 = vst.msk [vmem:[#allocation3 + $0xe0] sm:$0xff] %vm903, %v864
      %933 = vst.msk [vmem:[#allocation3 + $0xe8] sm:$0xff] %vm903, %v866
      %934 = vst.msk [vmem:[#allocation3 + $0xf0] sm:$0xff] %vm903, %v868
      %935 = vst.msk [vmem:[#allocation3 + $0xf8] sm:$0xff] %vm903, %v870
      %v936 = vld [vmem:[%s260 + $0x1] sm:$0xff]
      %v937 = vld [vmem:[%s260 + $0x9] sm:$0xff]
      %v938 = vld [vmem:[%s260 + $0x19] sm:$0xff]
      %v939 = vld [vmem:[%s260 + $0x21] sm:$0xff]
      %v940 = vld [vmem:[%s260 + $0x31] sm:$0xff]
      %v941 = vld [vmem:[%s260 + $0x39] sm:$0xff]
      %v942 = vld [vmem:[%s260 + $0x49] sm:$0xff]
      %v943 = vld [vmem:[%s260 + $0x51] sm:$0xff]
      %v944 = vld [vmem:[%s260 + $0x61] sm:$0xff]
      %v945 = vld [vmem:[%s260 + $0x69] sm:$0xff]
      %v946 = vld [vmem:[%s260 + $0x79] sm:$0xff]
      %v947 = vld [vmem:[%s260 + $0x81] sm:$0xff]
      %v948 = vld [vmem:[%s260 + $0x91] sm:$0xff]
      %v949 = vld [vmem:[%s260 + $0x99] sm:$0xff]
      %v950 = vld [vmem:[%s260 + $0xa9] sm:$0xff]
      %v951 = vld [vmem:[%s260 + $0xb1] sm:$0xff]
      %v952 = vld [vmem:[%s260 + $0xc1] sm:$0xff]
      %v953 = vld [vmem:[%s260 + $0xc9] sm:$0xff]
      %v954 = vld [vmem:[%s260 + $0xd9] sm:$0xff]
      %v955 = vld [vmem:[%s260 + $0xe1] sm:$0xff]
      %v956 = vld [vmem:[%s260 + $0xf1] sm:$0xff]
      %v957 = vld [vmem:[%s260 + $0xf9] sm:$0xff]
      %v958 = vld [vmem:[%s260 + $0x109] sm:$0xff]
      %v959 = vld [vmem:[%s260 + $0x111] sm:$0xff]
      %v960 = vld [vmem:[%s260 + $0x121] sm:$0xff]
      %v961 = vld [vmem:[%s260 + $0x129] sm:$0xff]
      %v962 = vld [vmem:[%s260 + $0x139] sm:$0xff]
      %v963 = vld [vmem:[%s260 + $0x141] sm:$0xff]
      %v964 = vld [vmem:[%s260 + $0x151] sm:$0xff]
      %v965 = vld [vmem:[%s260 + $0x159] sm:$0xff]
      %v966 = vld [vmem:[%s260 + $0x169] sm:$0xff]
      %v967 = vld [vmem:[%s260 + $0x171] sm:$0xff]
      %1000 = vrot.lane.b32.xlu0 %v936, 16
      %v1001 = vpop.permute.xlu0 %1000
      %1002 = vrot.lane.b32.xlu0 %v937, 16
      %v1003 = vpop.permute.xlu0 %1002
      %1004 = vrot.lane.b32.xlu0 %v938, 16
      %v1005 = vpop.permute.xlu0 %1004
      %1006 = vrot.lane.b32.xlu0 %v939, 16
      %v1007 = vpop.permute.xlu0 %1006
      %1008 = vrot.lane.b32.xlu0 %v940, 16
      %v1009 = vpop.permute.xlu0 %1008
      %1010 = vrot.lane.b32.xlu0 %v941, 16
      %v1011 = vpop.permute.xlu0 %1010
      %1012 = vrot.lane.b32.xlu0 %v942, 16
      %v1013 = vpop.permute.xlu0 %1012
      %1014 = vrot.lane.b32.xlu0 %v943, 16
      %v1015 = vpop.permute.xlu0 %1014
      %1016 = vrot.lane.b32.xlu0 %v944, 16
      %v1017 = vpop.permute.xlu0 %1016
      %1018 = vrot.lane.b32.xlu0 %v945, 16
      %v1019 = vpop.permute.xlu0 %1018
      %1020 = vrot.lane.b32.xlu0 %v946, 16
      %v1021 = vpop.permute.xlu0 %1020
      %1022 = vrot.lane.b32.xlu0 %v947, 16
      %v1023 = vpop.permute.xlu0 %1022
      %1024 = vrot.lane.b32.xlu0 %v948, 16
      %v1025 = vpop.permute.xlu0 %1024
      %1026 = vrot.lane.b32.xlu0 %v949, 16
      %v1027 = vpop.permute.xlu0 %1026
      %1028 = vrot.lane.b32.xlu0 %v950, 16
      %v1029 = vpop.permute.xlu0 %1028
      %1030 = vrot.lane.b32.xlu0 %v951, 16
      %v1031 = vpop.permute.xlu0 %1030
      %1032 = vrot.lane.b32.xlu0 %v952, 16
      %v1033 = vpop.permute.xlu0 %1032
      %1034 = vrot.lane.b32.xlu0 %v953, 16
      %v1035 = vpop.permute.xlu0 %1034
      %1036 = vrot.lane.b32.xlu0 %v954, 16
      %v1037 = vpop.permute.xlu0 %1036
      %1038 = vrot.lane.b32.xlu0 %v955, 16
      %v1039 = vpop.permute.xlu0 %1038
      %1040 = vrot.lane.b32.xlu0 %v956, 16
      %v1041 = vpop.permute.xlu0 %1040
      %1042 = vrot.lane.b32.xlu0 %v957, 16
      %v1043 = vpop.permute.xlu0 %1042
      %1044 = vrot.lane.b32.xlu0 %v958, 16
      %v1045 = vpop.permute.xlu0 %1044
      %1046 = vrot.lane.b32.xlu0 %v959, 16
      %v1047 = vpop.permute.xlu0 %1046
      %1048 = vrot.lane.b32.xlu0 %v960, 16
      %v1049 = vpop.permute.xlu0 %1048
      %1050 = vrot.lane.b32.xlu0 %v961, 16
      %v1051 = vpop.permute.xlu0 %1050
      %1052 = vrot.lane.b32.xlu0 %v962, 16
      %v1053 = vpop.permute.xlu0 %1052
      %1054 = vrot.lane.b32.xlu0 %v963, 16
      %v1055 = vpop.permute.xlu0 %1054
      %1056 = vrot.lane.b32.xlu0 %v964, 16
      %v1057 = vpop.permute.xlu0 %1056
      %1058 = vrot.lane.b32.xlu0 %v965, 16
      %v1059 = vpop.permute.xlu0 %1058
      %1060 = vrot.lane.b32.xlu0 %v966, 16
      %v1061 = vpop.permute.xlu0 %1060
      %1062 = vrot.lane.b32.xlu0 %v967, 16
      %v1063 = vpop.permute.xlu0 %1062
      %vm1096 = vcmask 162944
      %1097 = vst.msk [vmem:[#allocation3] sm:$0xff] %vm1096, %v1001
      %1098 = vst.msk [vmem:[#allocation3 + $0x8] sm:$0xff] %vm1096, %v1003
      %1099 = vst.msk [vmem:[#allocation3 + $0x10] sm:$0xff] %vm1096, %v1005
      %1100 = vst.msk [vmem:[#allocation3 + $0x18] sm:$0xff] %vm1096, %v1007
      %1101 = vst.msk [vmem:[#allocation3 + $0x20] sm:$0xff] %vm1096, %v1009
      %1102 = vst.msk [vmem:[#allocation3 + $0x28] sm:$0xff] %vm1096, %v1011
      %1103 = vst.msk [vmem:[#allocation3 + $0x30] sm:$0xff] %vm1096, %v1013
      %1104 = vst.msk [vmem:[#allocation3 + $0x38] sm:$0xff] %vm1096, %v1015
      %1105 = vst.msk [vmem:[#allocation3 + $0x40] sm:$0xff] %vm1096, %v1017
      %1106 = vst.msk [vmem:[#allocation3 + $0x48] sm:$0xff] %vm1096, %v1019
      %1107 = vst.msk [vmem:[#allocation3 + $0x50] sm:$0xff] %vm1096, %v1021
      %1108 = vst.msk [vmem:[#allocation3 + $0x58] sm:$0xff] %vm1096, %v1023
      %1109 = vst.msk [vmem:[#allocation3 + $0x60] sm:$0xff] %vm1096, %v1025
      %1110 = vst.msk [vmem:[#allocation3 + $0x68] sm:$0xff] %vm1096, %v1027
      %1111 = vst.msk [vmem:[#allocation3 + $0x70] sm:$0xff] %vm1096, %v1029
      %1112 = vst.msk [vmem:[#allocation3 + $0x78] sm:$0xff] %vm1096, %v1031
      %1113 = vst.msk [vmem:[#allocation3 + $0x80] sm:$0xff] %vm1096, %v1033
      %1114 = vst.msk [vmem:[#allocation3 + $0x88] sm:$0xff] %vm1096, %v1035
      %1115 = vst.msk [vmem:[#allocation3 + $0x90] sm:$0xff] %vm1096, %v1037
      %1116 = vst.msk [vmem:[#allocation3 + $0x98] sm:$0xff] %vm1096, %v1039
      %1117 = vst.msk [vmem:[#allocation3 + $0xa0] sm:$0xff] %vm1096, %v1041
      %1118 = vst.msk [vmem:[#allocation3 + $0xa8] sm:$0xff] %vm1096, %v1043
      %1119 = vst.msk [vmem:[#allocation3 + $0xb0] sm:$0xff] %vm1096, %v1045
      %1120 = vst.msk [vmem:[#allocation3 + $0xb8] sm:$0xff] %vm1096, %v1047
      %1121 = vst.msk [vmem:[#allocation3 + $0xc0] sm:$0xff] %vm1096, %v1049
      %1122 = vst.msk [vmem:[#allocation3 + $0xc8] sm:$0xff] %vm1096, %v1051
      %1123 = vst.msk [vmem:[#allocation3 + $0xd0] sm:$0xff] %vm1096, %v1053
      %1124 = vst.msk [vmem:[#allocation3 + $0xd8] sm:$0xff] %vm1096, %v1055
      %1125 = vst.msk [vmem:[#allocation3 + $0xe0] sm:$0xff] %vm1096, %v1057
      %1126 = vst.msk [vmem:[#allocation3 + $0xe8] sm:$0xff] %vm1096, %v1059
      %1127 = vst.msk [vmem:[#allocation3 + $0xf0] sm:$0xff] %vm1096, %v1061
      %1128 = vst.msk [vmem:[#allocation3 + $0xf8] sm:$0xff] %vm1096, %v1063
      %v1129 = vld [vmem:[%s260 + $0x2] sm:$0xff]
      %v1130 = vld [vmem:[%s260 + $0xa] sm:$0xff]
      %v1131 = vld [vmem:[%s260 + $0x1a] sm:$0xff]
      %v1132 = vld [vmem:[%s260 + $0x22] sm:$0xff]
      %v1133 = vld [vmem:[%s260 + $0x32] sm:$0xff]
      %v1134 = vld [vmem:[%s260 + $0x3a] sm:$0xff]
      %v1135 = vld [vmem:[%s260 + $0x4a] sm:$0xff]
      %v1136 = vld [vmem:[%s260 + $0x52] sm:$0xff]
      %v1137 = vld [vmem:[%s260 + $0x62] sm:$0xff]
      %v1138 = vld [vmem:[%s260 + $0x6a] sm:$0xff]
      %v1139 = vld [vmem:[%s260 + $0x7a] sm:$0xff]
      %v1140 = vld [vmem:[%s260 + $0x82] sm:$0xff]
      %v1141 = vld [vmem:[%s260 + $0x92] sm:$0xff]
      %v1142 = vld [vmem:[%s260 + $0x9a] sm:$0xff]
      %v1143 = vld [vmem:[%s260 + $0xaa] sm:$0xff]
      %v1144 = vld [vmem:[%s260 + $0xb2] sm:$0xff]
      %v1145 = vld [vmem:[%s260 + $0xc2] sm:$0xff]
      %v1146 = vld [vmem:[%s260 + $0xca] sm:$0xff]
      %v1147 = vld [vmem:[%s260 + $0xda] sm:$0xff]
      %v1148 = vld [vmem:[%s260 + $0xe2] sm:$0xff]
      %v1149 = vld [vmem:[%s260 + $0xf2] sm:$0xff]
      %v1150 = vld [vmem:[%s260 + $0xfa] sm:$0xff]
      %v1151 = vld [vmem:[%s260 + $0x10a] sm:$0xff]
      %v1152 = vld [vmem:[%s260 + $0x112] sm:$0xff]
      %v1153 = vld [vmem:[%s260 + $0x122] sm:$0xff]
      %v1154 = vld [vmem:[%s260 + $0x12a] sm:$0xff]
      %v1155 = vld [vmem:[%s260 + $0x13a] sm:$0xff]
      %v1156 = vld [vmem:[%s260 + $0x142] sm:$0xff]
      %v1157 = vld [vmem:[%s260 + $0x152] sm:$0xff]
      %v1158 = vld [vmem:[%s260 + $0x15a] sm:$0xff]
      %v1159 = vld [vmem:[%s260 + $0x16a] sm:$0xff]
      %v1160 = vld [vmem:[%s260 + $0x172] sm:$0xff]
      %1193 = vrot.lane.b32.xlu0 %v1129, 20
      %v1194 = vpop.permute.xlu0 %1193
      %1195 = vrot.lane.b32.xlu0 %v1130, 20
      %v1196 = vpop.permute.xlu0 %1195
      %1197 = vrot.lane.b32.xlu0 %v1131, 20
      %v1198 = vpop.permute.xlu0 %1197
      %1199 = vrot.lane.b32.xlu0 %v1132, 20
      %v1200 = vpop.permute.xlu0 %1199
      %1201 = vrot.lane.b32.xlu0 %v1133, 20
      %v1202 = vpop.permute.xlu0 %1201
      %1203 = vrot.lane.b32.xlu0 %v1134, 20
      %v1204 = vpop.permute.xlu0 %1203
      %1205 = vrot.lane.b32.xlu0 %v1135, 20
      %v1206 = vpop.permute.xlu0 %1205
      %1207 = vrot.lane.b32.xlu0 %v1136, 20
      %v1208 = vpop.permute.xlu0 %1207
      %1209 = vrot.lane.b32.xlu0 %v1137, 20
      %v1210 = vpop.permute.xlu0 %1209
      %1211 = vrot.lane.b32.xlu0 %v1138, 20
      %v1212 = vpop.permute.xlu0 %1211
      %1213 = vrot.lane.b32.xlu0 %v1139, 20
      %v1214 = vpop.permute.xlu0 %1213
      %1215 = vrot.lane.b32.xlu0 %v1140, 20
      %v1216 = vpop.permute.xlu0 %1215
      %1217 = vrot.lane.b32.xlu0 %v1141, 20
      %v1218 = vpop.permute.xlu0 %1217
      %1219 = vrot.lane.b32.xlu0 %v1142, 20
      %v1220 = vpop.permute.xlu0 %1219
      %1221 = vrot.lane.b32.xlu0 %v1143, 20
      %v1222 = vpop.permute.xlu0 %1221
      %1223 = vrot.lane.b32.xlu0 %v1144, 20
      %v1224 = vpop.permute.xlu0 %1223
      %1225 = vrot.lane.b32.xlu0 %v1145, 20
      %v1226 = vpop.permute.xlu0 %1225
      %1227 = vrot.lane.b32.xlu0 %v1146, 20
      %v1228 = vpop.permute.xlu0 %1227
      %1229 = vrot.lane.b32.xlu0 %v1147, 20
      %v1230 = vpop.permute.xlu0 %1229
      %1231 = vrot.lane.b32.xlu0 %v1148, 20
      %v1232 = vpop.permute.xlu0 %1231
      %1233 = vrot.lane.b32.xlu0 %v1149, 20
      %v1234 = vpop.permute.xlu0 %1233
      %1235 = vrot.lane.b32.xlu0 %v1150, 20
      %v1236 = vpop.permute.xlu0 %1235
      %1237 = vrot.lane.b32.xlu0 %v1151, 20
      %v1238 = vpop.permute.xlu0 %1237
      %1239 = vrot.lane.b32.xlu0 %v1152, 20
      %v1240 = vpop.permute.xlu0 %1239
      %1241 = vrot.lane.b32.xlu0 %v1153, 20
      %v1242 = vpop.permute.xlu0 %1241
      %1243 = vrot.lane.b32.xlu0 %v1154, 20
      %v1244 = vpop.permute.xlu0 %1243
      %1245 = vrot.lane.b32.xlu0 %v1155, 20
      %v1246 = vpop.permute.xlu0 %1245
      %1247 = vrot.lane.b32.xlu0 %v1156, 20
      %v1248 = vpop.permute.xlu0 %1247
      %1249 = vrot.lane.b32.xlu0 %v1157, 20
      %v1250 = vpop.permute.xlu0 %1249
      %1251 = vrot.lane.b32.xlu0 %v1158, 20
      %v1252 = vpop.permute.xlu0 %1251
      %1253 = vrot.lane.b32.xlu0 %v1159, 20
      %v1254 = vpop.permute.xlu0 %1253
      %1255 = vrot.lane.b32.xlu0 %v1160, 20
      %v1256 = vpop.permute.xlu0 %1255
      %vm1289 = vcmask 195744
      %1290 = vst.msk [vmem:[#allocation3] sm:$0xff] %vm1289, %v1194
      %1291 = vst.msk [vmem:[#allocation3 + $0x8] sm:$0xff] %vm1289, %v1196
      %1292 = vst.msk [vmem:[#allocation3 + $0x10] sm:$0xff] %vm1289, %v1198
      %1293 = vst.msk [vmem:[#allocation3 + $0x18] sm:$0xff] %vm1289, %v1200
      %1294 = vst.msk [vmem:[#allocation3 + $0x20] sm:$0xff] %vm1289, %v1202
      %1295 = vst.msk [vmem:[#allocation3 + $0x28] sm:$0xff] %vm1289, %v1204
      %1296 = vst.msk [vmem:[#allocation3 + $0x30] sm:$0xff] %vm1289, %v1206
      %1297 = vst.msk [vmem:[#allocation3 + $0x38] sm:$0xff] %vm1289, %v1208
      %1298 = vst.msk [vmem:[#allocation3 + $0x40] sm:$0xff] %vm1289, %v1210
      %1299 = vst.msk [vmem:[#allocation3 + $0x48] sm:$0xff] %vm1289, %v1212
      %1300 = vst.msk [vmem:[#allocation3 + $0x50] sm:$0xff] %vm1289, %v1214
      %1301 = vst.msk [vmem:[#allocation3 + $0x58] sm:$0xff] %vm1289, %v1216
      %1302 = vst.msk [vmem:[#allocation3 + $0x60] sm:$0xff] %vm1289, %v1218
      %1303 = vst.msk [vmem:[#allocation3 + $0x68] sm:$0xff] %vm1289, %v1220
      %1304 = vst.msk [vmem:[#allocation3 + $0x70] sm:$0xff] %vm1289, %v1222
      %1305 = vst.msk [vmem:[#allocation3 + $0x78] sm:$0xff] %vm1289, %v1224
      %1306 = vst.msk [vmem:[#allocation3 + $0x80] sm:$0xff] %vm1289, %v1226
      %1307 = vst.msk [vmem:[#allocation3 + $0x88] sm:$0xff] %vm1289, %v1228
      %1308 = vst.msk [vmem:[#allocation3 + $0x90] sm:$0xff] %vm1289, %v1230
      %1309 = vst.msk [vmem:[#allocation3 + $0x98] sm:$0xff] %vm1289, %v1232
      %1310 = vst.msk [vmem:[#allocation3 + $0xa0] sm:$0xff] %vm1289, %v1234
      %1311 = vst.msk [vmem:[#allocation3 + $0xa8] sm:$0xff] %vm1289, %v1236
      %1312 = vst.msk [vmem:[#allocation3 + $0xb0] sm:$0xff] %vm1289, %v1238
      %1313 = vst.msk [vmem:[#allocation3 + $0xb8] sm:$0xff] %vm1289, %v1240
      %1314 = vst.msk [vmem:[#allocation3 + $0xc0] sm:$0xff] %vm1289, %v1242
      %1315 = vst.msk [vmem:[#allocation3 + $0xc8] sm:$0xff] %vm1289, %v1244
      %1316 = vst.msk [vmem:[#allocation3 + $0xd0] sm:$0xff] %vm1289, %v1246
      %1317 = vst.msk [vmem:[#allocation3 + $0xd8] sm:$0xff] %vm1289, %v1248
      %1318 = vst.msk [vmem:[#allocation3 + $0xe0] sm:$0xff] %vm1289, %v1250
      %1319 = vst.msk [vmem:[#allocation3 + $0xe8] sm:$0xff] %vm1289, %v1252
      %1320 = vst.msk [vmem:[#allocation3 + $0xf0] sm:$0xff] %vm1289, %v1254
      %1321 = vst.msk [vmem:[#allocation3 + $0xf8] sm:$0xff] %vm1289, %v1256
      %s1322 = scalar_lea.vmem [#allocation2], 48
      %v1323 = vld [vmem:[%s1322] sm:$0xff]
      %v1324 = vld [vmem:[%s1322 + $0x8] sm:$0xff]
      %v1325 = vld [vmem:[%s1322 + $0x18] sm:$0xff]
      %v1326 = vld [vmem:[%s1322 + $0x20] sm:$0xff]
      %v1327 = vld [vmem:[%s1322 + $0x30] sm:$0xff]
      %v1328 = vld [vmem:[%s1322 + $0x38] sm:$0xff]
      %v1329 = vld [vmem:[%s1322 + $0x48] sm:$0xff]
      %v1330 = vld [vmem:[%s1322 + $0x50] sm:$0xff]
      %v1331 = vld [vmem:[%s1322 + $0x60] sm:$0xff]
      %v1332 = vld [vmem:[%s1322 + $0x68] sm:$0xff]
      %v1333 = vld [vmem:[%s1322 + $0x78] sm:$0xff]
      %v1334 = vld [vmem:[%s1322 + $0x80] sm:$0xff]
      %v1335 = vld [vmem:[%s1322 + $0x90] sm:$0xff]
      %v1336 = vld [vmem:[%s1322 + $0x98] sm:$0xff]
      %v1337 = vld [vmem:[%s1322 + $0xa8] sm:$0xff]
      %v1338 = vld [vmem:[%s1322 + $0xb0] sm:$0xff]
      %v1339 = vld [vmem:[%s1322 + $0xc0] sm:$0xff]
      %v1340 = vld [vmem:[%s1322 + $0xc8] sm:$0xff]
      %v1341 = vld [vmem:[%s1322 + $0xd8] sm:$0xff]
      %v1342 = vld [vmem:[%s1322 + $0xe0] sm:$0xff]
      %v1343 = vld [vmem:[%s1322 + $0xf0] sm:$0xff]
      %v1344 = vld [vmem:[%s1322 + $0xf8] sm:$0xff]
      %v1345 = vld [vmem:[%s1322 + $0x108] sm:$0xff]
      %v1346 = vld [vmem:[%s1322 + $0x110] sm:$0xff]
      %v1347 = vld [vmem:[%s1322 + $0x120] sm:$0xff]
      %v1348 = vld [vmem:[%s1322 + $0x128] sm:$0xff]
      %v1349 = vld [vmem:[%s1322 + $0x138] sm:$0xff]
      %v1350 = vld [vmem:[%s1322 + $0x140] sm:$0xff]
      %v1351 = vld [vmem:[%s1322 + $0x150] sm:$0xff]
      %v1352 = vld [vmem:[%s1322 + $0x158] sm:$0xff]
      %v1353 = vld [vmem:[%s1322 + $0x168] sm:$0xff]
      %v1354 = vld [vmem:[%s1322 + $0x170] sm:$0xff]
      %1387 = vrot.lane.b32.xlu0 %v1323, 24
      %v1388 = vpop.permute.xlu0 %1387
      %1389 = vrot.lane.b32.xlu0 %v1324, 24
      %v1390 = vpop.permute.xlu0 %1389
      %1391 = vrot.lane.b32.xlu0 %v1325, 24
      %v1392 = vpop.permute.xlu0 %1391
      %1393 = vrot.lane.b32.xlu0 %v1326, 24
      %v1394 = vpop.permute.xlu0 %1393
      %1395 = vrot.lane.b32.xlu0 %v1327, 24
      %v1396 = vpop.permute.xlu0 %1395
      %1397 = vrot.lane.b32.xlu0 %v1328, 24
      %v1398 = vpop.permute.xlu0 %1397
      %1399 = vrot.lane.b32.xlu0 %v1329, 24
      %v1400 = vpop.permute.xlu0 %1399
      %1401 = vrot.lane.b32.xlu0 %v1330, 24
      %v1402 = vpop.permute.xlu0 %1401
      %1403 = vrot.lane.b32.xlu0 %v1331, 24
      %v1404 = vpop.permute.xlu0 %1403
      %1405 = vrot.lane.b32.xlu0 %v1332, 24
      %v1406 = vpop.permute.xlu0 %1405
      %1407 = vrot.lane.b32.xlu0 %v1333, 24
      %v1408 = vpop.permute.xlu0 %1407
      %1409 = vrot.lane.b32.xlu0 %v1334, 24
      %v1410 = vpop.permute.xlu0 %1409
      %1411 = vrot.lane.b32.xlu0 %v1335, 24
      %v1412 = vpop.permute.xlu0 %1411
      %1413 = vrot.lane.b32.xlu0 %v1336, 24
      %v1414 = vpop.permute.xlu0 %1413
      %1415 = vrot.lane.b32.xlu0 %v1337, 24
      %v1416 = vpop.permute.xlu0 %1415
      %1417 = vrot.lane.b32.xlu0 %v1338, 24
      %v1418 = vpop.permute.xlu0 %1417
      %1419 = vrot.lane.b32.xlu0 %v1339, 24
      %v1420 = vpop.permute.xlu0 %1419
      %1421 = vrot.lane.b32.xlu0 %v1340, 24
      %v1422 = vpop.permute.xlu0 %1421
      %1423 = vrot.lane.b32.xlu0 %v1341, 24
      %v1424 = vpop.permute.xlu0 %1423
      %1425 = vrot.lane.b32.xlu0 %v1342, 24
      %v1426 = vpop.permute.xlu0 %1425
      %1427 = vrot.lane.b32.xlu0 %v1343, 24
      %v1428 = vpop.permute.xlu0 %1427
      %1429 = vrot.lane.b32.xlu0 %v1344, 24
      %v1430 = vpop.permute.xlu0 %1429
      %1431 = vrot.lane.b32.xlu0 %v1345, 24
      %v1432 = vpop.permute.xlu0 %1431
      %1433 = vrot.lane.b32.xlu0 %v1346, 24
      %v1434 = vpop.permute.xlu0 %1433
      %1435 = vrot.lane.b32.xlu0 %v1347, 24
      %v1436 = vpop.permute.xlu0 %1435
      %1437 = vrot.lane.b32.xlu0 %v1348, 24
      %v1438 = vpop.permute.xlu0 %1437
      %1439 = vrot.lane.b32.xlu0 %v1349, 24
      %v1440 = vpop.permute.xlu0 %1439
      %1441 = vrot.lane.b32.xlu0 %v1350, 24
      %v1442 = vpop.permute.xlu0 %1441
      %1443 = vrot.lane.b32.xlu0 %v1351, 24
      %v1444 = vpop.permute.xlu0 %1443
      %1445 = vrot.lane.b32.xlu0 %v1352, 24
      %v1446 = vpop.permute.xlu0 %1445
      %1447 = vrot.lane.b32.xlu0 %v1353, 24
      %v1448 = vpop.permute.xlu0 %1447
      %1449 = vrot.lane.b32.xlu0 %v1354, 24
      %v1450 = vpop.permute.xlu0 %1449
      %vm1483 = vcmask 228544
      %1484 = vst.msk [vmem:[#allocation3] sm:$0xff] %vm1483, %v1388
      %1485 = vst.msk [vmem:[#allocation3 + $0x8] sm:$0xff] %vm1483, %v1390
      %1486 = vst.msk [vmem:[#allocation3 + $0x10] sm:$0xff] %vm1483, %v1392
      %1487 = vst.msk [vmem:[#allocation3 + $0x18] sm:$0xff] %vm1483, %v1394
      %1488 = vst.msk [vmem:[#allocation3 + $0x20] sm:$0xff] %vm1483, %v1396
      %1489 = vst.msk [vmem:[#allocation3 + $0x28] sm:$0xff] %vm1483, %v1398
      %1490 = vst.msk [vmem:[#allocation3 + $0x30] sm:$0xff] %vm1483, %v1400
      %1491 = vst.msk [vmem:[#allocation3 + $0x38] sm:$0xff] %vm1483, %v1402
      %1492 = vst.msk [vmem:[#allocation3 + $0x40] sm:$0xff] %vm1483, %v1404
      %1493 = vst.msk [vmem:[#allocation3 + $0x48] sm:$0xff] %vm1483, %v1406
      %1494 = vst.msk [vmem:[#allocation3 + $0x50] sm:$0xff] %vm1483, %v1408
      %1495 = vst.msk [vmem:[#allocation3 + $0x58] sm:$0xff] %vm1483, %v1410
      %1496 = vst.msk [vmem:[#allocation3 + $0x60] sm:$0xff] %vm1483, %v1412
      %1497 = vst.msk [vmem:[#allocation3 + $0x68] sm:$0xff] %vm1483, %v1414
      %1498 = vst.msk [vmem:[#allocation3 + $0x70] sm:$0xff] %vm1483, %v1416
      %1499 = vst.msk [vmem:[#allocation3 + $0x78] sm:$0xff] %vm1483, %v1418
      %1500 = vst.msk [vmem:[#allocation3 + $0x80] sm:$0xff] %vm1483, %v1420
      %1501 = vst.msk [vmem:[#allocation3 + $0x88] sm:$0xff] %vm1483, %v1422
      %1502 = vst.msk [vmem:[#allocation3 + $0x90] sm:$0xff] %vm1483, %v1424
      %1503 = vst.msk [vmem:[#allocation3 + $0x98] sm:$0xff] %vm1483, %v1426
      %1504 = vst.msk [vmem:[#allocation3 + $0xa0] sm:$0xff] %vm1483, %v1428
      %1505 = vst.msk [vmem:[#allocation3 + $0xa8] sm:$0xff] %vm1483, %v1430
      %1506 = vst.msk [vmem:[#allocation3 + $0xb0] sm:$0xff] %vm1483, %v1432
      %1507 = vst.msk [vmem:[#allocation3 + $0xb8] sm:$0xff] %vm1483, %v1434
      %1508 = vst.msk [vmem:[#allocation3 + $0xc0] sm:$0xff] %vm1483, %v1436
      %1509 = vst.msk [vmem:[#allocation3 + $0xc8] sm:$0xff] %vm1483, %v1438
      %1510 = vst.msk [vmem:[#allocation3 + $0xd0] sm:$0xff] %vm1483, %v1440
      %1511 = vst.msk [vmem:[#allocation3 + $0xd8] sm:$0xff] %vm1483, %v1442
      %1512 = vst.msk [vmem:[#allocation3 + $0xe0] sm:$0xff] %vm1483, %v1444
      %1513 = vst.msk [vmem:[#allocation3 + $0xe8] sm:$0xff] %vm1483, %v1446
      %1514 = vst.msk [vmem:[#allocation3 + $0xf0] sm:$0xff] %vm1483, %v1448
      %1515 = vst.msk [vmem:[#allocation3 + $0xf8] sm:$0xff] %vm1483, %v1450
      %v1516 = vld [vmem:[%s1322 + $0x1] sm:$0xff]
      %v1517 = vld [vmem:[%s1322 + $0x9] sm:$0xff]
      %v1518 = vld [vmem:[%s1322 + $0x19] sm:$0xff]
      %v1519 = vld [vmem:[%s1322 + $0x21] sm:$0xff]
      %v1520 = vld [vmem:[%s1322 + $0x31] sm:$0xff]
      %v1521 = vld [vmem:[%s1322 + $0x39] sm:$0xff]
      %v1522 = vld [vmem:[%s1322 + $0x49] sm:$0xff]
      %v1523 = vld [vmem:[%s1322 + $0x51] sm:$0xff]
      %v1524 = vld [vmem:[%s1322 + $0x61] sm:$0xff]
      %v1525 = vld [vmem:[%s1322 + $0x69] sm:$0xff]
      %v1526 = vld [vmem:[%s1322 + $0x79] sm:$0xff]
      %v1527 = vld [vmem:[%s1322 + $0x81] sm:$0xff]
      %v1528 = vld [vmem:[%s1322 + $0x91] sm:$0xff]
      %v1529 = vld [vmem:[%s1322 + $0x99] sm:$0xff]
      %v1530 = vld [vmem:[%s1322 + $0xa9] sm:$0xff]
      %v1531 = vld [vmem:[%s1322 + $0xb1] sm:$0xff]
      %v1532 = vld [vmem:[%s1322 + $0xc1] sm:$0xff]
      %v1533 = vld [vmem:[%s1322 + $0xc9] sm:$0xff]
      %v1534 = vld [vmem:[%s1322 + $0xd9] sm:$0xff]
      %v1535 = vld [vmem:[%s1322 + $0xe1] sm:$0xff]
      %v1536 = vld [vmem:[%s1322 + $0xf1] sm:$0xff]
      %v1537 = vld [vmem:[%s1322 + $0xf9] sm:$0xff]
      %v1538 = vld [vmem:[%s1322 + $0x109] sm:$0xff]
      %v1539 = vld [vmem:[%s1322 + $0x111] sm:$0xff]
      %v1540 = vld [vmem:[%s1322 + $0x121] sm:$0xff]
      %v1541 = vld [vmem:[%s1322 + $0x129] sm:$0xff]
      %v1542 = vld [vmem:[%s1322 + $0x139] sm:$0xff]
      %v1543 = vld [vmem:[%s1322 + $0x141] sm:$0xff]
      %v1544 = vld [vmem:[%s1322 + $0x151] sm:$0xff]
      %v1545 = vld [vmem:[%s1322 + $0x159] sm:$0xff]
      %v1546 = vld [vmem:[%s1322 + $0x169] sm:$0xff]
      %v1547 = vld [vmem:[%s1322 + $0x171] sm:$0xff]
      %1580 = vrot.lane.b32.xlu0 %v1516, 28
      %v1581 = vpop.permute.xlu0 %1580
      %1582 = vrot.lane.b32.xlu0 %v1517, 28
      %v1583 = vpop.permute.xlu0 %1582
      %1584 = vrot.lane.b32.xlu0 %v1518, 28
      %v1585 = vpop.permute.xlu0 %1584
      %1586 = vrot.lane.b32.xlu0 %v1519, 28
      %v1587 = vpop.permute.xlu0 %1586
      %1588 = vrot.lane.b32.xlu0 %v1520, 28
      %v1589 = vpop.permute.xlu0 %1588
      %1590 = vrot.lane.b32.xlu0 %v1521, 28
      %v1591 = vpop.permute.xlu0 %1590
      %1592 = vrot.lane.b32.xlu0 %v1522, 28
      %v1593 = vpop.permute.xlu0 %1592
      %1594 = vrot.lane.b32.xlu0 %v1523, 28
      %v1595 = vpop.permute.xlu0 %1594
      %1596 = vrot.lane.b32.xlu0 %v1524, 28
      %v1597 = vpop.permute.xlu0 %1596
      %1598 = vrot.lane.b32.xlu0 %v1525, 28
      %v1599 = vpop.permute.xlu0 %1598
      %1600 = vrot.lane.b32.xlu0 %v1526, 28
      %v1601 = vpop.permute.xlu0 %1600
      %1602 = vrot.lane.b32.xlu0 %v1527, 28
      %v1603 = vpop.permute.xlu0 %1602
      %1604 = vrot.lane.b32.xlu0 %v1528, 28
      %v1605 = vpop.permute.xlu0 %1604
      %1606 = vrot.lane.b32.xlu0 %v1529, 28
      %v1607 = vpop.permute.xlu0 %1606
      %1608 = vrot.lane.b32.xlu0 %v1530, 28
      %v1609 = vpop.permute.xlu0 %1608
      %1610 = vrot.lane.b32.xlu0 %v1531, 28
      %v1611 = vpop.permute.xlu0 %1610
      %1612 = vrot.lane.b32.xlu0 %v1532, 28
      %v1613 = vpop.permute.xlu0 %1612
      %1614 = vrot.lane.b32.xlu0 %v1533, 28
      %v1615 = vpop.permute.xlu0 %1614
      %1616 = vrot.lane.b32.xlu0 %v1534, 28
      %v1617 = vpop.permute.xlu0 %1616
      %1618 = vrot.lane.b32.xlu0 %v1535, 28
      %v1619 = vpop.permute.xlu0 %1618
      %1620 = vrot.lane.b32.xlu0 %v1536, 28
      %v1621 = vpop.permute.xlu0 %1620
      %1622 = vrot.lane.b32.xlu0 %v1537, 28
      %v1623 = vpop.permute.xlu0 %1622
      %1624 = vrot.lane.b32.xlu0 %v1538, 28
      %v1625 = vpop.permute.xlu0 %1624
      %1626 = vrot.lane.b32.xlu0 %v1539, 28
      %v1627 = vpop.permute.xlu0 %1626
      %1628 = vrot.lane.b32.xlu0 %v1540, 28
      %v1629 = vpop.permute.xlu0 %1628
      %1630 = vrot.lane.b32.xlu0 %v1541, 28
      %v1631 = vpop.permute.xlu0 %1630
      %1632 = vrot.lane.b32.xlu0 %v1542, 28
      %v1633 = vpop.permute.xlu0 %1632
      %1634 = vrot.lane.b32.xlu0 %v1543, 28
      %v1635 = vpop.permute.xlu0 %1634
      %1636 = vrot.lane.b32.xlu0 %v1544, 28
      %v1637 = vpop.permute.xlu0 %1636
      %1638 = vrot.lane.b32.xlu0 %v1545, 28
      %v1639 = vpop.permute.xlu0 %1638
      %1640 = vrot.lane.b32.xlu0 %v1546, 28
      %v1641 = vpop.permute.xlu0 %1640
      %1642 = vrot.lane.b32.xlu0 %v1547, 28
      %v1643 = vpop.permute.xlu0 %1642
      %vm1676 = vcmask 261344
      %1677 = vst.msk [vmem:[#allocation3] sm:$0xff] %vm1676, %v1581
      %1678 = vst.msk [vmem:[#allocation3 + $0x8] sm:$0xff] %vm1676, %v1583
      %1679 = vst.msk [vmem:[#allocation3 + $0x10] sm:$0xff] %vm1676, %v1585
      %1680 = vst.msk [vmem:[#allocation3 + $0x18] sm:$0xff] %vm1676, %v1587
      %1681 = vst.msk [vmem:[#allocation3 + $0x20] sm:$0xff] %vm1676, %v1589
      %1682 = vst.msk [vmem:[#allocation3 + $0x28] sm:$0xff] %vm1676, %v1591
      %1683 = vst.msk [vmem:[#allocation3 + $0x30] sm:$0xff] %vm1676, %v1593
      %1684 = vst.msk [vmem:[#allocation3 + $0x38] sm:$0xff] %vm1676, %v1595
      %1685 = vst.msk [vmem:[#allocation3 + $0x40] sm:$0xff] %vm1676, %v1597
      %1686 = vst.msk [vmem:[#allocation3 + $0x48] sm:$0xff] %vm1676, %v1599
      %1687 = vst.msk [vmem:[#allocation3 + $0x50] sm:$0xff] %vm1676, %v1601
      %1688 = vst.msk [vmem:[#allocation3 + $0x58] sm:$0xff] %vm1676, %v1603
      %1689 = vst.msk [vmem:[#allocation3 + $0x60] sm:$0xff] %vm1676, %v1605
      %1690 = vst.msk [vmem:[#allocation3 + $0x68] sm:$0xff] %vm1676, %v1607
      %1691 = vst.msk [vmem:[#allocation3 + $0x70] sm:$0xff] %vm1676, %v1609
      %1692 = vst.msk [vmem:[#allocation3 + $0x78] sm:$0xff] %vm1676, %v1611
      %1693 = vst.msk [vmem:[#allocation3 + $0x80] sm:$0xff] %vm1676, %v1613
      %1694 = vst.msk [vmem:[#allocation3 + $0x88] sm:$0xff] %vm1676, %v1615
      %1695 = vst.msk [vmem:[#allocation3 + $0x90] sm:$0xff] %vm1676, %v1617
      %1696 = vst.msk [vmem:[#allocation3 + $0x98] sm:$0xff] %vm1676, %v1619
      %1697 = vst.msk [vmem:[#allocation3 + $0xa0] sm:$0xff] %vm1676, %v1621
      %1698 = vst.msk [vmem:[#allocation3 + $0xa8] sm:$0xff] %vm1676, %v1623
      %1699 = vst.msk [vmem:[#allocation3 + $0xb0] sm:$0xff] %vm1676, %v1625
      %1700 = vst.msk [vmem:[#allocation3 + $0xb8] sm:$0xff] %vm1676, %v1627
      %1701 = vst.msk [vmem:[#allocation3 + $0xc0] sm:$0xff] %vm1676, %v1629
      %1702 = vst.msk [vmem:[#allocation3 + $0xc8] sm:$0xff] %vm1676, %v1631
      %1703 = vst.msk [vmem:[#allocation3 + $0xd0] sm:$0xff] %vm1676, %v1633
      %1704 = vst.msk [vmem:[#allocation3 + $0xd8] sm:$0xff] %vm1676, %v1635
      %1705 = vst.msk [vmem:[#allocation3 + $0xe0] sm:$0xff] %vm1676, %v1637
      %1706 = vst.msk [vmem:[#allocation3 + $0xe8] sm:$0xff] %vm1676, %v1639
      %1707 = vst.msk [vmem:[#allocation3 + $0xf0] sm:$0xff] %vm1676, %v1641
      %1708 = vst.msk [vmem:[#allocation3 + $0xf8] sm:$0xff] %vm1676, %v1643
      %v1709 = vld [vmem:[%s1322 + $0x2] sm:$0xff]
      %v1710 = vld [vmem:[%s1322 + $0xa] sm:$0xff]
      %v1711 = vld [vmem:[%s1322 + $0x1a] sm:$0xff]
      %v1712 = vld [vmem:[%s1322 + $0x22] sm:$0xff]
      %v1713 = vld [vmem:[%s1322 + $0x32] sm:$0xff]
      %v1714 = vld [vmem:[%s1322 + $0x3a] sm:$0xff]
      %v1715 = vld [vmem:[%s1322 + $0x4a] sm:$0xff]
      %v1716 = vld [vmem:[%s1322 + $0x52] sm:$0xff]
      %v1717 = vld [vmem:[%s1322 + $0x62] sm:$0xff]
      %v1718 = vld [vmem:[%s1322 + $0x6a] sm:$0xff]
      %v1719 = vld [vmem:[%s1322 + $0x7a] sm:$0xff]
      %v1720 = vld [vmem:[%s1322 + $0x82] sm:$0xff]
      %v1721 = vld [vmem:[%s1322 + $0x92] sm:$0xff]
      %v1722 = vld [vmem:[%s1322 + $0x9a] sm:$0xff]
      %v1723 = vld [vmem:[%s1322 + $0xaa] sm:$0xff]
      %v1724 = vld [vmem:[%s1322 + $0xb2] sm:$0xff]
      %v1725 = vld [vmem:[%s1322 + $0xc2] sm:$0xff]
      %v1726 = vld [vmem:[%s1322 + $0xca] sm:$0xff]
      %v1727 = vld [vmem:[%s1322 + $0xda] sm:$0xff]
      %v1728 = vld [vmem:[%s1322 + $0xe2] sm:$0xff]
      %v1729 = vld [vmem:[%s1322 + $0xf2] sm:$0xff]
      %v1730 = vld [vmem:[%s1322 + $0xfa] sm:$0xff]
      %v1731 = vld [vmem:[%s1322 + $0x10a] sm:$0xff]
      %v1732 = vld [vmem:[%s1322 + $0x112] sm:$0xff]
      %v1733 = vld [vmem:[%s1322 + $0x122] sm:$0xff]
      %v1734 = vld [vmem:[%s1322 + $0x12a] sm:$0xff]
      %v1735 = vld [vmem:[%s1322 + $0x13a] sm:$0xff]
      %v1736 = vld [vmem:[%s1322 + $0x142] sm:$0xff]
      %v1737 = vld [vmem:[%s1322 + $0x152] sm:$0xff]
      %v1738 = vld [vmem:[%s1322 + $0x15a] sm:$0xff]
      %v1739 = vld [vmem:[%s1322 + $0x16a] sm:$0xff]
      %v1740 = vld [vmem:[%s1322 + $0x172] sm:$0xff]
      %1773 = vrot.lane.b32.xlu0 %v1709, 32
      %v1774 = vpop.permute.xlu0 %1773
      %1775 = vrot.lane.b32.xlu0 %v1710, 32
      %v1776 = vpop.permute.xlu0 %1775
      %1777 = vrot.lane.b32.xlu0 %v1711, 32
      %v1778 = vpop.permute.xlu0 %1777
      %1779 = vrot.lane.b32.xlu0 %v1712, 32
      %v1780 = vpop.permute.xlu0 %1779
      %1781 = vrot.lane.b32.xlu0 %v1713, 32
      %v1782 = vpop.permute.xlu0 %1781
      %1783 = vrot.lane.b32.xlu0 %v1714, 32
      %v1784 = vpop.permute.xlu0 %1783
      %1785 = vrot.lane.b32.xlu0 %v1715, 32
      %v1786 = vpop.permute.xlu0 %1785
      %1787 = vrot.lane.b32.xlu0 %v1716, 32
      %v1788 = vpop.permute.xlu0 %1787
      %1789 = vrot.lane.b32.xlu0 %v1717, 32
      %v1790 = vpop.permute.xlu0 %1789
      %1791 = vrot.lane.b32.xlu0 %v1718, 32
      %v1792 = vpop.permute.xlu0 %1791
      %1793 = vrot.lane.b32.xlu0 %v1719, 32
      %v1794 = vpop.permute.xlu0 %1793
      %1795 = vrot.lane.b32.xlu0 %v1720, 32
      %v1796 = vpop.permute.xlu0 %1795
      %1797 = vrot.lane.b32.xlu0 %v1721, 32
      %v1798 = vpop.permute.xlu0 %1797
      %1799 = vrot.lane.b32.xlu0 %v1722, 32
      %v1800 = vpop.permute.xlu0 %1799
      %1801 = vrot.lane.b32.xlu0 %v1723, 32
      %v1802 = vpop.permute.xlu0 %1801
      %1803 = vrot.lane.b32.xlu0 %v1724, 32
      %v1804 = vpop.permute.xlu0 %1803
      %1805 = vrot.lane.b32.xlu0 %v1725, 32
      %v1806 = vpop.permute.xlu0 %1805
      %1807 = vrot.lane.b32.xlu0 %v1726, 32
      %v1808 = vpop.permute.xlu0 %1807
      %1809 = vrot.lane.b32.xlu0 %v1727, 32
      %v1810 = vpop.permute.xlu0 %1809
      %1811 = vrot.lane.b32.xlu0 %v1728, 32
      %v1812 = vpop.permute.xlu0 %1811
      %1813 = vrot.lane.b32.xlu0 %v1729, 32
      %v1814 = vpop.permute.xlu0 %1813
      %1815 = vrot.lane.b32.xlu0 %v1730, 32
      %v1816 = vpop.permute.xlu0 %1815
      %1817 = vrot.lane.b32.xlu0 %v1731, 32
      %v1818 = vpop.permute.xlu0 %1817
      %1819 = vrot.lane.b32.xlu0 %v1732, 32
      %v1820 = vpop.permute.xlu0 %1819
      %1821 = vrot.lane.b32.xlu0 %v1733, 32
      %v1822 = vpop.permute.xlu0 %1821
      %1823 = vrot.lane.b32.xlu0 %v1734, 32
      %v1824 = vpop.permute.xlu0 %1823
      %1825 = vrot.lane.b32.xlu0 %v1735, 32
      %v1826 = vpop.permute.xlu0 %1825
      %1827 = vrot.lane.b32.xlu0 %v1736, 32
      %v1828 = vpop.permute.xlu0 %1827
      %1829 = vrot.lane.b32.xlu0 %v1737, 32
      %v1830 = vpop.permute.xlu0 %1829
      %1831 = vrot.lane.b32.xlu0 %v1738, 32
      %v1832 = vpop.permute.xlu0 %1831
      %1833 = vrot.lane.b32.xlu0 %v1739, 32
      %v1834 = vpop.permute.xlu0 %1833
      %1835 = vrot.lane.b32.xlu0 %v1740, 32
      %v1836 = vpop.permute.xlu0 %1835
      %vm1869 = vcmask 294144
      %1870 = vst.msk [vmem:[#allocation3] sm:$0xff] %vm1869, %v1774
      %1871 = vst.msk [vmem:[#allocation3 + $0x8] sm:$0xff] %vm1869, %v1776
      %1872 = vst.msk [vmem:[#allocation3 + $0x10] sm:$0xff] %vm1869, %v1778
      %1873 = vst.msk [vmem:[#allocation3 + $0x18] sm:$0xff] %vm1869, %v1780
      %1874 = vst.msk [vmem:[#allocation3 + $0x20] sm:$0xff] %vm1869, %v1782
      %1875 = vst.msk [vmem:[#allocation3 + $0x28] sm:$0xff] %vm1869, %v1784
      %1876 = vst.msk [vmem:[#allocation3 + $0x30] sm:$0xff] %vm1869, %v1786
      %1877 = vst.msk [vmem:[#allocation3 + $0x38] sm:$0xff] %vm1869, %v1788
      %1878 = vst.msk [vmem:[#allocation3 + $0x40] sm:$0xff] %vm1869, %v1790
      %1879 = vst.msk [vmem:[#allocation3 + $0x48] sm:$0xff] %vm1869, %v1792
      %1880 = vst.msk [vmem:[#allocation3 + $0x50] sm:$0xff] %vm1869, %v1794
      %1881 = vst.msk [vmem:[#allocation3 + $0x58] sm:$0xff] %vm1869, %v1796
      %1882 = vst.msk [vmem:[#allocation3 + $0x60] sm:$0xff] %vm1869, %v1798
      %1883 = vst.msk [vmem:[#allocation3 + $0x68] sm:$0xff] %vm1869, %v1800
      %1884 = vst.msk [vmem:[#allocation3 + $0x70] sm:$0xff] %vm1869, %v1802
      %1885 = vst.msk [vmem:[#allocation3 + $0x78] sm:$0xff] %vm1869, %v1804
      %1886 = vst.msk [vmem:[#allocation3 + $0x80] sm:$0xff] %vm1869, %v1806
      %1887 = vst.msk [vmem:[#allocation3 + $0x88] sm:$0xff] %vm1869, %v1808
      %1888 = vst.msk [vmem:[#allocation3 + $0x90] sm:$0xff] %vm1869, %v1810
      %1889 = vst.msk [vmem:[#allocation3 + $0x98] sm:$0xff] %vm1869, %v1812
      %1890 = vst.msk [vmem:[#allocation3 + $0xa0] sm:$0xff] %vm1869, %v1814
      %1891 = vst.msk [vmem:[#allocation3 + $0xa8] sm:$0xff] %vm1869, %v1816
      %1892 = vst.msk [vmem:[#allocation3 + $0xb0] sm:$0xff] %vm1869, %v1818
      %1893 = vst.msk [vmem:[#allocation3 + $0xb8] sm:$0xff] %vm1869, %v1820
      %1894 = vst.msk [vmem:[#allocation3 + $0xc0] sm:$0xff] %vm1869, %v1822
      %1895 = vst.msk [vmem:[#allocation3 + $0xc8] sm:$0xff] %vm1869, %v1824
      %1896 = vst.msk [vmem:[#allocation3 + $0xd0] sm:$0xff] %vm1869, %v1826
      %1897 = vst.msk [vmem:[#allocation3 + $0xd8] sm:$0xff] %vm1869, %v1828
      %1898 = vst.msk [vmem:[#allocation3 + $0xe0] sm:$0xff] %vm1869, %v1830
      %1899 = vst.msk [vmem:[#allocation3 + $0xe8] sm:$0xff] %vm1869, %v1832
      %1900 = vst.msk [vmem:[#allocation3 + $0xf0] sm:$0xff] %vm1869, %v1834
      %1901 = vst.msk [vmem:[#allocation3 + $0xf8] sm:$0xff] %vm1869, %v1836
      %v1902 = vld [vmem:[#allocation3] sm:$0xff]
      %v1903 = vld [vmem:[#allocation3 + $0x8] sm:$0xff]
      %v1904 = vld [vmem:[#allocation3 + $0x10] sm:$0xff]
      %v1905 = vld [vmem:[#allocation3 + $0x18] sm:$0xff]
      %v1906 = vld [vmem:[#allocation3 + $0x20] sm:$0xff]
      %v1907 = vld [vmem:[#allocation3 + $0x28] sm:$0xff]
      %v1908 = vld [vmem:[#allocation3 + $0x30] sm:$0xff]
      %v1909 = vld [vmem:[#allocation3 + $0x38] sm:$0xff]
      %v1910 = vld [vmem:[#allocation3 + $0x40] sm:$0xff]
      %v1911 = vld [vmem:[#allocation3 + $0x48] sm:$0xff]
      %v1912 = vld [vmem:[#allocation3 + $0x50] sm:$0xff]
      %v1913 = vld [vmem:[#allocation3 + $0x58] sm:$0xff]
      %v1914 = vld [vmem:[#allocation3 + $0x60] sm:$0xff]
      %v1915 = vld [vmem:[#allocation3 + $0x68] sm:$0xff]
      %v1916 = vld [vmem:[#allocation3 + $0x70] sm:$0xff]
      %v1917 = vld [vmem:[#allocation3 + $0x78] sm:$0xff]
      %v1918 = vld [vmem:[#allocation3 + $0x80] sm:$0xff]
      %v1919 = vld [vmem:[#allocation3 + $0x88] sm:$0xff]
      %v1920 = vld [vmem:[#allocation3 + $0x90] sm:$0xff]
      %v1921 = vld [vmem:[#allocation3 + $0x98] sm:$0xff]
      %v1922 = vld [vmem:[#allocation3 + $0xa0] sm:$0xff]
      %v1923 = vld [vmem:[#allocation3 + $0xa8] sm:$0xff]
      %v1924 = vld [vmem:[#allocation3 + $0xb0] sm:$0xff]
      %v1925 = vld [vmem:[#allocation3 + $0xb8] sm:$0xff]
      %v1926 = vld [vmem:[#allocation3 + $0xc0] sm:$0xff]
      %v1927 = vld [vmem:[#allocation3 + $0xc8] sm:$0xff]
      %v1928 = vld [vmem:[#allocation3 + $0xd0] sm:$0xff]
      %v1929 = vld [vmem:[#allocation3 + $0xd8] sm:$0xff]
      %v1930 = vld [vmem:[#allocation3 + $0xe0] sm:$0xff]
      %v1931 = vld [vmem:[#allocation3 + $0xe8] sm:$0xff]
      %v1932 = vld [vmem:[#allocation3 + $0xf0] sm:$0xff]
      %v1933 = vld [vmem:[#allocation3 + $0xf8] sm:$0xff]
      %v1934 = vld [vmem:[%s1] sm:$0xff]
      %v1935 = vld [vmem:[%s1 + $0x8] sm:$0xff]
      %v1936 = vld [vmem:[%s1 + $0x10] sm:$0xff]
      %v1937 = vld [vmem:[%s1 + $0x18] sm:$0xff]
      %v1938 = vld [vmem:[%s1 + $0x20] sm:$0xf]
      %vm1939 = vcmask 293888
      %v1941 = vsel %vm1939, %v1902, 0
      %v1944 = vsel %vm1939, %v1903, 0
      %v1947 = vsel %vm1939, %v1904, 0
      %v1950 = vsel %vm1939, %v1905, 0
      %v1953 = vsel %vm1939, %v1906, 0
      %v1956 = vsel %vm1939, %v1907, 0
      %v1959 = vsel %vm1939, %v1908, 0
      %v1962 = vsel %vm1939, %v1909, 0
      %v1965 = vsel %vm1939, %v1910, 0
      %v1968 = vsel %vm1939, %v1911, 0
      %v1971 = vsel %vm1939, %v1912, 0
      %v1974 = vsel %vm1939, %v1913, 0
      %v1977 = vsel %vm1939, %v1914, 0
      %v1980 = vsel %vm1939, %v1915, 0
      %v1983 = vsel %vm1939, %v1916, 0
      %v1986 = vsel %vm1939, %v1917, 0
      %v1989 = vsel %vm1939, %v1918, 0
      %v1992 = vsel %vm1939, %v1919, 0
      %v1995 = vsel %vm1939, %v1920, 0
      %v1998 = vsel %vm1939, %v1921, 0
      %v2001 = vsel %vm1939, %v1922, 0
      %v2004 = vsel %vm1939, %v1923, 0
      %v2007 = vsel %vm1939, %v1924, 0
      %v2010 = vsel %vm1939, %v1925, 0
      %v2013 = vsel %vm1939, %v1926, 0
      %v2016 = vsel %vm1939, %v1927, 0
      %v2019 = vsel %vm1939, %v1928, 0
      %v2022 = vsel %vm1939, %v1929, 0
      %v2025 = vsel %vm1939, %v1930, 0
      %v2028 = vsel %vm1939, %v1931, 0
      %v2031 = vsel %vm1939, %v1932, 0
      %v2034 = vsel %vm1939, %v1933, 0
      %vm2036 = vcmask 1043456
      %v2038 = vsel %vm2036, %v1938, 0
      %2040 = vmatpush.msra.mxu0 0.0
      %2041 = vmatpush.msra.mxu0 0.0
      %2042 = vmatpush.msra.mxu0 0.0
      %2043 = vmatpush.msra.mxu0 0.0
      %2044 = vmatpush.msra.mxu0 0.0
      %2045 = vmatpush.msra.mxu0 0.0
      %2046 = vmatpush.msra.mxu0 0.0
      %2047 = vmatpush.msra.mxu0 0.0
      %2048 = vmatpush.msra.mxu0 0.0
      %2049 = vmatpush.msra.mxu0 0.0
      %2050 = vmatpush.msra.mxu0 0.0
      %2051 = vmatpush.msra.mxu0 %v2038
      %2052 = vmatpush.msra.mxu0 %v1937
      %2053 = vmatpush.msra.mxu0 %v1936
      %2054 = vmatpush.msra.mxu0 %v1935
      %2055 = vmatpush.msra.mxu0 %v1934
      %2056 = vmatmul.f32.gmra.mxu0 %v1941
      %v2057 = vpop.f32.mrf.mxu0
      %v2058 = vadd.f32 0.0, %v2057
      %2059 = vmatmul.f32.gmra.mxu0 %v1944
      %v2060 = vpop.f32.mrf.mxu0
      %v2061 = vadd.f32 0.0, %v2060
      %2062 = vmatmul.f32.gmra.mxu0 %v1947
      %v2063 = vpop.f32.mrf.mxu0
      %v2064 = vadd.f32 0.0, %v2063
      %2065 = vmatmul.f32.gmra.mxu0 %v1950
      %v2066 = vpop.f32.mrf.mxu0
      %v2067 = vadd.f32 0.0, %v2066
      %2068 = vmatmul.f32.gmra.mxu0 %v1953
      %v2069 = vpop.f32.mrf.mxu0
      %v2070 = vadd.f32 0.0, %v2069
      %2071 = vmatmul.f32.gmra.mxu0 %v1956
      %v2072 = vpop.f32.mrf.mxu0
      %v2073 = vadd.f32 0.0, %v2072
      %2074 = vmatmul.f32.gmra.mxu0 %v1959
      %v2075 = vpop.f32.mrf.mxu0
      %v2076 = vadd.f32 0.0, %v2075
      %2077 = vmatmul.f32.gmra.mxu0 %v1962
      %v2078 = vpop.f32.mrf.mxu0
      %v2079 = vadd.f32 0.0, %v2078
      %2080 = vmatmul.f32.gmra.mxu0 %v1965
      %v2081 = vpop.f32.mrf.mxu0
      %v2082 = vadd.f32 0.0, %v2081
      %2083 = vmatmul.f32.gmra.mxu0 %v1968
      %v2084 = vpop.f32.mrf.mxu0
      %v2085 = vadd.f32 0.0, %v2084
      %2086 = vmatmul.f32.gmra.mxu0 %v1971
      %v2087 = vpop.f32.mrf.mxu0
      %v2088 = vadd.f32 0.0, %v2087
      %2089 = vmatmul.f32.gmra.mxu0 %v1974
      %v2090 = vpop.f32.mrf.mxu0
      %v2091 = vadd.f32 0.0, %v2090
      %2092 = vmatmul.f32.gmra.mxu0 %v1977
      %v2093 = vpop.f32.mrf.mxu0
      %v2094 = vadd.f32 0.0, %v2093
      %2095 = vmatmul.f32.gmra.mxu0 %v1980
      %v2096 = vpop.f32.mrf.mxu0
      %v2097 = vadd.f32 0.0, %v2096
      %2098 = vmatmul.f32.gmra.mxu0 %v1983
      %v2099 = vpop.f32.mrf.mxu0
      %v2100 = vadd.f32 0.0, %v2099
      %2101 = vmatmul.f32.gmra.mxu0 %v1986
      %v2102 = vpop.f32.mrf.mxu0
      %v2103 = vadd.f32 0.0, %v2102
      %2104 = vmatmul.f32.gmra.mxu0 %v1989
      %v2105 = vpop.f32.mrf.mxu0
      %v2106 = vadd.f32 0.0, %v2105
      %2107 = vmatmul.f32.gmra.mxu0 %v1992
      %v2108 = vpop.f32.mrf.mxu0
      %v2109 = vadd.f32 0.0, %v2108
      %2110 = vmatmul.f32.gmra.mxu0 %v1995
      %v2111 = vpop.f32.mrf.mxu0
      %v2112 = vadd.f32 0.0, %v2111
      %2113 = vmatmul.f32.gmra.mxu0 %v1998
      %v2114 = vpop.f32.mrf.mxu0
      %v2115 = vadd.f32 0.0, %v2114
      %2116 = vmatmul.f32.gmra.mxu0 %v2001
      %v2117 = vpop.f32.mrf.mxu0
      %v2118 = vadd.f32 0.0, %v2117
      %2119 = vmatmul.f32.gmra.mxu0 %v2004
      %v2120 = vpop.f32.mrf.mxu0
      %v2121 = vadd.f32 0.0, %v2120
      %2122 = vmatmul.f32.gmra.mxu0 %v2007
      %v2123 = vpop.f32.mrf.mxu0
      %v2124 = vadd.f32 0.0, %v2123
      %2125 = vmatmul.f32.gmra.mxu0 %v2010
      %v2126 = vpop.f32.mrf.mxu0
      %v2127 = vadd.f32 0.0, %v2126
      %2128 = vmatmul.f32.gmra.mxu0 %v2013
      %v2129 = vpop.f32.mrf.mxu0
      %v2130 = vadd.f32 0.0, %v2129
      %2131 = vmatmul.f32.gmra.mxu0 %v2016
      %v2132 = vpop.f32.mrf.mxu0
      %v2133 = vadd.f32 0.0, %v2132
      %2134 = vmatmul.f32.gmra.mxu0 %v2019
      %v2135 = vpop.f32.mrf.mxu0
      %v2136 = vadd.f32 0.0, %v2135
      %2137 = vmatmul.f32.gmra.mxu0 %v2022
      %v2138 = vpop.f32.mrf.mxu0
      %v2139 = vadd.f32 0.0, %v2138
      %2140 = vmatmul.f32.gmra.mxu0 %v2025
      %v2141 = vpop.f32.mrf.mxu0
      %v2142 = vadd.f32 0.0, %v2141
      %2143 = vmatmul.f32.gmra.mxu0 %v2028
      %v2144 = vpop.f32.mrf.mxu0
      %v2145 = vadd.f32 0.0, %v2144
      %2146 = vmatmul.f32.gmra.mxu0 %v2031
      %v2147 = vpop.f32.mrf.mxu0
      %v2148 = vadd.f32 0.0, %v2147
      %2149 = vmatmul.f32.gmra.mxu0 %v2034
      %v2150 = vpop.f32.mrf.mxu0
      %v2151 = vadd.f32 0.0, %v2150
      %2152 = vdwg.mxu0
      %2153 = vst [vmem:[%s177] sm:$0xff] %v2058
      %2154 = vst [vmem:[%s177 + $0x8] sm:$0xff] %v2061
      %2155 = vst [vmem:[%s177 + $0x10] sm:$0xff] %v2064
      %2156 = vst [vmem:[%s177 + $0x18] sm:$0xff] %v2067
      %2157 = vst [vmem:[%s177 + $0x20] sm:$0xff] %v2070
      %2158 = vst [vmem:[%s177 + $0x28] sm:$0xff] %v2073
      %2159 = vst [vmem:[%s177 + $0x30] sm:$0xff] %v2076
      %2160 = vst [vmem:[%s177 + $0x38] sm:$0xff] %v2079
      %2161 = vst [vmem:[%s177 + $0x40] sm:$0xff] %v2082
      %2162 = vst [vmem:[%s177 + $0x48] sm:$0xff] %v2085
      %2163 = vst [vmem:[%s177 + $0x50] sm:$0xff] %v2088
      %2164 = vst [vmem:[%s177 + $0x58] sm:$0xff] %v2091
      %2165 = vst [vmem:[%s177 + $0x60] sm:$0xff] %v2094
      %2166 = vst [vmem:[%s177 + $0x68] sm:$0xff] %v2097
      %2167 = vst [vmem:[%s177 + $0x70] sm:$0xff] %v2100
      %2168 = vst [vmem:[%s177 + $0x78] sm:$0xff] %v2103
      %2169 = vst [vmem:[%s177 + $0x80] sm:$0xff] %v2106
      %2170 = vst [vmem:[%s177 + $0x88] sm:$0xff] %v2109
      %2171 = vst [vmem:[%s177 + $0x90] sm:$0xff] %v2112
      %2172 = vst [vmem:[%s177 + $0x98] sm:$0xff] %v2115
      %2173 = vst [vmem:[%s177 + $0xa0] sm:$0xff] %v2118
      %2174 = vst [vmem:[%s177 + $0xa8] sm:$0xff] %v2121
      %2175 = vst [vmem:[%s177 + $0xb0] sm:$0xff] %v2124
      %2176 = vst [vmem:[%s177 + $0xb8] sm:$0xff] %v2127
      %2177 = vst [vmem:[%s177 + $0xc0] sm:$0xff] %v2130
      %2178 = vst [vmem:[%s177 + $0xc8] sm:$0xff] %v2133
      %2179 = vst [vmem:[%s177 + $0xd0] sm:$0xff] %v2136
      %2180 = vst [vmem:[%s177 + $0xd8] sm:$0xff] %v2139
      %2181 = vst [vmem:[%s177 + $0xe0] sm:$0xff] %v2142
      %2182 = vst [vmem:[%s177 + $0xe8] sm:$0xff] %v2145
      %2183 = vst [vmem:[%s177 + $0xf0] sm:$0xff] %v2148
      %2184 = vst [vmem:[%s177 + $0xf8] sm:$0xff] %v2151
      %v2185 = vadd.f32 %v2058, %v2061
      %v2186 = vadd.f32 %v2185, %v2064
      %v2187 = vadd.f32 %v2186, %v2067
      %v2188 = vadd.f32 %v2187, %v2070
      %v2189 = vadd.f32 %v2188, %v2073
      %v2190 = vadd.f32 %v2189, %v2076
      %v2191 = vadd.f32 %v2190, %v2079
      %v2192 = vadd.f32 %v2191, %v2082
      %v2193 = vadd.f32 %v2192, %v2085
      %v2194 = vadd.f32 %v2193, %v2088
      %v2195 = vadd.f32 %v2194, %v2091
      %v2196 = vadd.f32 %v2195, %v2094
      %v2197 = vadd.f32 %v2196, %v2097
      %v2198 = vadd.f32 %v2197, %v2100
      %v2199 = vadd.f32 %v2198, %v2103
      %v2200 = vadd.f32 %v2199, %v2106
      %v2201 = vadd.f32 %v2200, %v2109
      %v2202 = vadd.f32 %v2201, %v2112
      %v2203 = vadd.f32 %v2202, %v2115
      %v2204 = vadd.f32 %v2203, %v2118
      %v2205 = vadd.f32 %v2204, %v2121
      %v2206 = vadd.f32 %v2205, %v2124
      %v2207 = vadd.f32 %v2206, %v2127
      %v2208 = vadd.f32 %v2207, %v2130
      %v2209 = vadd.f32 %v2208, %v2133
      %v2210 = vadd.f32 %v2209, %v2136
      %v2211 = vadd.f32 %v2210, %v2139
      %v2212 = vadd.f32 %v2211, %v2142
      %v2213 = vadd.f32 %v2212, %v2145
      %v2214 = vadd.f32 %v2213, %v2148
      %v2215 = vadd.f32 %v2214, %v2151
      %v2216 = vrot.slane %v2215, 4
      %v2217 = vadd.f32 %v2215, %v2216
      %v2218 = vrot.slane %v2217, 2
      %v2219 = vadd.f32 %v2217, %v2218
      %v2220 = vrot.slane %v2219, 1
      %v2221 = vadd.f32 %v2219, %v2220
      %v2222 = vlaneseq
      %vm2223 = vcmp.ge.s32.totalorder %v2222, 0
      %vm2224 = vcmp.lt.s32.totalorder %v2222, 128
      %vm2225 = vmand %vm2223, %vm2224
      %2226 = vst.msk [vmem:[%s181] sm:$0x1] %vm2225, %v2221
      %v2227 = vmul.f32 %v2058, %v2058
      %v2228 = vmul.f32 %v2061, %v2061
      %v2229 = vmul.f32 %v2064, %v2064
      %v2230 = vmul.f32 %v2067, %v2067
      %v2231 = vmul.f32 %v2070, %v2070
      %v2232 = vmul.f32 %v2073, %v2073
      %v2233 = vmul.f32 %v2076, %v2076
      %v2234 = vmul.f32 %v2079, %v2079
      %v2235 = vmul.f32 %v2082, %v2082
      %v2236 = vmul.f32 %v2085, %v2085
      %v2237 = vmul.f32 %v2088, %v2088
      %v2238 = vmul.f32 %v2091, %v2091
      %v2239 = vmul.f32 %v2094, %v2094
      %v2240 = vmul.f32 %v2097, %v2097
      %v2241 = vmul.f32 %v2100, %v2100
      %v2242 = vmul.f32 %v2103, %v2103
      %v2243 = vmul.f32 %v2106, %v2106
      %v2244 = vmul.f32 %v2109, %v2109
      %v2245 = vmul.f32 %v2112, %v2112
      %v2246 = vmul.f32 %v2115, %v2115
      %v2247 = vmul.f32 %v2118, %v2118
      %v2248 = vmul.f32 %v2121, %v2121
      %v2249 = vmul.f32 %v2124, %v2124
      %v2250 = vmul.f32 %v2127, %v2127
      %v2251 = vmul.f32 %v2130, %v2130
      %v2252 = vmul.f32 %v2133, %v2133
      %v2253 = vmul.f32 %v2136, %v2136
      %v2254 = vmul.f32 %v2139, %v2139
      %v2255 = vmul.f32 %v2142, %v2142
      %v2256 = vmul.f32 %v2145, %v2145
      %v2257 = vmul.f32 %v2148, %v2148
      %v2258 = vmul.f32 %v2151, %v2151
      %v2259 = vadd.f32 %v2227, %v2228
      %v2260 = vadd.f32 %v2259, %v2229
      %v2261 = vadd.f32 %v2260, %v2230
      %v2262 = vadd.f32 %v2261, %v2231
      %v2263 = vadd.f32 %v2262, %v2232
      %v2264 = vadd.f32 %v2263, %v2233
      %v2265 = vadd.f32 %v2264, %v2234
      %v2266 = vadd.f32 %v2265, %v2235
      %v2267 = vadd.f32 %v2266, %v2236
      %v2268 = vadd.f32 %v2267, %v2237
      %v2269 = vadd.f32 %v2268, %v2238
      %v2270 = vadd.f32 %v2269, %v2239
      %v2271 = vadd.f32 %v2270, %v2240
      %v2272 = vadd.f32 %v2271, %v2241
      %v2273 = vadd.f32 %v2272, %v2242
      %v2274 = vadd.f32 %v2273, %v2243
      %v2275 = vadd.f32 %v2274, %v2244
      %v2276 = vadd.f32 %v2275, %v2245
      %v2277 = vadd.f32 %v2276, %v2246
      %v2278 = vadd.f32 %v2277, %v2247
      %v2279 = vadd.f32 %v2278, %v2248
      %v2280 = vadd.f32 %v2279, %v2249
      %v2281 = vadd.f32 %v2280, %v2250
      %v2282 = vadd.f32 %v2281, %v2251
      %v2283 = vadd.f32 %v2282, %v2252
      %v2284 = vadd.f32 %v2283, %v2253
      %v2285 = vadd.f32 %v2284, %v2254
      %v2286 = vadd.f32 %v2285, %v2255
      %v2287 = vadd.f32 %v2286, %v2256
      %v2288 = vadd.f32 %v2287, %v2257
      %v2289 = vadd.f32 %v2288, %v2258
      %v2290 = vrot.slane %v2289, 4
      %v2291 = vadd.f32 %v2289, %v2290
      %v2292 = vrot.slane %v2291, 2
      %v2293 = vadd.f32 %v2291, %v2292
      %v2294 = vrot.slane %v2293, 1
      %v2295 = vadd.f32 %v2293, %v2294
      %2296 = vst.msk [vmem:[%s181 + $0x1] sm:$0x1] %vm2225, %v2295
      %p2297 = scmp.lt.s32.totalorder %s15, 1
      %s2298 = scalar_select %p2297, %s15, 1
      %s2299 = smul.addr %s2298, 32
      %s2300 = smul.addr %s2299, 8
      %s2301 = scalar_lea.vmem %s2, %s2300
      %p2302 = scmp.lt.s32.totalorder %s15, 1
      %s2303 = scalar_select %p2302, %s15, 1
      %s2304 = smul.addr %s2303, 2
      %s2305 = scalar_lea.vmem %s3, %s2304
      // Predicated region
      $region29: #{conv_block_forward.3} parent=27 // pred_check
        %p2306 = pneg %p80
      $region30: #{conv_block_forward.3} parent=27 // pred_check_branch
        %2308 = sbr.rel (%p2306) target = $region32
      $region31: #{conv_block_forward.3} parent=27 // pred_region
        _
      $region32: #{conv_block_forward.3} parent=27 // pred_fallthru
        _
      // Predicated region
      $region33: #{conv_block_forward.3} parent=27 // pred_check
        %p2309 = pneg %p106
      $region34: #{conv_block_forward.3} parent=27 // pred_check_branch
        %2311 = sbr.rel (%p2309) target = $region36
      $region35: #{conv_block_forward.3} parent=27 // pred_region
        _
      $region36: #{conv_block_forward.3} parent=27 // pred_fallthru
        _
    $region28: #{conv_block_forward.3} parent=5 // pred_fallthru
      _
    %p2312 = scmp.le.s32.totalorder 2, %s10
    // Predicated region
    $region37: #{conv_block_forward.3} parent=5 // pred_check
      %p2313 = pneg %p2312
    $region38: #{conv_block_forward.3} parent=5 // pred_check_branch
      %2315 = sbr.rel (%p2313) target = $region40
    $region39: #{conv_block_forward.3} parent=5 // pred_region
      %s2316 = ssub.s32 %s10, 2
      // Predicated region
      $region41: #{conv_block_forward.3} parent=39 // pred_check
        %p2317 = pneg %p86
      $region42: #{conv_block_forward.3} parent=39 // pred_check_branch
        %2319 = sbr.rel (%p2317) target = $region44
      $region43: #{conv_block_forward.3} parent=39 // pred_region
        %p2320 = scmp.lt.s32.totalorder %s16, 1
        %s2321 = scalar_select %p2320, %s16, 1
        %s2322 = smul.addr %s2321, 32
        %s2323 = smul.addr %s2322, 8
        %s2324 = scalar_lea.vmem %s2, %s2323
      $region44: #{conv_block_forward.3} parent=39 // pred_fallthru
        _
      // Predicated region
      $region45: #{conv_block_forward.3} parent=39 // pred_check
        %p2325 = pneg %p112
      $region46: #{conv_block_forward.3} parent=39 // pred_check_branch
        %2327 = sbr.rel (%p2325) target = $region48
      $region47: #{conv_block_forward.3} parent=39 // pred_region
        %p2328 = scmp.lt.s32.totalorder %s16, 1
        %s2329 = scalar_select %p2328, %s16, 1
        %s2330 = smul.addr %s2329, 2
        %s2331 = scalar_lea.vmem %s3, %s2330
      $region48: #{conv_block_forward.3} parent=39 // pred_fallthru
        _
    $region40: #{conv_block_forward.3} parent=5 // pred_fallthru
      _
  $region6: #{conv_block_forward.3} parent=0 // loop_footer
    %s14 = sadd.s32 1, %s10
  $region7: #{conv_block_forward.3} parent=0 // loop_footer_branch
    %9 = sbr.rel target = $region3
  $region8: #{conv_block_forward.3} parent=0 // loop_exit
    _

// kernel: conv_block_forward.4
$region0: #{conv_block_forward.4}
  #allocation0 [shape = 'u32[]', space=smem, size = 0x4, offset = 0x4, fixed_abs, tag = 'smem constant byte address 0x4 - core index']
  #allocation1 [shape = 'u32[72,128]{1,0:T(1,128)}', space=vmem, size = 0x9000, scoped, tag = 'internal scratch']
  #allocation2 [shape = 'f32[18,18,128]{2,1,0:T(8,128)}', space=vmem, size = 0x36000, scoped, tag = 'scratch operand']
  #allocation3 [shape = 'f32[256,1152]{1,0:T(8,128)}', space=vmem, size = 0x120000, scoped, tag = 'scratch operand']
  %s0 = inlined_call_operand.vmem [shape: f32[2,16,16,128], index: 0, kind: input, shape index: {}]
  %s1 = inlined_call_operand.vmem [shape: f32[1,128], index: 1, kind: input, shape index: {}]
  %s2 = inlined_call_operand.vmem [shape: f32[1,128], index: 2, kind: input, shape index: {}]
  %s3 = inlined_call_operand.hbm [shape: f32[1152,128], index: 3, kind: input, shape index: {}]
  %s4 = inlined_call_operand.vmem [shape: f32[2,16,16,128], index: 4, kind: output, shape index: {0}]
  %s5 = inlined_call_operand.vmem [shape: f32[2,1,256], index: 5, kind: output, shape index: {1}]
  %6 = xla_tuple %s4, %s5
  %s7 = sld [smem:[#allocation0]]
  $region61: #{conv_block_forward.4} parent=0
    _
  %s9 = ssub.s32 1, %s7
  %s10 = scalar_select 0, %s9, %s7
  $region1: #{conv_block_forward.4} parent=0
    #allocation4 [shape = 'u8[589824]{0}', space=vmem, size = 0x90000, scoped, tag = 'input window, operand 3, single buffered']
    #allocation5 [shape = 's32[2]{0}', space=sflag, size = 0x8, scoped, tag = 'scoped memory for conv_block_forward.4']
    %11 = vsyncpa [#allocation5], 0
    loop: start=0, step=1, limit=4
    $region2: #{conv_block_forward.4} parent=1 // loop_pre_header
      _
    $region3: #{conv_block_forward.4} parent=1 // loop_header
      %s13 = sphi 0, %s17
      %p14 = scmp.ge.s32.totalorder %s13, 4
      %s23 = sphi 0, %s25
      %s26 = sphi 0, %s23
      %s27 = sphi 0, %s26
      %s43 = sphi 0, %s27
      %s47 = sphi 0, %s47
      %s49 = sphi 0, %s47
      %s50 = sphi 0, %s49
      %s64 = sphi 0, %s50
      %s68 = sphi 0, %s68
      %s70 = sphi 0, %s68
      %s71 = sphi 0, %s70
      %s85 = sphi 0, %s71
      %s89 = sphi 0, %s89
      %s91 = sphi 0, %s89
      %s92 = sphi 0, %s91
      %s106 = sphi 0, %s92
      %s112 = sphi 0, %s114
      %s115 = sphi 0, %s112
      %s116 = sphi 0, %s115
      %s132 = sphi 0, %s116
      %s138 = sphi 0, %s140
      %s141 = sphi 0, %s138
      %s142 = sphi 0, %s141
      %s158 = sphi 0, %s142
    $region4: #{conv_block_forward.4} parent=1 // loop_header_branch
      %16 = sbr.rel (%p14) target = $region8
    $region5: #{conv_block_forward.4} parent=1 // loop_body
      %s18 = ssub.s32 %s13, 1
      %s19 = ssub.s32 %s13, 2
      %s20 = sadd.s32 %s13, 1
      %s21 = ssub.s32 %s13, %s20
      %p22 = scmp.eq.s32.totalorder %s21, 0
      %s24 = sadd.s32 %s23, 1
      %s25 = scalar_select %p22, %s23, %s24
      %p28 = pneg %p22
      %p29 = scmp.eq.s32.totalorder %s13, 1
      %p30 = por %p28, %p29
      %p31 = scmp.ne.s32.totalorder %s23, %s26
      %p32 = scmp.eq.s32.totalorder %s13, 0
      %p33 = por %p31, %p32
      %p34 = scmp.ne.s32.totalorder %s23, %s26
      %p35 = scmp.eq.s32.totalorder %s18, 1
      %p36 = por %p34, %p35
      %p37 = scmp.ne.s32.totalorder %s26, %s27
      %p38 = scmp.eq.s32.totalorder %s18, 0
      %p39 = por %p37, %p38
      %p40 = scmp.ne.s32.totalorder %s26, %s27
      %p41 = scmp.eq.s32.totalorder %s19, 1
      %p42 = por %p40, %p41
      %p44 = scmp.ne.s32.totalorder %s27, %s43
      %p45 = scmp.eq.s32.totalorder %s19, 0
      %p46 = por %p44, %p45
      %s48 = sadd.s32 %s47, 1
      %p51 = scmp.eq.s32.totalorder %s13, 1
      %p52 = scmp.ne.s32.totalorder %s47, %s49
      %p53 = scmp.eq.s32.totalorder %s13, 0
      %p54 = por %p52, %p53
      %p55 = scmp.ne.s32.totalorder %s47, %s49
      %p56 = scmp.eq.s32.totalorder %s18, 1
      %p57 = por %p55, %p56
      %p58 = scmp.ne.s32.totalorder %s49, %s50
      %p59 = scmp.eq.s32.totalorder %s18, 0
      %p60 = por %p58, %p59
      %p61 = scmp.ne.s32.totalorder %s49, %s50
      %p62 = scmp.eq.s32.totalorder %s19, 1
      %p63 = por %p61, %p62
      %p65 = scmp.ne.s32.totalorder %s50, %s64
      %p66 = scmp.eq.s32.totalorder %s19, 0
      %p67 = por %p65, %p66
      %s69 = sadd.s32 %s68, 1
      %p72 = scmp.eq.s32.totalorder %s13, 1
      %p73 = scmp.ne.s32.totalorder %s68, %s70
      %p74 = scmp.eq.s32.totalorder %s13, 0
      %p75 = por %p73, %p74
      %p76 = scmp.ne.s32.totalorder %s68, %s70
      %p77 = scmp.eq.s32.totalorder %s18, 1
      %p78 = por %p76, %p77
      %p79 = scmp.ne.s32.totalorder %s70, %s71
      %p80 = scmp.eq.s32.totalorder %s18, 0
      %p81 = por %p79, %p80
      %p82 = scmp.ne.s32.totalorder %s70, %s71
      %p83 = scmp.eq.s32.totalorder %s19, 1
      %p84 = por %p82, %p83
      %p86 = scmp.ne.s32.totalorder %s71, %s85
      %p87 = scmp.eq.s32.totalorder %s19, 0
      %p88 = por %p86, %p87
      %s90 = sadd.s32 %s89, 1
      %p93 = scmp.eq.s32.totalorder %s13, 1
      %p94 = scmp.ne.s32.totalorder %s89, %s91
      %p95 = scmp.eq.s32.totalorder %s13, 0
      %p96 = por %p94, %p95
      %p97 = scmp.ne.s32.totalorder %s89, %s91
      %p98 = scmp.eq.s32.totalorder %s18, 1
      %p99 = por %p97, %p98
      %p100 = scmp.ne.s32.totalorder %s91, %s92
      %p101 = scmp.eq.s32.totalorder %s18, 0
      %p102 = por %p100, %p101
      %p103 = scmp.ne.s32.totalorder %s91, %s92
      %p104 = scmp.eq.s32.totalorder %s19, 1
      %p105 = por %p103, %p104
      %p107 = scmp.ne.s32.totalorder %s92, %s106
      %p108 = scmp.eq.s32.totalorder %s19, 0
      %p109 = por %p107, %p108
      %s110 = ssub.s32 %s13, %s20
      %p111 = scmp.eq.s32.totalorder %s110, 0
      %s113 = sadd.s32 %s112, 1
      %s114 = scalar_select %p111, %s112, %s113
      %p117 = pneg %p111
      %p118 = scmp.eq.s32.totalorder %s13, 1
      %p119 = por %p117, %p118
      %p120 = scmp.ne.s32.totalorder %s112, %s115
      %p121 = scmp.eq.s32.totalorder %s13, 0
      %p122 = por %p120, %p121
      %p123 = scmp.ne.s32.totalorder %s112, %s115
      %p124 = scmp.eq.s32.totalorder %s18, 1
      %p125 = por %p123, %p124
      %p126 = scmp.ne.s32.totalorder %s115, %s116
      %p127 = scmp.eq.s32.totalorder %s18, 0
      %p128 = por %p126, %p127
      %p129 = scmp.ne.s32.totalorder %s115, %s116
      %p130 = scmp.eq.s32.totalorder %s19, 1
      %p131 = por %p129, %p130
      %p133 = scmp.ne.s32.totalorder %s116, %s132
      %p134 = scmp.eq.s32.totalorder %s19, 0
      %p135 = por %p133, %p134
      %s136 = ssub.s32 %s13, %s20
      %p137 = scmp.eq.s32.totalorder %s136, 0
      %s139 = sadd.s32 %s138, 1
      %s140 = scalar_select %p137, %s138, %s139
      %p143 = pneg %p137
      %p144 = scmp.eq.s32.totalorder %s13, 1
      %p145 = por %p143, %p144
      %p146 = scmp.ne.s32.totalorder %s138, %s141
      %p147 = scmp.eq.s32.totalorder %s13, 0
      %p148 = por %p146, %p147
      %p149 = scmp.ne.s32.totalorder %s138, %s141
      %p150 = scmp.eq.s32.totalorder %s18, 1
      %p151 = por %p149, %p150
      %p152 = scmp.ne.s32.totalorder %s141, %s142
      %p153 = scmp.eq.s32.totalorder %s18, 0
      %p154 = por %p152, %p153
      %p155 = scmp.ne.s32.totalorder %s141, %s142
      %p156 = scmp.eq.s32.totalorder %s19, 1
      %p157 = por %p155, %p156
      %p159 = scmp.ne.s32.totalorder %s142, %s158
      %p160 = scmp.eq.s32.totalorder %s19, 0
      %p161 = por %p159, %p160
      %p162 = scmp.le.s32.totalorder 1, %s13
      %p163 = scmp.lt.s32.totalorder %s13, 3
      %p164 = pnand %p162, %p163
      %p165 = pneg %p164
      // Predicated region
      $region9: #{conv_block_forward.4} parent=5 // pred_check
        _
      $region10: #{conv_block_forward.4} parent=5 // pred_check_branch
        %167 = sbr.rel (%p164) target = $region12
      $region11: #{conv_block_forward.4} parent=5 // pred_region
        %s168 = ssub.s32 %s13, 1
        // Predicated region
        $region13: #{conv_block_forward.4} parent=11 // pred_check
          %p169 = pneg %p60
        $region14: #{conv_block_forward.4} parent=11 // pred_check_branch
          %171 = sbr.rel (%p169) target = $region16
        $region15: #{conv_block_forward.4} parent=11 // pred_region
          _
        $region16: #{conv_block_forward.4} parent=11 // pred_fallthru
          _
        // Predicated region
        $region17: #{conv_block_forward.4} parent=11 // pred_check
          %p172 = pneg %p81
        $region18: #{conv_block_forward.4} parent=11 // pred_check_branch
          %174 = sbr.rel (%p172) target = $region20
        $region19: #{conv_block_forward.4} parent=11 // pred_region
          _
        $region20: #{conv_block_forward.4} parent=11 // pred_fallthru
          _
        // Predicated region
        $region21: #{conv_block_forward.4} parent=11 // pred_check
          %p175 = pneg %p102
        $region22: #{conv_block_forward.4} parent=11 // pred_check_branch
          %177 = sbr.rel (%p175) target = $region24
        $region23: #{conv_block_forward.4} parent=11 // pred_region
          %179 = vsyncadd [#allocation5], 0
          %s180 = sshll.u32 %s3, 4
          %s181 = int_to_ptr.hbm [resolvable:$true] %s180
          %s182 = sshll.u32 [#allocation4], 4
          %s183 = int_to_ptr.vmem [resolvable:$true] %s182
          %188 = dma.hbm_to_vmem [thread:$0]  %s181, 18432, %s183, [#allocation5], 128, 128, 8
        $region24: #{conv_block_forward.4} parent=11 // pred_fallthru
          _
      $region12: #{conv_block_forward.4} parent=5 // pred_fallthru
        _
      %p189 = scmp.lt.s32.totalorder %s13, 2
      // Predicated region
      $region25: #{conv_block_forward.4} parent=5 // pred_check
        %p190 = pneg %p189
      $region26: #{conv_block_forward.4} parent=5 // pred_check_branch
        %192 = sbr.rel (%p190) target = $region28
      $region27: #{conv_block_forward.4} parent=5 // pred_region
        // Predicated region
        $region29: #{conv_block_forward.4} parent=27 // pred_check
          %p193 = pneg %p33
        $region30: #{conv_block_forward.4} parent=27 // pred_check_branch
          %195 = sbr.rel (%p193) target = $region32
        $region31: #{conv_block_forward.4} parent=27 // pred_region
          %p196 = scmp.lt.s32.totalorder %s13, 1
          %s197 = scalar_select %p196, %s13, 1
          %s198 = smul.addr %s197, 32
          %s199 = smul.addr %s198, 8
          %s200 = scalar_lea.vmem %s0, %s199
        $region32: #{conv_block_forward.4} parent=27 // pred_fallthru
          _
      $region28: #{conv_block_forward.4} parent=5 // pred_fallthru
        _
      %p201 = scmp.le.s32.totalorder 1, %s13
      %p202 = scmp.lt.s32.totalorder %s13, 3
      %p203 = pnand %p201, %p202
      %p204 = pneg %p203
      // Predicated region
      $region33: #{conv_block_forward.4} parent=5 // pred_check
        _
      $region34: #{conv_block_forward.4} parent=5 // pred_check_branch
        %206 = sbr.rel (%p203) target = $region36
      $region35: #{conv_block_forward.4} parent=5 // pred_region
        %s207 = ssub.s32 %s13, 1
        // Predicated region
        $region37: #{conv_block_forward.4} parent=35 // pred_check
          %p208 = pneg %p102
        $region38: #{conv_block_forward.4} parent=35 // pred_check_branch
          %210 = sbr.rel (%p208) target = $region40
        $region39: #{conv_block_forward.4} parent=35 // pred_region
          %212 = dma.done [#allocation5], 18432
        $region40: #{conv_block_forward.4} parent=35 // pred_fallthru
          _
        %p213 = scmp.lt.s32.totalorder %s18, 1
        %s214 = scalar_select %p213, %s18, 1
        %s215 = smul.addr %s214, 32
        %s216 = smul.addr %s215, 8
        %s217 = scalar_lea.vmem %s0, %s216
        %p218 = pneg %p39
        %p219 = pneg %p36
        %p220 = pneg %p60
        %p221 = pneg %p57
        %p222 = pneg %p81
        %p223 = pneg %p78
        %p224 = pneg %p102
        %p225 = pneg %p99
        %p226 = pneg %p128
        %p227 = pneg %p125
        %p228 = scmp.lt.s32.totalorder %s18, 1
        %s229 = scalar_select %p228, %s18, 1
        %s230 = smul.addr %s229, 32
        %s231 = smul.addr %s230, 8
        %s232 = scalar_lea.vmem %s4, %s231
        %p233 = pneg %p154
        %p234 = pneg %p151
        %p235 = scmp.lt.s32.totalorder %s18, 1
        %s236 = scalar_select %p235, %s18, 1
        %s237 = smul.addr %s236, 2
        %s238 = scalar_lea.vmem %s5, %s237
        %p239 = scmp.lt.s32.totalorder %s18, 1
        %s240 = scalar_select %p239, %s18, 1
        %s241 = smul.addr %s240, 32
        %s242 = smul.addr %s241, 8
        %s243 = scalar_lea.vmem %s0, %s242
        %p244 = scmp.lt.s32.totalorder %s18, 1
        %s245 = scalar_select %p244, %s18, 1
        %s246 = smul.addr %s245, 32
        %s247 = smul.addr %s246, 8
        %s248 = scalar_lea.vmem %s4, %s247
        %p249 = scmp.lt.s32.totalorder %s18, 1
        %s250 = scalar_select %p249, %s18, 1
        %s251 = smul.addr %s250, 2
        %s252 = scalar_lea.vmem %s5, %s251
        %253 = vst [vmem:[#allocation2] sm:$0xff] 0.0
        %254 = vst [vmem:[#allocation2 + $0x8] sm:$0xff] 0.0
        %255 = vst [vmem:[#allocation2 + $0x10] sm:$0x3] 0.0
        %s256 = scalar_lea.vmem [#allocation2], 408
        %257 = vst [vmem:[%s256] sm:$0xff] 0.0
        %258 = vst [vmem:[%s256 + $0x8] sm:$0xff] 0.0
        %259 = vst [vmem:[%s256 + $0x10] sm:$0x3] 0.0
        %260 = vst [vmem:[#allocation2] sm:$0x1] 0.0
        %261 = vst [vmem:[#allocation2 + $0x18] sm:$0x1] 0.0
        %262 = vst [vmem:[#allocation2 + $0x30] sm:$0x1] 0.0
        %263 = vst [vmem:[#allocation2 + $0x48] sm:$0x1] 0.0
        %264 = vst [vmem:[#allocation2 + $0x60] sm:$0x1] 0.0
        %265 = vst [vmem:[#allocation2 + $0x78] sm:$0x1] 0.0
        %266 = vst [vmem:[#allocation2 + $0x90] sm:$0x1] 0.0
        %267 = vst [vmem:[#allocation2 + $0xa8] sm:$0x1] 0.0
        %268 = vst [vmem:[#allocation2 + $0xc0] sm:$0x1] 0.0
        %269 = vst [vmem:[#allocation2 + $0xd8] sm:$0x1] 0.0
        %270 = vst [vmem:[#allocation2 + $0xf0] sm:$0x1] 0.0
        %271 = vst [vmem:[#allocation2 + $0x108] sm:$0x1] 0.0
        %272 = vst [vmem:[#allocation2 + $0x120] sm:$0x1] 0.0
        %273 = vst [vmem:[#allocation2 + $0x138] sm:$0x1] 0.0
        %274 = vst [vmem:[#allocation2 + $0x150] sm:$0x1] 0.0
        %275 = vst [vmem:[#allocation2 + $0x168] sm:$0x1] 0.0
        %276 = vst [vmem:[#allocation2 + $0x180] sm:$0x1] 0.0
        %277 = vst [vmem:[#allocation2 + $0x198] sm:$0x1] 0.0
        %278 = vst [vmem:[#allocation2 + $0x11] sm:$0x1] 0.0
        %279 = vst [vmem:[#allocation2 + $0x29] sm:$0x1] 0.0
        %280 = vst [vmem:[#allocation2 + $0x41] sm:$0x1] 0.0
        %281 = vst [vmem:[#allocation2 + $0x59] sm:$0x1] 0.0
        %282 = vst [vmem:[#allocation2 + $0x71] sm:$0x1] 0.0
        %283 = vst [vmem:[#allocation2 + $0x89] sm:$0x1] 0.0
        %284 = vst [vmem:[#allocation2 + $0xa1] sm:$0x1] 0.0
        %285 = vst [vmem:[#allocation2 + $0xb9] sm:$0x1] 0.0
        %286 = vst [vmem:[#allocation2 + $0xd1] sm:$0x1] 0.0
        %287 = vst [vmem:[#allocation2 + $0xe9] sm:$0x1] 0.0
        %288 = vst [vmem:[#allocation2 + $0x101] sm:$0x1] 0.0
        %289 = vst [vmem:[#allocation2 + $0x119] sm:$0x1] 0.0
        %290 = vst [vmem:[#allocation2 + $0x131] sm:$0x1] 0.0
        %291 = vst [vmem:[#allocation2 + $0x149] sm:$0x1] 0.0
        %292 = vst [vmem:[#allocation2 + $0x161] sm:$0x1] 0.0
        %293 = vst [vmem:[#allocation2 + $0x179] sm:$0x1] 0.0
        %294 = vst [vmem:[#allocation2 + $0x191] sm:$0x1] 0.0
        %295 = vst [vmem:[#allocation2 + $0x1a9] sm:$0x1] 0.0
        %v296 = vld [vmem:[%s243] sm:$0xff]
        %v297 = vld [vmem:[%s243 + $0x8] sm:$0xff]
        %v298 = vld [vmem:[%s243 + $0x10] sm:$0xff]
        %v299 = vld [vmem:[%s243 + $0x18] sm:$0xff]
        %v300 = vld [vmem:[%s243 + $0x20] sm:$0xff]
        %v301 = vld [vmem:[%s243 + $0x28] sm:$0xff]
        %v302 = vld [vmem:[%s243 + $0x30] sm:$0xff]
        %v303 = vld [vmem:[%s243 + $0x38] sm:$0xff]
        %v304 = vld [vmem:[%s243 + $0x40] sm:$0xff]
        %v305 = vld [vmem:[%s243 + $0x48] sm:$0xff]
        %v306 = vld [vmem:[%s243 + $0x50] sm:$0xff]
        %v307 = vld [vmem:[%s243 + $0x58] sm:$0xff]
        %v308 = vld [vmem:[%s243 + $0x60] sm:$0xff]
        %v309 = vld [vmem:[%s243 + $0x68] sm:$0xff]
        %v310 = vld [vmem:[%s243 + $0x70] sm:$0xff]
        %v311 = vld [vmem:[%s243 + $0x78] sm:$0xff]
        %v312 = vld [vmem:[%s243 + $0x80] sm:$0xff]
        %v313 = vld [vmem:[%s243 + $0x88] sm:$0xff]
        %v314 = vld [vmem:[%s243 + $0x90] sm:$0xff]
        %v315 = vld [vmem:[%s243 + $0x98] sm:$0xff]
        %v316 = vld [vmem:[%s243 + $0xa0] sm:$0xff]
        %v317 = vld [vmem:[%s243 + $0xa8] sm:$0xff]
        %v318 = vld [vmem:[%s243 + $0xb0] sm:$0xff]
        %v319 = vld [vmem:[%s243 + $0xb8] sm:$0xff]
        %v320 = vld [vmem:[%s243 + $0xc0] sm:$0xff]
        %v321 = vld [vmem:[%s243 + $0xc8] sm:$0xff]
        %v322 = vld [vmem:[%s243 + $0xd0] sm:$0xff]
        %v323 = vld [vmem:[%s243 + $0xd8] sm:$0xff]
        %v324 = vld [vmem:[%s243 + $0xe0] sm:$0xff]
        %v325 = vld [vmem:[%s243 + $0xe8] sm:$0xff]
        %v326 = vld [vmem:[%s243 + $0xf0] sm:$0xff]
        %v327 = vld [vmem:[%s243 + $0xf8] sm:$0xff]
        %v328 = vld [vmem:[%s1] sm:$0x1]
        %v330 = vperm.slane %v328, 0
        %v332 = vmul.f32 %v296, %v330
        %v333 = vmul.f32 %v297, %v330
        %v334 = vmul.f32 %v298, %v330
        %v335 = vmul.f32 %v299, %v330
        %v336 = vmul.f32 %v300, %v330
        %v337 = vmul.f32 %v301, %v330
        %v338 = vmul.f32 %v302, %v330
        %v339 = vmul.f32 %v303, %v330
        %v340 = vmul.f32 %v304, %v330
        %v341 = vmul.f32 %v305, %v330
        %v342 = vmul.f32 %v306, %v330
        %v343 = vmul.f32 %v307, %v330
        %v344 = vmul.f32 %v308, %v330
        %v345 = vmul.f32 %v309, %v330
        %v346 = vmul.f32 %v310, %v330
        %v347 = vmul.f32 %v311, %v330
        %v348 = vmul.f32 %v312, %v330
        %v349 = vmul.f32 %v313, %v330
        %v350 = vmul.f32 %v314, %v330
        %v351 = vmul.f32 %v315, %v330
        %v352 = vmul.f32 %v316, %v330
        %v353 = vmul.f32 %v317, %v330
        %v354 = vmul.f32 %v318, %v330
        %v355 = vmul.f32 %v319, %v330
        %v356 = vmul.f32 %v320, %v330
        %v357 = vmul.f32 %v321, %v330
        %v358 = vmul.f32 %v322, %v330
        %v359 = vmul.f32 %v323, %v330
        %v360 = vmul.f32 %v324, %v330
        %v361 = vmul.f32 %v325, %v330
        %v362 = vmul.f32 %v326, %v330
        %v363 = vmul.f32 %v327, %v330
        %v364 = vld [vmem:[%s2] sm:$0x1]
        %v366 = vperm.slane %v364, 0
        %v368 = vadd.f32 %v332, %v366
        %v369 = vadd.f32 %v333, %v366
        %v370 = vadd.f32 %v334, %v366
        %v371 = vadd.f32 %v335, %v366
        %v372 = vadd.f32 %v336, %v366
        %v373 = vadd.f32 %v337, %v366
        %v374 = vadd.f32 %v338, %v366
        %v375 = vadd.f32 %v339, %v366
        %v376 = vadd.f32 %v340, %v366
        %v377 = vadd.f32 %v341, %v366
        %v378 = vadd.f32 %v342, %v366
        %v379 = vadd.f32 %v343, %v366
        %v380 = vadd.f32 %v344, %v366
        %v381 = vadd.f32 %v345, %v366
        %v382 = vadd.f32 %v346, %v366
        %v383 = vadd.f32 %v347, %v366
        %v384 = vadd.f32 %v348, %v366
        %v385 = vadd.f32 %v349, %v366
        %v386 = vadd.f32 %v350, %v366
        %v387 = vadd.f32 %v351, %v366
        %v388 = vadd.f32 %v352, %v366
        %v389 = vadd.f32 %v353, %v366
        %v390 = vadd.f32 %v354, %v366
        %v391 = vadd.f32 %v355, %v366
        %v392 = vadd.f32 %v356, %v366
        %v393 = vadd.f32 %v357, %v366
        %v394 = vadd.f32 %v358, %v366
        %v395 = vadd.f32 %v359, %v366
        %v396 = vadd.f32 %v360, %v366
        %v397 = vadd.f32 %v361, %v366
        %v398 = vadd.f32 %v362, %v366
        %v399 = vadd.f32 %v363, %v366
        %v400 = vmax.f32 %v368, 0.0
        %v401 = vmax.f32 %v369, 0.0
        %v402 = vmax.f32 %v370, 0.0
        %v403 = vmax.f32 %v371, 0.0
        %v404 = vmax.f32 %v372, 0.0
        %v405 = vmax.f32 %v373, 0.0
        %v406 = vmax.f32 %v374, 0.0
        %v407 = vmax.f32 %v375, 0.0
        %v408 = vmax.f32 %v376, 0.0
        %v409 = vmax.f32 %v377, 0.0
        %v410 = vmax.f32 %v378, 0.0
        %v411 = vmax.f32 %v379, 0.0
        %v412 = vmax.f32 %v380, 0.0
        %v413 = vmax.f32 %v381, 0.0
        %v414 = vmax.f32 %v382, 0.0
        %v415 = vmax.f32 %v383, 0.0
        %v416 = vmax.f32 %v384, 0.0
        %v417 = vmax.f32 %v385, 0.0
        %v418 = vmax.f32 %v386, 0.0
        %v419 = vmax.f32 %v387, 0.0
        %v420 = vmax.f32 %v388, 0.0
        %v421 = vmax.f32 %v389, 0.0
        %v422 = vmax.f32 %v390, 0.0
        %v423 = vmax.f32 %v391, 0.0
        %v424 = vmax.f32 %v392, 0.0
        %v425 = vmax.f32 %v393, 0.0
        %v426 = vmax.f32 %v394, 0.0
        %v427 = vmax.f32 %v395, 0.0
        %v428 = vmax.f32 %v396, 0.0
        %v429 = vmax.f32 %v397, 0.0
        %v430 = vmax.f32 %v398, 0.0
        %v431 = vmax.f32 %v399, 0.0
        %s432 = scalar_lea.vmem [#allocation2], 24
        %433 = vst [vmem:[%s432 + $0x1] sm:$0xff] %v400
        %434 = vst [vmem:[%s432 + $0x9] sm:$0xff] %v401
        %435 = vst [vmem:[%s432 + $0x19] sm:$0xff] %v402
        %436 = vst [vmem:[%s432 + $0x21] sm:$0xff] %v403
        %437 = vst [vmem:[%s432 + $0x31] sm:$0xff] %v404
        %438 = vst [vmem:[%s432 + $0x39] sm:$0xff] %v405
        %439 = vst [vmem:[%s432 + $0x49] sm:$0xff] %v406
        %440 = vst [vmem:[%s432 + $0x51] sm:$0xff] %v407
        %441 = vst [vmem:[%s432 + $0x61] sm:$0xff] %v408
        %442 = vst [vmem:[%s432 + $0x69] sm:$0xff] %v409
        %443 = vst [vmem:[%s432 + $0x79] sm:$0xff] %v410
        %444 = vst [vmem:[%s432 + $0x81] sm:$0xff] %v411
        %445 = vst [vmem:[%s432 + $0x91] sm:$0xff] %v412
        %446 = vst [vmem:[%s432 + $0x99] sm:$0xff] %v413
        %447 = vst [vmem:[%s432 + $0xa9] sm:$0xff] %v414
        %448 = vst [vmem:[%s432 + $0xb1] sm:$0xff] %v415
        %449 = vst [vmem:[%s432 + $0xc1] sm:$0xff] %v416
        %450 = vst [vmem:[%s432 + $0xc9] sm:$0xff] %v417
        %451 = vst [vmem:[%s432 + $0xd9] sm:$0xff] %v418
        %452 = vst [vmem:[%s432 + $0xe1] sm:$0xff] %v419
        %453 = vst [vmem:[%s432 + $0xf1] sm:$0xff] %v420
        %454 = vst [vmem:[%s432 + $0xf9] sm:$0xff] %v421
        %455 = vst [vmem:[%s432 + $0x109] sm:$0xff] %v422
        %456 = vst [vmem:[%s432 + $0x111] sm:$0xff] %v423
        %457 = vst [vmem:[%s432 + $0x121] sm:$0xff] %v424
        %458 = vst [vmem:[%s432 + $0x129] sm:$0xff] %v425
        %459 = vst [vmem:[%s432 + $0x139] sm:$0xff] %v426
        %460 = vst [vmem:[%s432 + $0x141] sm:$0xff] %v427
        %461 = vst [vmem:[%s432 + $0x151] sm:$0xff] %v428
        %462 = vst [vmem:[%s432 + $0x159] sm:$0xff] %v429
        %463 = vst [vmem:[%s432 + $0x169] sm:$0xff] %v430
        %464 = vst [vmem:[%s432 + $0x171] sm:$0xff] %v431
        %v465 = vld [vmem:[#allocation2] sm:$0xff]
        %v466 = vld [vmem:[#allocation2 + $0x8] sm:$0xff]
        %v467 = vld [vmem:[#allocation2 + $0x18] sm:$0xff]
        %v468 = vld [vmem:[#allocation2 + $0x20] sm:$0xff]
        %v469 = vld [vmem:[#allocation2 + $0x30] sm:$0xff]
        %v470 = vld [vmem:[#allocation2 + $0x38] sm:$0xff]
        %v471 = vld [vmem:[#allocation2 + $0x48] sm:$0xff]
        %v472 = vld [vmem:[#allocation2 + $0x50] sm:$0xff]
        %v473 = vld [vmem:[#allocation2 + $0x60] sm:$0xff]
        %v474 = vld [vmem:[#allocation2 + $0x68] sm:$0xff]
        %v475 = vld [vmem:[#allocation2 + $0x78] sm:$0xff]
        %v476 = vld [vmem:[#allocation2 + $0x80] sm:$0xff]
        %v477 = vld [vmem:[#allocation2 + $0x90] sm:$0xff]
        %v478 = vld [vmem:[#allocation2 + $0x98] sm:$0xff]
        %v479 = vld [vmem:[#allocation2 + $0xa8] sm:$0xff]
        %v480 = vld [vmem:[#allocation2 + $0xb0] sm:$0xff]
        %v481 = vld [vmem:[#allocation2 + $0xc0] sm:$0xff]
        %v482 = vld [vmem:[#allocation2 + $0xc8] sm:$0xff]
        %v483 = vld [vmem:[#allocation2 + $0xd8] sm:$0xff]
        %v484 = vld [vmem:[#allocation2 + $0xe0] sm:$0xff]
        %v485 = vld [vmem:[#allocation2 + $0xf0] sm:$0xff]
        %v486 = vld [vmem:[#allocation2 + $0xf8] sm:$0xff]
        %v487 = vld [vmem:[#allocation2 + $0x108] sm:$0xff]
        %v488 = vld [vmem:[#allocation2 + $0x110] sm:$0xff]
        %v489 = vld [vmem:[#allocation2 + $0x120] sm:$0xff]
        %v490 = vld [vmem:[#allocation2 + $0x128] sm:$0xff]
        %v491 = vld [vmem:[#allocation2 + $0x138] sm:$0xff]
        %v492 = vld [vmem:[#allocation2 + $0x140] sm:$0xff]
        %v493 = vld [vmem:[#allocation2 + $0x150] sm:$0xff]
        %v494 = vld [vmem:[#allocation2 + $0x158] sm:$0xff]
        %v495 = vld [vmem:[#allocation2 + $0x168] sm:$0xff]
        %v496 = vld [vmem:[#allocation2 + $0x170] sm:$0xff]
        %497 = vst [vmem:[#allocation3] sm:$0xff] %v465
        %498 = vst [vmem:[#allocation3 + $0x48] sm:$0xff] %v466
        %499 = vst [vmem:[#allocation3 + $0x90] sm:$0xff] %v467
        %500 = vst [vmem:[#allocation3 + $0xd8] sm:$0xff] %v468
        %501 = vst [vmem:[#allocation3 + $0x120] sm:$0xff] %v469
        %502 = vst [vmem:[#allocation3 + $0x168] sm:$0xff] %v470
        %503 = vst [vmem:[#allocation3 + $0x1b0] sm:$0xff] %v471
        %504 = vst [vmem:[#allocation3 + $0x1f8] sm:$0xff] %v472
        %505 = vst [vmem:[#allocation3 + $0x240] sm:$0xff] %v473
        %506 = vst [vmem:[#allocation3 + $0x288] sm:$0xff] %v474
        %507 = vst [vmem:[#allocation3 + $0x2d0] sm:$0xff] %v475
        %508 = vst [vmem:[#allocation3 + $0x318] sm:$0xff] %v476
        %509 = vst [vmem:[#allocation3 + $0x360] sm:$0xff] %v477
        %510 = vst [vmem:[#allocation3 + $0x3a8] sm:$0xff] %v478
        %511 = vst [vmem:[#allocation3 + $0x3f0] sm:$0xff] %v479
        %512 = vst [vmem:[#allocation3 + $0x438] sm:$0xff] %v480
        %513 = vst [vmem:[#allocation3 + $0x480] sm:$0xff] %v481
        %514 = vst [vmem:[#allocation3 + $0x4c8] sm:$0xff] %v482
        %515 = vst [vmem:[#allocation3 + $0x510] sm:$0xff] %v483
        %516 = vst [vmem:[#allocation3 + $0x558] sm:$0xff] %v484
        %517 = vst [vmem:[#allocation3 + $0x5a0] sm:$0xff] %v485
        %518 = vst [vmem:[#allocation3 + $0x5e8] sm:$0xff] %v486
        %519 = vst [vmem:[#allocation3 + $0x630] sm:$0xff] %v487
        %520 = vst [vmem:[#allocation3 + $0x678] sm:$0xff] %v488
        %521 = vst [vmem:[#allocation3 + $0x6c0] sm:$0xff] %v489
        %522 = vst [vmem:[#allocation3 + $0x708] sm:$0xff] %v490
        %523 = vst [vmem:[#allocation3 + $0x750] sm:$0xff] %v491
        %524 = vst [vmem:[#allocation3 + $0x798] sm:$0xff] %v492
        %525 = vst [vmem:[#allocation3 + $0x7e0] sm:$0xff] %v493
        %526 = vst [vmem:[#allocation3 + $0x828] sm:$0xff] %v494
        %527 = vst [vmem:[#allocation3 + $0x870] sm:$0xff] %v495
        %528 = vst [vmem:[#allocation3 + $0x8b8] sm:$0xff] %v496
        %v529 = vld [vmem:[#allocation2 + $0x1] sm:$0xff]
        %v530 = vld [vmem:[#allocation2 + $0x9] sm:$0xff]
        %v531 = vld [vmem:[#allocation2 + $0x19] sm:$0xff]
        %v532 = vld [vmem:[#allocation2 + $0x21] sm:$0xff]
        %v533 = vld [vmem:[#allocation2 + $0x31] sm:$0xff]
        %v534 = vld [vmem:[#allocation2 + $0x39] sm:$0xff]
        %v535 = vld [vmem:[#allocation2 + $0x49] sm:$0xff]
        %v536 = vld [vmem:[#allocation2 + $0x51] sm:$0xff]
        %v537 = vld [vmem:[#allocation2 + $0x61] sm:$0xff]
        %v538 = vld [vmem:[#allocation2 + $0x69] sm:$0xff]
        %v539 = vld [vmem:[#allocation2 + $0x79] sm:$0xff]
        %v540 = vld [vmem:[#allocation2 + $0x81] sm:$0xff]
        %v541 = vld [vmem:[#allocation2 + $0x91] sm:$0xff]
        %v542 = vld [vmem:[#allocation2 + $0x99] sm:$0xff]
        %v543 = vld [vmem:[#allocation2 + $0xa9] sm:$0xff]
        %v544 = vld [vmem:[#allocation2 + $0xb1] sm:$0xff]
        %v545 = vld [vmem:[#allocation2 + $0xc1] sm:$0xff]
        %v546 = vld [vmem:[#allocation2 + $0xc9] sm:$0xff]
        %v547 = vld [vmem:[#allocation2 + $0xd9] sm:$0xff]
        %v548 = vld [vmem:[#allocation2 + $0xe1] sm:$0xff]
        %v549 = vld [vmem:[#allocation2 + $0xf1] sm:$0xff]
        %v550 = vld [vmem:[#allocation2 + $0xf9] sm:$0xff]
        %v551 = vld [vmem:[#allocation2 + $0x109] sm:$0xff]
        %v552 = vld [vmem:[#allocation2 + $0x111] sm:$0xff]
        %v553 = vld [vmem:[#allocation2 + $0x121] sm:$0xff]
        %v554 = vld [vmem:[#allocation2 + $0x129] sm:$0xff]
        %v555 = vld [vmem:[#allocation2 + $0x139] sm:$0xff]
        %v556 = vld [vmem:[#allocation2 + $0x141] sm:$0xff]
        %v557 = vld [vmem:[#allocation2 + $0x151] sm:$0xff]
        %v558 = vld [vmem:[#allocation2 + $0x159] sm:$0xff]
        %v559 = vld [vmem:[#allocation2 + $0x169] sm:$0xff]
        %v560 = vld [vmem:[#allocation2 + $0x171] sm:$0xff]
        %561 = vst [vmem:[#allocation3 + $0x8] sm:$0xff] %v529
        %562 = vst [vmem:[#allocation3 + $0x50] sm:$0xff] %v530
        %563 = vst [vmem:[#allocation3 + $0x98] sm:$0xff] %v531
        %564 = vst [vmem:[#allocation3 + $0xe0] sm:$0xff] %v532
        %565 = vst [vmem:[#allocation3 + $0x128] sm:$0xff] %v533
        %566 = vst [vmem:[#allocation3 + $0x170] sm:$0xff] %v534
        %567 = vst [vmem:[#allocation3 + $0x1b8] sm:$0xff] %v535
        %568 = vst [vmem:[#allocation3 + $0x200] sm:$0xff] %v536
        %569 = vst [vmem:[#allocation3 + $0x248] sm:$0xff] %v537
        %570 = vst [vmem:[#allocation3 + $0x290] sm:$0xff] %v538
        %571 = vst [vmem:[#allocation3 + $0x2d8] sm:$0xff] %v539
        %572 = vst [vmem:[#allocation3 + $0x320] sm:$0xff] %v540
        %573 = vst [vmem:[#allocation3 + $0x368] sm:$0xff] %v541
        %574 = vst [vmem:[#allocation3 + $0x3b0] sm:$0xff] %v542
        %575 = vst [vmem:[#allocation3 + $0x3f8] sm:$0xff] %v543
        %576 = vst [vmem:[#allocation3 + $0x440] sm:$0xff] %v544
        %577 = vst [vmem:[#allocation3 + $0x488] sm:$0xff] %v545
        %578 = vst [vmem:[#allocation3 + $0x4d0] sm:$0xff] %v546
        %579 = vst [vmem:[#allocation3 + $0x518] sm:$0xff] %v547
        %580 = vst [vmem:[#allocation3 + $0x560] sm:$0xff] %v548
        %581 = vst [vmem:[#allocation3 + $0x5a8] sm:$0xff] %v549
        %582 = vst [vmem:[#allocation3 + $0x5f0] sm:$0xff] %v550
        %583 = vst [vmem:[#allocation3 + $0x638] sm:$0xff] %v551
        %584 = vst [vmem:[#allocation3 + $0x680] sm:$0xff] %v552
        %585 = vst [vmem:[#allocation3 + $0x6c8] sm:$0xff] %v553
        %586 = vst [vmem:[#allocation3 + $0x710] sm:$0xff] %v554
        %587 = vst [vmem:[#allocation3 + $0x758] sm:$0xff] %v555
        %588 = vst [vmem:[#allocation3 + $0x7a0] sm:$0xff] %v556
        %589 = vst [vmem:[#allocation3 + $0x7e8] sm:$0xff] %v557
        %590 = vst [vmem:[#allocation3 + $0x830] sm:$0xff] %v558
        %591 = vst [vmem:[#allocation3 + $0x878] sm:$0xff] %v559
        %592 = vst [vmem:[#allocation3 + $0x8c0] sm:$0xff] %v560
        %v593 = vld [vmem:[#allocation2 + $0x2] sm:$0xff]
        %v594 = vld [vmem:[#allocation2 + $0xa] sm:$0xff]
        %v595 = vld [vmem:[#allocation2 + $0x1a] sm:$0xff]
        %v596 = vld [vmem:[#allocation2 + $0x22] sm:$0xff]
        %v597 = vld [vmem:[#allocation2 + $0x32] sm:$0xff]
        %v598 = vld [vmem:[#allocation2 + $0x3a] sm:$0xff]
        %v599 = vld [vmem:[#allocation2 + $0x4a] sm:$0xff]
        %v600 = vld [vmem:[#allocation2 + $0x52] sm:$0xff]
        %v601 = vld [vmem:[#allocation2 + $0x62] sm:$0xff]
        %v602 = vld [vmem:[#allocation2 + $0x6a] sm:$0xff]
        %v603 = vld [vmem:[#allocation2 + $0x7a] sm:$0xff]
        %v604 = vld [vmem:[#allocation2 + $0x82] sm:$0xff]
        %v605 = vld [vmem:[#allocation2 + $0x92] sm:$0xff]
        %v606 = vld [vmem:[#allocation2 + $0x9a] sm:$0xff]
        %v607 = vld [vmem:[#allocation2 + $0xaa] sm:$0xff]
        %v608 = vld [vmem:[#allocation2 + $0xb2] sm:$0xff]
        %v609 = vld [vmem:[#allocation2 + $0xc2] sm:$0xff]
        %v610 = vld [vmem:[#allocation2 + $0xca] sm:$0xff]
        %v611 = vld [vmem:[#allocation2 + $0xda] sm:$0xff]
        %v612 = vld [vmem:[#allocation2 + $0xe2] sm:$0xff]
        %v613 = vld [vmem:[#allocation2 + $0xf2] sm:$0xff]
        %v614 = vld [vmem:[#allocation2 + $0xfa] sm:$0xff]
        %v615 = vld [vmem:[#allocation2 + $0x10a] sm:$0xff]
        %v616 = vld [vmem:[#allocation2 + $0x112] sm:$0xff]
        %v617 = vld [vmem:[#allocation2 + $0x122] sm:$0xff]
        %v618 = vld [vmem:[#allocation2 + $0x12a] sm:$0xff]
        %v619 = vld [vmem:[#allocation2 + $0x13a] sm:$0xff]
        %v620 = vld [vmem:[#allocation2 + $0x142] sm:$0xff]
        %v621 = vld [vmem:[#allocation2 + $0x152] sm:$0xff]
        %v622 = vld [vmem:[#allocation2 + $0x15a] sm:$0xff]
        %v623 = vld [vmem:[#allocation2 + $0x16a] sm:$0xff]
        %v624 = vld [vmem:[#allocation2 + $0x172] sm:$0xff]
        %625 = vst [vmem:[#allocation3 + $0x10] sm:$0xff] %v593
        %626 = vst [vmem:[#allocation3 + $0x58] sm:$0xff] %v594
        %627 = vst [vmem:[#allocation3 + $0xa0] sm:$0xff] %v595
        %628 = vst [vmem:[#allocation3 + $0xe8] sm:$0xff] %v596
        %629 = vst [vmem:[#allocation3 + $0x130] sm:$0xff] %v597
        %630 = vst [vmem:[#allocation3 + $0x178] sm:$0xff] %v598
        %631 = vst [vmem:[#allocation3 + $0x1c0] sm:$0xff] %v599
        %632 = vst [vmem:[#allocation3 + $0x208] sm:$0xff] %v600
        %633 = vst [vmem:[#allocation3 + $0x250] sm:$0xff] %v601
        %634 = vst [vmem:[#allocation3 + $0x298] sm:$0xff] %v602
        %635 = vst [vmem:[#allocation3 + $0x2e0] sm:$0xff] %v603
        %636 = vst [vmem:[#allocation3 + $0x328] sm:$0xff] %v604
        %637 = vst [vmem:[#allocation3 + $0x370] sm:$0xff] %v605
        %638 = vst [vmem:[#allocation3 + $0x3b8] sm:$0xff] %v606
        %639 = vst [vmem:[#allocation3 + $0x400] sm:$0xff] %v607
        %640 = vst [vmem:[#allocation3 + $0x448] sm:$0xff] %v608
        %641 = vst [vmem:[#allocation3 + $0x490] sm:$0xff] %v609
        %642 = vst [vmem:[#allocation3 + $0x4d8] sm:$0xff] %v610
        %643 = vst [vmem:[#allocation3 + $0x520] sm:$0xff] %v611
        %644 = vst [vmem:[#allocation3 + $0x568] sm:$0xff] %v612
        %645 = vst [vmem:[#allocation3 + $0x5b0] sm:$0xff] %v613
        %646 = vst [vmem:[#allocation3 + $0x5f8] sm:$0xff] %v614
        %647 = vst [vmem:[#allocation3 + $0x640] sm:$0xff] %v615
        %648 = vst [vmem:[#allocation3 + $0x688] sm:$0xff] %v616
        %649 = vst [vmem:[#allocation3 + $0x6d0] sm:$0xff] %v617
        %650 = vst [vmem:[#allocation3 + $0x718] sm:$0xff] %v618
        %651 = vst [vmem:[#allocation3 + $0x760] sm:$0xff] %v619
        %652 = vst [vmem:[#allocation3 + $0x7a8] sm:$0xff] %v620
        %653 = vst [vmem:[#allocation3 + $0x7f0] sm:$0xff] %v621
        %654 = vst [vmem:[#allocation3 + $0x838] sm:$0xff] %v622
        %655 = vst [vmem:[#allocation3 + $0x880] sm:$0xff] %v623
        %656 = vst [vmem:[#allocation3 + $0x8c8] sm:$0xff] %v624
        %v657 = vld [vmem:[%s432] sm:$0xff]
        %v658 = vld [vmem:[%s432 + $0x8] sm:$0xff]
        %v659 = vld [vmem:[%s432 + $0x18] sm:$0xff]
        %v660 = vld [vmem:[%s432 + $0x20] sm:$0xff]
        %v661 = vld [vmem:[%s432 + $0x30] sm:$0xff]
        %v662 = vld [vmem:[%s432 + $0x38] sm:$0xff]
        %v663 = vld [vmem:[%s432 + $0x48] sm:$0xff]
        %v664 = vld [vmem:[%s432 + $0x50] sm:$0xff]
        %v665 = vld [vmem:[%s432 + $0x60] sm:$0xff]
        %v666 = vld [vmem:[%s432 + $0x68] sm:$0xff]
        %v667 = vld [vmem:[%s432 + $0x78] sm:$0xff]
        %v668 = vld [vmem:[%s432 + $0x80] sm:$0xff]
        %v669 = vld [vmem:[%s432 + $0x90] sm:$0xff]
        %v670 = vld [vmem:[%s432 + $0x98] sm:$0xff]
        %v671 = vld [vmem:[%s432 + $0xa8] sm:$0xff]
        %v672 = vld [vmem:[%s432 + $0xb0] sm:$0xff]
        %v673 = vld [vmem:[%s432 + $0xc0] sm:$0xff]
        %v674 = vld [vmem:[%s432 + $0xc8] sm:$0xff]
        %v675 = vld [vmem:[%s432 + $0xd8] sm:$0xff]
        %v676 = vld [vmem:[%s432 + $0xe0] sm:$0xff]
        %v677 = vld [vmem:[%s432 + $0xf0] sm:$0xff]
        %v678 = vld [vmem:[%s432 + $0xf8] sm:$0xff]
        %v679 = vld [vmem:[%s432 + $0x108] sm:$0xff]
        %v680 = vld [vmem:[%s432 + $0x110] sm:$0xff]
        %v681 = vld [vmem:[%s432 + $0x120] sm:$0xff]
        %v682 = vld [vmem:[%s432 + $0x128] sm:$0xff]
        %v683 = vld [vmem:[%s432 + $0x138] sm:$0xff]
        %v684 = vld [vmem:[%s432 + $0x140] sm:$0xff]
        %v685 = vld [vmem:[%s432 + $0x150] sm:$0xff]
        %v686 = vld [vmem:[%s432 + $0x158] sm:$0xff]
        %v687 = vld [vmem:[%s432 + $0x168] sm:$0xff]
        %v688 = vld [vmem:[%s432 + $0x170] sm:$0xff]
        %689 = vst [vmem:[#allocation3 + $0x18] sm:$0xff] %v657
        %690 = vst [vmem:[#allocation3 + $0x60] sm:$0xff] %v658
        %691 = vst [vmem:[#allocation3 + $0xa8] sm:$0xff] %v659
        %692 = vst [vmem:[#allocation3 + $0xf0] sm:$0xff] %v660
        %693 = vst [vmem:[#allocation3 + $0x138] sm:$0xff] %v661
        %694 = vst [vmem:[#allocation3 + $0x180] sm:$0xff] %v662
        %695 = vst [vmem:[#allocation3 + $0x1c8] sm:$0xff] %v663
        %696 = vst [vmem:[#allocation3 + $0x210] sm:$0xff] %v664
        %697 = vst [vmem:[#allocation3 + $0x258] sm:$0xff] %v665
        %698 = vst [vmem:[#allocation3 + $0x2a0] sm:$0xff] %v666
        %699 = vst [vmem:[#allocation3 + $0x2e8] sm:$0xff] %v667
        %700 = vst [vmem:[#allocation3 + $0x330] sm:$0xff] %v668
        %701 = vst [vmem:[#allocation3 + $0x378] sm:$0xff] %v669
        %702 = vst [vmem:[#allocation3 + $0x3c0] sm:$0xff] %v670
        %703 = vst [vmem:[#allocation3 + $0x408] sm:$0xff] %v671
        %704 = vst [vmem:[#allocation3 + $0x450] sm:$0xff] %v672
        %705 = vst [vmem:[#allocation3 + $0x498] sm:$0xff] %v673
        %706 = vst [vmem:[#allocation3 + $0x4e0] sm:$0xff] %v674
        %707 = vst [vmem:[#allocation3 + $0x528] sm:$0xff] %v675
        %708 = vst [vmem:[#allocation3 + $0x570] sm:$0xff] %v676
        %709 = vst [vmem:[#allocation3 + $0x5b8] sm:$0xff] %v677
        %710 = vst [vmem:[#allocation3 + $0x600] sm:$0xff] %v678
        %711 = vst [vmem:[#allocation3 + $0x648] sm:$0xff] %v679
        %712 = vst [vmem:[#allocation3 + $0x690] sm:$0xff] %v680
        %713 = vst [vmem:[#allocation3 + $0x6d8] sm:$0xff] %v681
        %714 = vst [vmem:[#allocation3 + $0x720] sm:$0xff] %v682
        %715 = vst [vmem:[#allocation3 + $0x768] sm:$0xff] %v683
        %716 = vst [vmem:[#allocation3 + $0x7b0] sm:$0xff] %v684
        %717 = vst [vmem:[#allocation3 + $0x7f8] sm:$0xff] %v685
        %718 = vst [vmem:[#allocation3 + $0x840] sm:$0xff] %v686
        %719 = vst [vmem:[#allocation3 + $0x888] sm:$0xff] %v687
        %720 = vst [vmem:[#allocation3 + $0x8d0] sm:$0xff] %v688
        %v721 = vld [vmem:[%s432 + $0x1] sm:$0xff]
        %v722 = vld [vmem:[%s432 + $0x9] sm:$0xff]
        %v723 = vld [vmem:[%s432 + $0x19] sm:$0xff]
        %v724 = vld [vmem:[%s432 + $0x21] sm:$0xff]
        %v725 = vld [vmem:[%s432 + $0x31] sm:$0xff]
        %v726 = vld [vmem:[%s432 + $0x39] sm:$0xff]
        %v727 = vld [vmem:[%s432 + $0x49] sm:$0xff]
        %v728 = vld [vmem:[%s432 + $0x51] sm:$0xff]
        %v729 = vld [vmem:[%s432 + $0x61] sm:$0xff]
        %v730 = vld [vmem:[%s432 + $0x69] sm:$0xff]
        %v731 = vld [vmem:[%s432 + $0x79] sm:$0xff]
        %v732 = vld [vmem:[%s432 + $0x81] sm:$0xff]
        %v733 = vld [vmem:[%s432 + $0x91] sm:$0xff]
        %v734 = vld [vmem:[%s432 + $0x99] sm:$0xff]
        %v735 = vld [vmem:[%s432 + $0xa9] sm:$0xff]
        %v736 = vld [vmem:[%s432 + $0xb1] sm:$0xff]
        %v737 = vld [vmem:[%s432 + $0xc1] sm:$0xff]
        %v738 = vld [vmem:[%s432 + $0xc9] sm:$0xff]
        %v739 = vld [vmem:[%s432 + $0xd9] sm:$0xff]
        %v740 = vld [vmem:[%s432 + $0xe1] sm:$0xff]
        %v741 = vld [vmem:[%s432 + $0xf1] sm:$0xff]
        %v742 = vld [vmem:[%s432 + $0xf9] sm:$0xff]
        %v743 = vld [vmem:[%s432 + $0x109] sm:$0xff]
        %v744 = vld [vmem:[%s432 + $0x111] sm:$0xff]
        %v745 = vld [vmem:[%s432 + $0x121] sm:$0xff]
        %v746 = vld [vmem:[%s432 + $0x129] sm:$0xff]
        %v747 = vld [vmem:[%s432 + $0x139] sm:$0xff]
        %v748 = vld [vmem:[%s432 + $0x141] sm:$0xff]
        %v749 = vld [vmem:[%s432 + $0x151] sm:$0xff]
        %v750 = vld [vmem:[%s432 + $0x159] sm:$0xff]
        %v751 = vld [vmem:[%s432 + $0x169] sm:$0xff]
        %v752 = vld [vmem:[%s432 + $0x171] sm:$0xff]
        %753 = vst [vmem:[#allocation3 + $0x20] sm:$0xff] %v721
        %754 = vst [vmem:[#allocation3 + $0x68] sm:$0xff] %v722
        %755 = vst [vmem:[#allocation3 + $0xb0] sm:$0xff] %v723
        %756 = vst [vmem:[#allocation3 + $0xf8] sm:$0xff] %v724
        %757 = vst [vmem:[#allocation3 + $0x140] sm:$0xff] %v725
        %758 = vst [vmem:[#allocation3 + $0x188] sm:$0xff] %v726
        %759 = vst [vmem:[#allocation3 + $0x1d0] sm:$0xff] %v727
        %760 = vst [vmem:[#allocation3 + $0x218] sm:$0xff] %v728
        %761 = vst [vmem:[#allocation3 + $0x260] sm:$0xff] %v729
        %762 = vst [vmem:[#allocation3 + $0x2a8] sm:$0xff] %v730
        %763 = vst [vmem:[#allocation3 + $0x2f0] sm:$0xff] %v731
        %764 = vst [vmem:[#allocation3 + $0x338] sm:$0xff] %v732
        %765 = vst [vmem:[#allocation3 + $0x380] sm:$0xff] %v733
        %766 = vst [vmem:[#allocation3 + $0x3c8] sm:$0xff] %v734
        %767 = vst [vmem:[#allocation3 + $0x410] sm:$0xff] %v735
        %768 = vst [vmem:[#allocation3 + $0x458] sm:$0xff] %v736
        %769 = vst [vmem:[#allocation3 + $0x4a0] sm:$0xff] %v737
        %770 = vst [vmem:[#allocation3 + $0x4e8] sm:$0xff] %v738
        %771 = vst [vmem:[#allocation3 + $0x530] sm:$0xff] %v739
        %772 = vst [vmem:[#allocation3 + $0x578] sm:$0xff] %v740
        %773 = vst [vmem:[#allocation3 + $0x5c0] sm:$0xff] %v741
        %774 = vst [vmem:[#allocation3 + $0x608] sm:$0xff] %v742
        %775 = vst [vmem:[#allocation3 + $0x650] sm:$0xff] %v743
        %776 = vst [vmem:[#allocation3 + $0x698] sm:$0xff] %v744
        %777 = vst [vmem:[#allocation3 + $0x6e0] sm:$0xff] %v745
        %778 = vst [vmem:[#allocation3 + $0x728] sm:$0xff] %v746
        %779 = vst [vmem:[#allocation3 + $0x770] sm:$0xff] %v747
        %780 = vst [vmem:[#allocation3 + $0x7b8] sm:$0xff] %v748
        %781 = vst [vmem:[#allocation3 + $0x800] sm:$0xff] %v749
        %782 = vst [vmem:[#allocation3 + $0x848] sm:$0xff] %v750
        %783 = vst [vmem:[#allocation3 + $0x890] sm:$0xff] %v751
        %784 = vst [vmem:[#allocation3 + $0x8d8] sm:$0xff] %v752
        %v785 = vld [vmem:[%s432 + $0x2] sm:$0xff]
        %v786 = vld [vmem:[%s432 + $0xa] sm:$0xff]
        %v787 = vld [vmem:[%s432 + $0x1a] sm:$0xff]
        %v788 = vld [vmem:[%s432 + $0x22] sm:$0xff]
        %v789 = vld [vmem:[%s432 + $0x32] sm:$0xff]
        %v790 = vld [vmem:[%s432 + $0x3a] sm:$0xff]
        %v791 = vld [vmem:[%s432 + $0x4a] sm:$0xff]
        %v792 = vld [vmem:[%s432 + $0x52] sm:$0xff]
        %v793 = vld [vmem:[%s432 + $0x62] sm:$0xff]
        %v794 = vld [vmem:[%s432 + $0x6a] sm:$0xff]
        %v795 = vld [vmem:[%s432 + $0x7a] sm:$0xff]
        %v796 = vld [vmem:[%s432 + $0x82] sm:$0xff]
        %v797 = vld [vmem:[%s432 + $0x92] sm:$0xff]
        %v798 = vld [vmem:[%s432 + $0x9a] sm:$0xff]
        %v799 = vld [vmem:[%s432 + $0xaa] sm:$0xff]
        %v800 = vld [vmem:[%s432 + $0xb2] sm:$0xff]
        %v801 = vld [vmem:[%s432 + $0xc2] sm:$0xff]
        %v802 = vld [vmem:[%s432 + $0xca] sm:$0xff]
        %v803 = vld [vmem:[%s432 + $0xda] sm:$0xff]
        %v804 = vld [vmem:[%s432 + $0xe2] sm:$0xff]
        %v805 = vld [vmem:[%s432 + $0xf2] sm:$0xff]
        %v806 = vld [vmem:[%s432 + $0xfa] sm:$0xff]
        %v807 = vld [vmem:[%s432 + $0x10a] sm:$0xff]
        %v808 = vld [vmem:[%s432 + $0x112] sm:$0xff]
        %v809 = vld [vmem:[%s432 + $0x122] sm:$0xff]
        %v810 = vld [vmem:[%s432 + $0x12a] sm:$0xff]
        %v811 = vld [vmem:[%s432 + $0x13a] sm:$0xff]
        %v812 = vld [vmem:[%s432 + $0x142] sm:$0xff]
        %v813 = vld [vmem:[%s432 + $0x152] sm:$0xff]
        %v814 = vld [vmem:[%s432 + $0x15a] sm:$0xff]
        %v815 = vld [vmem:[%s432 + $0x16a] sm:$0xff]
        %v816 = vld [vmem:[%s432 + $0x172] sm:$0xff]
        %817 = vst [vmem:[#allocation3 + $0x28] sm:$0xff] %v785
        %818 = vst [vmem:[#allocation3 + $0x70] sm:$0xff] %v786
        %819 = vst [vmem:[#allocation3 + $0xb8] sm:$0xff] %v787
        %820 = vst [vmem:[#allocation3 + $0x100] sm:$0xff] %v788
        %821 = vst [vmem:[#allocation3 + $0x148] sm:$0xff] %v789
        %822 = vst [vmem:[#allocation3 + $0x190] sm:$0xff] %v790
        %823 = vst [vmem:[#allocation3 + $0x1d8] sm:$0xff] %v791
        %824 = vst [vmem:[#allocation3 + $0x220] sm:$0xff] %v792
        %825 = vst [vmem:[#allocation3 + $0x268] sm:$0xff] %v793
        %826 = vst [vmem:[#allocation3 + $0x2b0] sm:$0xff] %v794
        %827 = vst [vmem:[#allocation3 + $0x2f8] sm:$0xff] %v795
        %828 = vst [vmem:[#allocation3 + $0x340] sm:$0xff] %v796
        %829 = vst [vmem:[#allocation3 + $0x388] sm:$0xff] %v797
        %830 = vst [vmem:[#allocation3 + $0x3d0] sm:$0xff] %v798
        %831 = vst [vmem:[#allocation3 + $0x418] sm:$0xff] %v799
        %832 = vst [vmem:[#allocation3 + $0x460] sm:$0xff] %v800
        %833 = vst [vmem:[#allocation3 + $0x4a8] sm:$0xff] %v801
        %834 = vst [vmem:[#allocation3 + $0x4f0] sm:$0xff] %v802
        %835 = vst [vmem:[#allocation3 + $0x538] sm:$0xff] %v803
        %836 = vst [vmem:[#allocation3 + $0x580] sm:$0xff] %v804
        %837 = vst [vmem:[#allocation3 + $0x5c8] sm:$0xff] %v805
        %838 = vst [vmem:[#allocation3 + $0x610] sm:$0xff] %v806
        %839 = vst [vmem:[#allocation3 + $0x658] sm:$0xff] %v807
        %840 = vst [vmem:[#allocation3 + $0x6a0] sm:$0xff] %v808
        %841 = vst [vmem:[#allocation3 + $0x6e8] sm:$0xff] %v809
        %842 = vst [vmem:[#allocation3 + $0x730] sm:$0xff] %v810
        %843 = vst [vmem:[#allocation3 + $0x778] sm:$0xff] %v811
        %844 = vst [vmem:[#allocation3 + $0x7c0] sm:$0xff] %v812
        %845 = vst [vmem:[#allocation3 + $0x808] sm:$0xff] %v813
        %846 = vst [vmem:[#allocation3 + $0x850] sm:$0xff] %v814
        %847 = vst [vmem:[#allocation3 + $0x898] sm:$0xff] %v815
        %848 = vst [vmem:[#allocation3 + $0x8e0] sm:$0xff] %v816
        %s849 = scalar_lea.vmem [#allocation2], 48
        %v850 = vld [vmem:[%s849] sm:$0xff]
        %v851 = vld [vmem:[%s849 + $0x8] sm:$0xff]
        %v852 = vld [vmem:[%s849 + $0x18] sm:$0xff]
        %v853 = vld [vmem:[%s849 + $0x20] sm:$0xff]
        %v854 = vld [vmem:[%s849 + $0x30] sm:$0xff]
        %v855 = vld [vmem:[%s849 + $0x38] sm:$0xff]
        %v856 = vld [vmem:[%s849 + $0x48] sm:$0xff]
        %v857 = vld [vmem:[%s849 + $0x50] sm:$0xff]
        %v858 = vld [vmem:[%s849 + $0x60] sm:$0xff]
        %v859 = vld [vmem:[%s849 + $0x68] sm:$0xff]
        %v860 = vld [vmem:[%s849 + $0x78] sm:$0xff]
        %v861 = vld [vmem:[%s849 + $0x80] sm:$0xff]
        %v862 = vld [vmem:[%s849 + $0x90] sm:$0xff]
        %v863 = vld [vmem:[%s849 + $0x98] sm:$0xff]
        %v864 = vld [vmem:[%s849 + $0xa8] sm:$0xff]
        %v865 = vld [vmem:[%s849 + $0xb0] sm:$0xff]
        %v866 = vld [vmem:[%s849 + $0xc0] sm:$0xff]
        %v867 = vld [vmem:[%s849 + $0xc8] sm:$0xff]
        %v868 = vld [vmem:[%s849 + $0xd8] sm:$0xff]
        %v869 = vld [vmem:[%s849 + $0xe0] sm:$0xff]
        %v870 = vld [vmem:[%s849 + $0xf0] sm:$0xff]
        %v871 = vld [vmem:[%s849 + $0xf8] sm:$0xff]
        %v872 = vld [vmem:[%s849 + $0x108] sm:$0xff]
        %v873 = vld [vmem:[%s849 + $0x110] sm:$0xff]
        %v874 = vld [vmem:[%s849 + $0x120] sm:$0xff]
        %v875 = vld [vmem:[%s849 + $0x128] sm:$0xff]
        %v876 = vld [vmem:[%s849 + $0x138] sm:$0xff]
        %v877 = vld [vmem:[%s849 + $0x140] sm:$0xff]
        %v878 = vld [vmem:[%s849 + $0x150] sm:$0xff]
        %v879 = vld [vmem:[%s849 + $0x158] sm:$0xff]
        %v880 = vld [vmem:[%s849 + $0x168] sm:$0xff]
        %v881 = vld [vmem:[%s849 + $0x170] sm:$0xff]
        %882 = vst [vmem:[#allocation3 + $0x30] sm:$0xff] %v850
        %883 = vst [vmem:[#allocation3 + $0x78] sm:$0xff] %v851
        %884 = vst [vmem:[#allocation3 + $0xc0] sm:$0xff] %v852
        %885 = vst [vmem:[#allocation3 + $0x108] sm:$0xff] %v853
        %886 = vst [vmem:[#allocation3 + $0x150] sm:$0xff] %v854
        %887 = vst [vmem:[#allocation3 + $0x198] sm:$0xff] %v855
        %888 = vst [vmem:[#allocation3 + $0x1e0] sm:$0xff] %v856
        %889 = vst [vmem:[#allocation3 + $0x228] sm:$0xff] %v857
        %890 = vst [vmem:[#allocation3 + $0x270] sm:$0xff] %v858
        %891 = vst [vmem:[#allocation3 + $0x2b8] sm:$0xff] %v859
        %892 = vst [vmem:[#allocation3 + $0x300] sm:$0xff] %v860
        %893 = vst [vmem:[#allocation3 + $0x348] sm:$0xff] %v861
        %894 = vst [vmem:[#allocation3 + $0x390] sm:$0xff] %v862
        %895 = vst [vmem:[#allocation3 + $0x3d8] sm:$0xff] %v863
        %896 = vst [vmem:[#allocation3 + $0x420] sm:$0xff] %v864
        %897 = vst [vmem:[#allocation3 + $0x468] sm:$0xff] %v865
        %898 = vst [vmem:[#allocation3 + $0x4b0] sm:$0xff] %v866
        %899 = vst [vmem:[#allocation3 + $0x4f8] sm:$0xff] %v867
        %900 = vst [vmem:[#allocation3 + $0x540] sm:$0xff] %v868
        %901 = vst [vmem:[#allocation3 + $0x588] sm:$0xff] %v869
        %902 = vst [vmem:[#allocation3 + $0x5d0] sm:$0xff] %v870
        %903 = vst [vmem:[#allocation3 + $0x618] sm:$0xff] %v871
        %904 = vst [vmem:[#allocation3 + $0x660] sm:$0xff] %v872
        %905 = vst [vmem:[#allocation3 + $0x6a8] sm:$0xff] %v873
        %906 = vst [vmem:[#allocation3 + $0x6f0] sm:$0xff] %v874
        %907 = vst [vmem:[#allocation3 + $0x738] sm:$0xff] %v875
        %908 = vst [vmem:[#allocation3 + $0x780] sm:$0xff] %v876
        %909 = vst [vmem:[#allocation3 + $0x7c8] sm:$0xff] %v877
        %910 = vst [vmem:[#allocation3 + $0x810] sm:$0xff] %v878
        %911 = vst [vmem:[#allocation3 + $0x858] sm:$0xff] %v879
        %912 = vst [vmem:[#allocation3 + $0x8a0] sm:$0xff] %v880
        %913 = vst [vmem:[#allocation3 + $0x8e8] sm:$0xff] %v881
        %v914 = vld [vmem:[%s849 + $0x1] sm:$0xff]
        %v915 = vld [vmem:[%s849 + $0x9] sm:$0xff]
        %v916 = vld [vmem:[%s849 + $0x19] sm:$0xff]
        %v917 = vld [vmem:[%s849 + $0x21] sm:$0xff]
        %v918 = vld [vmem:[%s849 + $0x31] sm:$0xff]
        %v919 = vld [vmem:[%s849 + $0x39] sm:$0xff]
        %v920 = vld [vmem:[%s849 + $0x49] sm:$0xff]
        %v921 = vld [vmem:[%s849 + $0x51] sm:$0xff]
        %v922 = vld [vmem:[%s849 + $0x61] sm:$0xff]
        %v923 = vld [vmem:[%s849 + $0x69] sm:$0xff]
        %v924 = vld [vmem:[%s849 + $0x79] sm:$0xff]
        %v925 = vld [vmem:[%s849 + $0x81] sm:$0xff]
        %v926 = vld [vmem:[%s849 + $0x91] sm:$0xff]
        %v927 = vld [vmem:[%s849 + $0x99] sm:$0xff]
        %v928 = vld [vmem:[%s849 + $0xa9] sm:$0xff]
        %v929 = vld [vmem:[%s849 + $0xb1] sm:$0xff]
        %v930 = vld [vmem:[%s849 + $0xc1] sm:$0xff]
        %v931 = vld [vmem:[%s849 + $0xc9] sm:$0xff]
        %v932 = vld [vmem:[%s849 + $0xd9] sm:$0xff]
        %v933 = vld [vmem:[%s849 + $0xe1] sm:$0xff]
        %v934 = vld [vmem:[%s849 + $0xf1] sm:$0xff]
        %v935 = vld [vmem:[%s849 + $0xf9] sm:$0xff]
        %v936 = vld [vmem:[%s849 + $0x109] sm:$0xff]
        %v937 = vld [vmem:[%s849 + $0x111] sm:$0xff]
        %v938 = vld [vmem:[%s849 + $0x121] sm:$0xff]
        %v939 = vld [vmem:[%s849 + $0x129] sm:$0xff]
        %v940 = vld [vmem:[%s849 + $0x139] sm:$0xff]
        %v941 = vld [vmem:[%s849 + $0x141] sm:$0xff]
        %v942 = vld [vmem:[%s849 + $0x151] sm:$0xff]
        %v943 = vld [vmem:[%s849 + $0x159] sm:$0xff]
        %v944 = vld [vmem:[%s849 + $0x169] sm:$0xff]
        %v945 = vld [vmem:[%s849 + $0x171] sm:$0xff]
        %946 = vst [vmem:[#allocation3 + $0x38] sm:$0xff] %v914
        %947 = vst [vmem:[#allocation3 + $0x80] sm:$0xff] %v915
        %948 = vst [vmem:[#allocation3 + $0xc8] sm:$0xff] %v916
        %949 = vst [vmem:[#allocation3 + $0x110] sm:$0xff] %v917
        %950 = vst [vmem:[#allocation3 + $0x158] sm:$0xff] %v918
        %951 = vst [vmem:[#allocation3 + $0x1a0] sm:$0xff] %v919
        %952 = vst [vmem:[#allocation3 + $0x1e8] sm:$0xff] %v920
        %953 = vst [vmem:[#allocation3 + $0x230] sm:$0xff] %v921
        %954 = vst [vmem:[#allocation3 + $0x278] sm:$0xff] %v922
        %955 = vst [vmem:[#allocation3 + $0x2c0] sm:$0xff] %v923
        %956 = vst [vmem:[#allocation3 + $0x308] sm:$0xff] %v924
        %957 = vst [vmem:[#allocation3 + $0x350] sm:$0xff] %v925
        %958 = vst [vmem:[#allocation3 + $0x398] sm:$0xff] %v926
        %959 = vst [vmem:[#allocation3 + $0x3e0] sm:$0xff] %v927
        %960 = vst [vmem:[#allocation3 + $0x428] sm:$0xff] %v928
        %961 = vst [vmem:[#allocation3 + $0x470] sm:$0xff] %v929
        %962 = vst [vmem:[#allocation3 + $0x4b8] sm:$0xff] %v930
        %963 = vst [vmem:[#allocation3 + $0x500] sm:$0xff] %v931
        %964 = vst [vmem:[#allocation3 + $0x548] sm:$0xff] %v932
        %965 = vst [vmem:[#allocation3 + $0x590] sm:$0xff] %v933
        %966 = vst [vmem:[#allocation3 + $0x5d8] sm:$0xff] %v934
        %967 = vst [vmem:[#allocation3 + $0x620] sm:$0xff] %v935
        %968 = vst [vmem:[#allocation3 + $0x668] sm:$0xff] %v936
        %969 = vst [vmem:[#allocation3 + $0x6b0] sm:$0xff] %v937
        %970 = vst [vmem:[#allocation3 + $0x6f8] sm:$0xff] %v938
        %971 = vst [vmem:[#allocation3 + $0x740] sm:$0xff] %v939
        %972 = vst [vmem:[#allocation3 + $0x788] sm:$0xff] %v940
        %973 = vst [vmem:[#allocation3 + $0x7d0] sm:$0xff] %v941
        %974 = vst [vmem:[#allocation3 + $0x818] sm:$0xff] %v942
        %975 = vst [vmem:[#allocation3 + $0x860] sm:$0xff] %v943
        %976 = vst [vmem:[#allocation3 + $0x8a8] sm:$0xff] %v944
        %977 = vst [vmem:[#allocation3 + $0x8f0] sm:$0xff] %v945
        %v978 = vld [vmem:[%s849 + $0x2] sm:$0xff]
        %v979 = vld [vmem:[%s849 + $0xa] sm:$0xff]
        %v980 = vld [vmem:[%s849 + $0x1a] sm:$0xff]
        %v981 = vld [vmem:[%s849 + $0x22] sm:$0xff]
        %v982 = vld [vmem:[%s849 + $0x32] sm:$0xff]
        %v983 = vld [vmem:[%s849 + $0x3a] sm:$0xff]
        %v984 = vld [vmem:[%s849 + $0x4a] sm:$0xff]
        %v985 = vld [vmem:[%s849 + $0x52] sm:$0xff]
        %v986 = vld [vmem:[%s849 + $0x62] sm:$0xff]
        %v987 = vld [vmem:[%s849 + $0x6a] sm:$0xff]
        %v988 = vld [vmem:[%s849 + $0x7a] sm:$0xff]
        %v989 = vld [vmem:[%s849 + $0x82] sm:$0xff]
        %v990 = vld [vmem:[%s849 + $0x92] sm:$0xff]
        %v991 = vld [vmem:[%s849 + $0x9a] sm:$0xff]
        %v992 = vld [vmem:[%s849 + $0xaa] sm:$0xff]
        %v993 = vld [vmem:[%s849 + $0xb2] sm:$0xff]
        %v994 = vld [vmem:[%s849 + $0xc2] sm:$0xff]
        %v995 = vld [vmem:[%s849 + $0xca] sm:$0xff]
        %v996 = vld [vmem:[%s849 + $0xda] sm:$0xff]
        %v997 = vld [vmem:[%s849 + $0xe2] sm:$0xff]
        %v998 = vld [vmem:[%s849 + $0xf2] sm:$0xff]
        %v999 = vld [vmem:[%s849 + $0xfa] sm:$0xff]
        %v1000 = vld [vmem:[%s849 + $0x10a] sm:$0xff]
        %v1001 = vld [vmem:[%s849 + $0x112] sm:$0xff]
        %v1002 = vld [vmem:[%s849 + $0x122] sm:$0xff]
        %v1003 = vld [vmem:[%s849 + $0x12a] sm:$0xff]
        %v1004 = vld [vmem:[%s849 + $0x13a] sm:$0xff]
        %v1005 = vld [vmem:[%s849 + $0x142] sm:$0xff]
        %v1006 = vld [vmem:[%s849 + $0x152] sm:$0xff]
        %v1007 = vld [vmem:[%s849 + $0x15a] sm:$0xff]
        %v1008 = vld [vmem:[%s849 + $0x16a] sm:$0xff]
        %v1009 = vld [vmem:[%s849 + $0x172] sm:$0xff]
        %1010 = vst [vmem:[#allocation3 + $0x40] sm:$0xff] %v978
        %1011 = vst [vmem:[#allocation3 + $0x88] sm:$0xff] %v979
        %1012 = vst [vmem:[#allocation3 + $0xd0] sm:$0xff] %v980
        %1013 = vst [vmem:[#allocation3 + $0x118] sm:$0xff] %v981
        %1014 = vst [vmem:[#allocation3 + $0x160] sm:$0xff] %v982
        %1015 = vst [vmem:[#allocation3 + $0x1a8] sm:$0xff] %v983
        %1016 = vst [vmem:[#allocation3 + $0x1f0] sm:$0xff] %v984
        %1017 = vst [vmem:[#allocation3 + $0x238] sm:$0xff] %v985
        %1018 = vst [vmem:[#allocation3 + $0x280] sm:$0xff] %v986
        %1019 = vst [vmem:[#allocation3 + $0x2c8] sm:$0xff] %v987
        %1020 = vst [vmem:[#allocation3 + $0x310] sm:$0xff] %v988
        %1021 = vst [vmem:[#allocation3 + $0x358] sm:$0xff] %v989
        %1022 = vst [vmem:[#allocation3 + $0x3a0] sm:$0xff] %v990
        %1023 = vst [vmem:[#allocation3 + $0x3e8] sm:$0xff] %v991
        %1024 = vst [vmem:[#allocation3 + $0x430] sm:$0xff] %v992
        %1025 = vst [vmem:[#allocation3 + $0x478] sm:$0xff] %v993
        %1026 = vst [vmem:[#allocation3 + $0x4c0] sm:$0xff] %v994
        %1027 = vst [vmem:[#allocation3 + $0x508] sm:$0xff] %v995
        %1028 = vst [vmem:[#allocation3 + $0x550] sm:$0xff] %v996
        %1029 = vst [vmem:[#allocation3 + $0x598] sm:$0xff] %v997
        %1030 = vst [vmem:[#allocation3 + $0x5e0] sm:$0xff] %v998
        %1031 = vst [vmem:[#allocation3 + $0x628] sm:$0xff] %v999
        %1032 = vst [vmem:[#allocation3 + $0x670] sm:$0xff] %v1000
        %1033 = vst [vmem:[#allocation3 + $0x6b8] sm:$0xff] %v1001
        %1034 = vst [vmem:[#allocation3 + $0x700] sm:$0xff] %v1002
        %1035 = vst [vmem:[#allocation3 + $0x748] sm:$0xff] %v1003
        %1036 = vst [vmem:[#allocation3 + $0x790] sm:$0xff] %v1004
        %1037 = vst [vmem:[#allocation3 + $0x7d8] sm:$0xff] %v1005
        %1038 = vst [vmem:[#allocation3 + $0x820] sm:$0xff] %v1006
        %1039 = vst [vmem:[#allocation3 + $0x868] sm:$0xff] %v1007
        %1040 = vst [vmem:[#allocation3 + $0x8b0] sm:$0xff] %v1008
        %1041 = vst [vmem:[#allocation3 + $0x8f8] sm:$0xff] %v1009
        %v1042 = vld [vmem:[#allocation3] sm:$0xff]
        %v1043 = vld [vmem:[#allocation3 + $0x8] sm:$0xff]
        %v1044 = vld [vmem:[#allocation3 + $0x10] sm:$0xff]
        %v1045 = vld [vmem:[#allocation3 + $0x18] sm:$0xff]
        %v1046 = vld [vmem:[#allocation3 + $0x20] sm:$0xff]
        %v1047 = vld [vmem:[#allocation3 + $0x28] sm:$0xff]
        %v1048 = vld [vmem:[#allocation3 + $0x30] sm:$0xff]
        %v1049 = vld [vmem:[#allocation3 + $0x38] sm:$0xff]
        %v1050 = vld [vmem:[#allocation3 + $0x40] sm:$0xff]
        %v1051 = vld [vmem:[#allocation3 + $0x48] sm:$0xff]
        %v1052 = vld [vmem:[#allocation3 + $0x50] sm:$0xff]
        %v1053 = vld [vmem:[#allocation3 + $0x58] sm:$0xff]
        %v1054 = vld [vmem:[#allocation3 + $0x60] sm:$0xff]
        %v1055 = vld [vmem:[#allocation3 + $0x68] sm:$0xff]
        %v1056 = vld [vmem:[#allocation3 + $0x70] sm:$0xff]
        %v1057 = vld [vmem:[#allocation3 + $0x78] sm:$0xff]
        %v1058 = vld [vmem:[#allocation3 + $0x80] sm:$0xff]
        %v1059 = vld [vmem:[#allocation3 + $0x88] sm:$0xff]
        %v1060 = vld [vmem:[#allocation3 + $0x90] sm:$0xff]
        %v1061 = vld [vmem:[#allocation3 + $0x98] sm:$0xff]
        %v1062 = vld [vmem:[#allocation3 + $0xa0] sm:$0xff]
        %v1063 = vld [vmem:[#allocation3 + $0xa8] sm:$0xff]
        %v1064 = vld [vmem:[#allocation3 + $0xb0] sm:$0xff]
        %v1065 = vld [vmem:[#allocation3 + $0xb8] sm:$0xff]
        %v1066 = vld [vmem:[#allocation3 + $0xc0] sm:$0xff]
        %v1067 = vld [vmem:[#allocation3 + $0xc8] sm:$0xff]
        %v1068 = vld [vmem:[#allocation3 + $0xd0] sm:$0xff]
        %v1069 = vld [vmem:[#allocation3 + $0xd8] sm:$0xff]
        %v1070 = vld [vmem:[#allocation3 + $0xe0] sm:$0xff]
        %v1071 = vld [vmem:[#allocation3 + $0xe8] sm:$0xff]
        %v1072 = vld [vmem:[#allocation3 + $0xf0] sm:$0xff]
        %v1073 = vld [vmem:[#allocation3 + $0xf8] sm:$0xff]
        %v1074 = vld [vmem:[#allocation3 + $0x100] sm:$0xff]
        %v1075 = vld [vmem:[#allocation3 + $0x108] sm:$0xff]
        %v1076 = vld [vmem:[#allocation3 + $0x110] sm:$0xff]
        %v1077 = vld [vmem:[#allocation3 + $0x118] sm:$0xff]
        %v1078 = vld [vmem:[#allocation3 + $0x120] sm:$0xff]
        %v1079 = vld [vmem:[#allocation3 + $0x128] sm:$0xff]
        %v1080 = vld [vmem:[#allocation3 + $0x130] sm:$0xff]
        %v1081 = vld [vmem:[#allocation3 + $0x138] sm:$0xff]
        %v1082 = vld [vmem:[#allocation3 + $0x140] sm:$0xff]
        %v1083 = vld [vmem:[#allocation3 + $0x148] sm:$0xff]
        %v1084 = vld [vmem:[#allocation3 + $0x150] sm:$0xff]
        %v1085 = vld [vmem:[#allocation3 + $0x158] sm:$0xff]
        %v1086 = vld [vmem:[#allocation3 + $0x160] sm:$0xff]
        %v1087 = vld [vmem:[#allocation3 + $0x168] sm:$0xff]
        %v1088 = vld [vmem:[#allocation3 + $0x170] sm:$0xff]
        %v1089 = vld [vmem:[#allocation3 + $0x178] sm:$0xff]
        %v1090 = vld [vmem:[#allocation3 + $0x180] sm:$0xff]
        %v1091 = vld [vmem:[#allocation3 + $0x188] sm:$0xff]
        %v1092 = vld [vmem:[#allocation3 + $0x190] sm:$0xff]
        %v1093 = vld [vmem:[#allocation3 + $0x198] sm:$0xff]
        %v1094 = vld [vmem:[#allocation3 + $0x1a0] sm:$0xff]
        %v1095 = vld [vmem:[#allocation3 + $0x1a8] sm:$0xff]
        %v1096 = vld [vmem:[#allocation3 + $0x1b0] sm:$0xff]
        %v1097 = vld [vmem:[#allocation3 + $0x1b8] sm:$0xff]
        %v1098 = vld [vmem:[#allocation3 + $0x1c0] sm:$0xff]
        %v1099 = vld [vmem:[#allocation3 + $0x1c8] sm:$0xff]
        %v1100 = vld [vmem:[#allocation3 + $0x1d0] sm:$0xff]
        %v1101 = vld [vmem:[#allocation3 + $0x1d8] sm:$0xff]
        %v1102 = vld [vmem:[#allocation3 + $0x1e0] sm:$0xff]
        %v1103 = vld [vmem:[#allocation3 + $0x1e8] sm:$0xff]
        %v1104 = vld [vmem:[#allocation3 + $0x1f0] sm:$0xff]
        %v1105 = vld [vmem:[#allocation3 + $0x1f8] sm:$0xff]
        %v1106 = vld [vmem:[#allocation3 + $0x200] sm:$0xff]
        %v1107 = vld [vmem:[#allocation3 + $0x208] sm:$0xff]
        %v1108 = vld [vmem:[#allocation3 + $0x210] sm:$0xff]
        %v1109 = vld [vmem:[#allocation3 + $0x218] sm:$0xff]
        %v1110 = vld [vmem:[#allocation3 + $0x220] sm:$0xff]
        %v1111 = vld [vmem:[#allocation3 + $0x228] sm:$0xff]
        %v1112 = vld [vmem:[#allocation3 + $0x230] sm:$0xff]
        %v1113 = vld [vmem:[#allocation3 + $0x238] sm:$0xff]
        %v1114 = vld [vmem:[#allocation3 + $0x240] sm:$0xff]
        %v1115 = vld [vmem:[#allocation3 + $0x248] sm:$0xff]
        %v1116 = vld [vmem:[#allocation3 + $0x250] sm:$0xff]
        %v1117 = vld [vmem:[#allocation3 + $0x258] sm:$0xff]
        %v1118 = vld [vmem:[#allocation3 + $0x260] sm:$0xff]
        %v1119 = vld [vmem:[#allocation3 + $0x268] sm:$0xff]
        %v1120 = vld [vmem:[#allocation3 + $0x270] sm:$0xff]
        %v1121 = vld [vmem:[#allocation3 + $0x278] sm:$0xff]
        %v1122 = vld [vmem:[#allocation3 + $0x280] sm:$0xff]
        %v1123 = vld [vmem:[#allocation3 + $0x288] sm:$0xff]
        %v1124 = vld [vmem:[#allocation3 + $0x290] sm:$0xff]
        %v1125 = vld [vmem:[#allocation3 + $0x298] sm:$0xff]
        %v1126 = vld [vmem:[#allocation3 + $0x2a0] sm:$0xff]
        %v1127 = vld [vmem:[#allocation3 + $0x2a8] sm:$0xff]
        %v1128 = vld [vmem:[#allocation3 + $0x2b0] sm:$0xff]
        %v1129 = vld [vmem:[#allocation3 + $0x2b8] sm:$0xff]
        %v1130 = vld [vmem:[#allocation3 + $0x2c0] sm:$0xff]
        %v1131 = vld [vmem:[#allocation3 + $0x2c8] sm:$0xff]
        %v1132 = vld [vmem:[#allocation3 + $0x2d0] sm:$0xff]
        %v1133 = vld [vmem:[#allocation3 + $0x2d8] sm:$0xff]
        %v1134 = vld [vmem:[#allocation3 + $0x2e0] sm:$0xff]
        %v1135 = vld [vmem:[#allocation3 + $0x2e8] sm:$0xff]
        %v1136 = vld [vmem:[#allocation3 + $0x2f0] sm:$0xff]
        %v1137 = vld [vmem:[#allocation3 + $0x2f8] sm:$0xff]
        %v1138 = vld [vmem:[#allocation3 + $0x300] sm:$0xff]
        %v1139 = vld [vmem:[#allocation3 + $0x308] sm:$0xff]
        %v1140 = vld [vmem:[#allocation3 + $0x310] sm:$0xff]
        %v1141 = vld [vmem:[#allocation3 + $0x318] sm:$0xff]
        %v1142 = vld [vmem:[#allocation3 + $0x320] sm:$0xff]
        %v1143 = vld [vmem:[#allocation3 + $0x328] sm:$0xff]
        %v1144 = vld [vmem:[#allocation3 + $0x330] sm:$0xff]
        %v1145 = vld [vmem:[#allocation3 + $0x338] sm:$0xff]
        %v1146 = vld [vmem:[#allocation3 + $0x340] sm:$0xff]
        %v1147 = vld [vmem:[#allocation3 + $0x348] sm:$0xff]
        %v1148 = vld [vmem:[#allocation3 + $0x350] sm:$0xff]
        %v1149 = vld [vmem:[#allocation3 + $0x358] sm:$0xff]
        %v1150 = vld [vmem:[#allocation3 + $0x360] sm:$0xff]
        %v1151 = vld [vmem:[#allocation3 + $0x368] sm:$0xff]
        %v1152 = vld [vmem:[#allocation3 + $0x370] sm:$0xff]
        %v1153 = vld [vmem:[#allocation3 + $0x378] sm:$0xff]
        %v1154 = vld [vmem:[#allocation3 + $0x380] sm:$0xff]
        %v1155 = vld [vmem:[#allocation3 + $0x388] sm:$0xff]
        %v1156 = vld [vmem:[#allocation3 + $0x390] sm:$0xff]
        %v1157 = vld [vmem:[#allocation3 + $0x398] sm:$0xff]
        %v1158 = vld [vmem:[#allocation3 + $0x3a0] sm:$0xff]
        %v1159 = vld [vmem:[#allocation3 + $0x3a8] sm:$0xff]
        %v1160 = vld [vmem:[#allocation3 + $0x3b0] sm:$0xff]
        %v1161 = vld [vmem:[#allocation3 + $0x3b8] sm:$0xff]
        %v1162 = vld [vmem:[#allocation3 + $0x3c0] sm:$0xff]
        %v1163 = vld [vmem:[#allocation3 + $0x3c8] sm:$0xff]
        %v1164 = vld [vmem:[#allocation3 + $0x3d0] sm:$0xff]
        %v1165 = vld [vmem:[#allocation3 + $0x3d8] sm:$0xff]
        %v1166 = vld [vmem:[#allocation3 + $0x3e0] sm:$0xff]
        %v1167 = vld [vmem:[#allocation3 + $0x3e8] sm:$0xff]
        %v1168 = vld [vmem:[#allocation3 + $0x3f0] sm:$0xff]
        %v1169 = vld [vmem:[#allocation3 + $0x3f8] sm:$0xff]
        %v1170 = vld [vmem:[#allocation3 + $0x400] sm:$0xff]
        %v1171 = vld [vmem:[#allocation3 + $0x408] sm:$0xff]
        %v1172 = vld [vmem:[#allocation3 + $0x410] sm:$0xff]
        %v1173 = vld [vmem:[#allocation3 + $0x418] sm:$0xff]
        %v1174 = vld [vmem:[#allocation3 + $0x420] sm:$0xff]
        %v1175 = vld [vmem:[#allocation3 + $0x428] sm:$0xff]
        %v1176 = vld [vmem:[#allocation3 + $0x430] sm:$0xff]
        %v1177 = vld [vmem:[#allocation3 + $0x438] sm:$0xff]
        %v1178 = vld [vmem:[#allocation3 + $0x440] sm:$0xff]
        %v1179 = vld [vmem:[#allocation3 + $0x448] sm:$0xff]
        %v1180 = vld [vmem:[#allocation3 + $0x450] sm:$0xff]
        %v1181 = vld [vmem:[#allocation3 + $0x458] sm:$0xff]
        %v1182 = vld [vmem:[#allocation3 + $0x460] sm:$0xff]
        %v1183 = vld [vmem:[#allocation3 + $0x468] sm:$0xff]
        %v1184 = vld [vmem:[#allocation3 + $0x470] sm:$0xff]
        %v1185 = vld [vmem:[#allocation3 + $0x478] sm:$0xff]
        %v1186 = vld [vmem:[#allocation3 + $0x480] sm:$0xff]
        %v1187 = vld [vmem:[#allocation3 + $0x488] sm:$0xff]
        %v1188 = vld [vmem:[#allocation3 + $0x490] sm:$0xff]
        %v1189 = vld [vmem:[#allocation3 + $0x498] sm:$0xff]
        %v1190 = vld [vmem:[#allocation3 + $0x4a0] sm:$0xff]
        %v1191 = vld [vmem:[#allocation3 + $0x4a8] sm:$0xff]
        %v1192 = vld [vmem:[#allocation3 + $0x4b0] sm:$0xff]
        %v1193 = vld [vmem:[#allocation3 + $0x4b8] sm:$0xff]
        %v1194 = vld [vmem:[#allocation3 + $0x4c0] sm:$0xff]
        %v1195 = vld [vmem:[#allocation3 + $0x4c8] sm:$0xff]
        %v1196 = vld [vmem:[#allocation3 + $0x4d0] sm:$0xff]
        %v1197 = vld [vmem:[#allocation3 + $0x4d8] sm:$0xff]
        %v1198 = vld [vmem:[#allocation3 + $0x4e0] sm:$0xff]
        %v1199 = vld [vmem:[#allocation3 + $0x4e8] sm:$0xff]
        %v1200 = vld [vmem:[#allocation3 + $0x4f0] sm:$0xff]
        %v1201 = vld [vmem:[#allocation3 + $0x4f8] sm:$0xff]
        %v1202 = vld [vmem:[#allocation3 + $0x500] sm:$0xff]
        %v1203 = vld [vmem:[#allocation3 + $0x508] sm:$0xff]
        %v1204 = vld [vmem:[#allocation3 + $0x510] sm:$0xff]
        %v1205 = vld [vmem:[#allocation3 + $0x518] sm:$0xff]
        %v1206 = vld [vmem:[#allocation3 + $0x520] sm:$0xff]
        %v1207 = vld [vmem:[#allocation3 + $0x528] sm:$0xff]
        %v1208 = vld [vmem:[#allocation3 + $0x530] sm:$0xff]
        %v1209 = vld [vmem:[#allocation3 + $0x538] sm:$0xff]
        %v1210 = vld [vmem:[#allocation3 + $0x540] sm:$0xff]
        %v1211 = vld [vmem:[#allocation3 + $0x548] sm:$0xff]
        %v1212 = vld [vmem:[#allocation3 + $0x550] sm:$0xff]
        %v1213 = vld [vmem:[#allocation3 + $0x558] sm:$0xff]
        %v1214 = vld [vmem:[#allocation3 + $0x560] sm:$0xff]
        %v1215 = vld [vmem:[#allocation3 + $0x568] sm:$0xff]
        %v1216 = vld [vmem:[#allocation3 + $0x570] sm:$0xff]
        %v1217 = vld [vmem:[#allocation3 + $0x578] sm:$0xff]
        %v1218 = vld [vmem:[#allocation3 + $0x580] sm:$0xff]
        %v1219 = vld [vmem:[#allocation3 + $0x588] sm:$0xff]
        %v1220 = vld [vmem:[#allocation3 + $0x590] sm:$0xff]
        %v1221 = vld [vmem:[#allocation3 + $0x598] sm:$0xff]
        %v1222 = vld [vmem:[#allocation3 + $0x5a0] sm:$0xff]
        %v1223 = vld [vmem:[#allocation3 + $0x5a8] sm:$0xff]
        %v1224 = vld [vmem:[#allocation3 + $0x5b0] sm:$0xff]
        %v1225 = vld [vmem:[#allocation3 + $0x5b8] sm:$0xff]
        %v1226 = vld [vmem:[#allocation3 + $0x5c0] sm:$0xff]
        %v1227 = vld [vmem:[#allocation3 + $0x5c8] sm:$0xff]
        %v1228 = vld [vmem:[#allocation3 + $0x5d0] sm:$0xff]
        %v1229 = vld [vmem:[#allocation3 + $0x5d8] sm:$0xff]
        %v1230 = vld [vmem:[#allocation3 + $0x5e0] sm:$0xff]
        %v1231 = vld [vmem:[#allocation3 + $0x5e8] sm:$0xff]
        %v1232 = vld [vmem:[#allocation3 + $0x5f0] sm:$0xff]
        %v1233 = vld [vmem:[#allocation3 + $0x5f8] sm:$0xff]
        %v1234 = vld [vmem:[#allocation3 + $0x600] sm:$0xff]
        %v1235 = vld [vmem:[#allocation3 + $0x608] sm:$0xff]
        %v1236 = vld [vmem:[#allocation3 + $0x610] sm:$0xff]
        %v1237 = vld [vmem:[#allocation3 + $0x618] sm:$0xff]
        %v1238 = vld [vmem:[#allocation3 + $0x620] sm:$0xff]
        %v1239 = vld [vmem:[#allocation3 + $0x628] sm:$0xff]
        %v1240 = vld [vmem:[#allocation3 + $0x630] sm:$0xff]
        %v1241 = vld [vmem:[#allocation3 + $0x638] sm:$0xff]
        %v1242 = vld [vmem:[#allocation3 + $0x640] sm:$0xff]
        %v1243 = vld [vmem:[#allocation3 + $0x648] sm:$0xff]
        %v1244 = vld [vmem:[#allocation3 + $0x650] sm:$0xff]
        %v1245 = vld [vmem:[#allocation3 + $0x658] sm:$0xff]
        %v1246 = vld [vmem:[#allocation3 + $0x660] sm:$0xff]
        %v1247 = vld [vmem:[#allocation3 + $0x668] sm:$0xff]
        %v1248 = vld [vmem:[#allocation3 + $0x670] sm:$0xff]
        %v1249 = vld [vmem:[#allocation3 + $0x678] sm:$0xff]
        %v1250 = vld [vmem:[#allocation3 + $0x680] sm:$0xff]
        %v1251 = vld [vmem:[#allocation3 + $0x688] sm:$0xff]
        %v1252 = vld [vmem:[#allocation3 + $0x690] sm:$0xff]
        %v1253 = vld [vmem:[#allocation3 + $0x698] sm:$0xff]
        %v1254 = vld [vmem:[#allocation3 + $0x6a0] sm:$0xff]
        %v1255 = vld [vmem:[#allocation3 + $0x6a8] sm:$0xff]
        %v1256 = vld [vmem:[#allocation3 + $0x6b0] sm:$0xff]
        %v1257 = vld [vmem:[#allocation3 + $0x6b8] sm:$0xff]
        %v1258 = vld [vmem:[#allocation3 + $0x6c0] sm:$0xff]
        %v1259 = vld [vmem:[#allocation3 + $0x6c8] sm:$0xff]
        %v1260 = vld [vmem:[#allocation3 + $0x6d0] sm:$0xff]
        %v1261 = vld [vmem:[#allocation3 + $0x6d8] sm:$0xff]
        %v1262 = vld [vmem:[#allocation3 + $0x6e0] sm:$0xff]
        %v1263 = vld [vmem:[#allocation3 + $0x6e8] sm:$0xff]
        %v1264 = vld [vmem:[#allocation3 + $0x6f0] sm:$0xff]
        %v1265 = vld [vmem:[#allocation3 + $0x6f8] sm:$0xff]
        %v1266 = vld [vmem:[#allocation3 + $0x700] sm:$0xff]
        %v1267 = vld [vmem:[#allocation3 + $0x708] sm:$0xff]
        %v1268 = vld [vmem:[#allocation3 + $0x710] sm:$0xff]
        %v1269 = vld [vmem:[#allocation3 + $0x718] sm:$0xff]
        %v1270 = vld [vmem:[#allocation3 + $0x720] sm:$0xff]
        %v1271 = vld [vmem:[#allocation3 + $0x728] sm:$0xff]
        %v1272 = vld [vmem:[#allocation3 + $0x730] sm:$0xff]
        %v1273 = vld [vmem:[#allocation3 + $0x738] sm:$0xff]
        %v1274 = vld [vmem:[#allocation3 + $0x740] sm:$0xff]
        %v1275 = vld [vmem:[#allocation3 + $0x748] sm:$0xff]
        %v1276 = vld [vmem:[#allocation3 + $0x750] sm:$0xff]
        %v1277 = vld [vmem:[#allocation3 + $0x758] sm:$0xff]
        %v1278 = vld [vmem:[#allocation3 + $0x760] sm:$0xff]
        %v1279 = vld [vmem:[#allocation3 + $0x768] sm:$0xff]
        %v1280 = vld [vmem:[#allocation3 + $0x770] sm:$0xff]
        %v1281 = vld [vmem:[#allocation3 + $0x778] sm:$0xff]
        %v1282 = vld [vmem:[#allocation3 + $0x780] sm:$0xff]
        %v1283 = vld [vmem:[#allocation3 + $0x788] sm:$0xff]
        %v1284 = vld [vmem:[#allocation3 + $0x790] sm:$0xff]
        %v1285 = vld [vmem:[#allocation3 + $0x798] sm:$0xff]
        %v1286 = vld [vmem:[#allocation3 + $0x7a0] sm:$0xff]
        %v1287 = vld [vmem:[#allocation3 + $0x7a8] sm:$0xff]
        %v1288 = vld [vmem:[#allocation3 + $0x7b0] sm:$0xff]
        %v1289 = vld [vmem:[#allocation3 + $0x7b8] sm:$0xff]
        %v1290 = vld [vmem:[#allocation3 + $0x7c0] sm:$0xff]
        %v1291 = vld [vmem:[#allocation3 + $0x7c8] sm:$0xff]
        %v1292 = vld [vmem:[#allocation3 + $0x7d0] sm:$0xff]
        %v1293 = vld [vmem:[#allocation3 + $0x7d8] sm:$0xff]
        %v1294 = vld [vmem:[#allocation3 + $0x7e0] sm:$0xff]
        %v1295 = vld [vmem:[#allocation3 + $0x7e8] sm:$0xff]
        %v1296 = vld [vmem:[#allocation3 + $0x7f0] sm:$0xff]
        %v1297 = vld [vmem:[#allocation3 + $0x7f8] sm:$0xff]
        %v1298 = vld [vmem:[#allocation3 + $0x800] sm:$0xff]
        %v1299 = vld [vmem:[#allocation3 + $0x808] sm:$0xff]
        %v1300 = vld [vmem:[#allocation3 + $0x810] sm:$0xff]
        %v1301 = vld [vmem:[#allocation3 + $0x818] sm:$0xff]
        %v1302 = vld [vmem:[#allocation3 + $0x820] sm:$0xff]
        %v1303 = vld [vmem:[#allocation3 + $0x828] sm:$0xff]
        %v1304 = vld [vmem:[#allocation3 + $0x830] sm:$0xff]
        %v1305 = vld [vmem:[#allocation3 + $0x838] sm:$0xff]
        %v1306 = vld [vmem:[#allocation3 + $0x840] sm:$0xff]
        %v1307 = vld [vmem:[#allocation3 + $0x848] sm:$0xff]
        %v1308 = vld [vmem:[#allocation3 + $0x850] sm:$0xff]
        %v1309 = vld [vmem:[#allocation3 + $0x858] sm:$0xff]
        %v1310 = vld [vmem:[#allocation3 + $0x860] sm:$0xff]
        %v1311 = vld [vmem:[#allocation3 + $0x868] sm:$0xff]
        %v1312 = vld [vmem:[#allocation3 + $0x870] sm:$0xff]
        %v1313 = vld [vmem:[#allocation3 + $0x878] sm:$0xff]
        %v1314 = vld [vmem:[#allocation3 + $0x880] sm:$0xff]
        %v1315 = vld [vmem:[#allocation3 + $0x888] sm:$0xff]
        %v1316 = vld [vmem:[#allocation3 + $0x890] sm:$0xff]
        %v1317 = vld [vmem:[#allocation3 + $0x898] sm:$0xff]
        %v1318 = vld [vmem:[#allocation3 + $0x8a0] sm:$0xff]
        %v1319 = vld [vmem:[#allocation3 + $0x8a8] sm:$0xff]
        %v1320 = vld [vmem:[#allocation3 + $0x8b0] sm:$0xff]
        %v1321 = vld [vmem:[#allocation3 + $0x8b8] sm:$0xff]
        %v1322 = vld [vmem:[#allocation3 + $0x8c0] sm:$0xff]
        %v1323 = vld [vmem:[#allocation3 + $0x8c8] sm:$0xff]
        %v1324 = vld [vmem:[#allocation3 + $0x8d0] sm:$0xff]
        %v1325 = vld [vmem:[#allocation3 + $0x8d8] sm:$0xff]
        %v1326 = vld [vmem:[#allocation3 + $0x8e0] sm:$0xff]
        %v1327 = vld [vmem:[#allocation3 + $0x8e8] sm:$0xff]
        %v1328 = vld [vmem:[#allocation3 + $0x8f0] sm:$0xff]
        %v1329 = vld [vmem:[#allocation3 + $0x8f8] sm:$0xff]
        %v1330 = vld [vmem:[#allocation4] sm:$0xff]
        %v1331 = vld [vmem:[#allocation4 + $0x8] sm:$0xff]
        %v1332 = vld [vmem:[#allocation4 + $0x10] sm:$0xff]
        %v1333 = vld [vmem:[#allocation4 + $0x18] sm:$0xff]
        %v1334 = vld [vmem:[#allocation4 + $0x20] sm:$0xff]
        %v1335 = vld [vmem:[#allocation4 + $0x28] sm:$0xff]
        %v1336 = vld [vmem:[#allocation4 + $0x30] sm:$0xff]
        %v1337 = vld [vmem:[#allocation4 + $0x38] sm:$0xff]
        %v1338 = vld [vmem:[#allocation4 + $0x40] sm:$0xff]
        %v1339 = vld [vmem:[#allocation4 + $0x48] sm:$0xff]
        %v1340 = vld [vmem:[#allocation4 + $0x50] sm:$0xff]
        %v1341 = vld [vmem:[#allocation4 + $0x58] sm:$0xff]
        %v1342 = vld [vmem:[#allocation4 + $0x60] sm:$0xff]
        %v1343 = vld [vmem:[#allocation4 + $0x68] sm:$0xff]
        %v1344 = vld [vmem:[#allocation4 + $0x70] sm:$0xff]
        %v1345 = vld [vmem:[#allocation4 + $0x78] sm:$0xff]
        %v1346 = vld [vmem:[#allocation4 + $0x80] sm:$0xff]
        %v1347 = vld [vmem:[#allocation4 + $0x88] sm:$0xff]
        %v1348 = vld [vmem:[#allocation4 + $0x90] sm:$0xff]
        %v1349 = vld [vmem:[#allocation4 + $0x98] sm:$0xff]
        %v1350 = vld [vmem:[#allocation4 + $0xa0] sm:$0xff]
        %v1351 = vld [vmem:[#allocation4 + $0xa8] sm:$0xff]
        %v1352 = vld [vmem:[#allocation4 + $0xb0] sm:$0xff]
        %v1353 = vld [vmem:[#allocation4 + $0xb8] sm:$0xff]
        %v1354 = vld [vmem:[#allocation4 + $0xc0] sm:$0xff]
        %v1355 = vld [vmem:[#allocation4 + $0xc8] sm:$0xff]
        %v1356 = vld [vmem:[#allocation4 + $0xd0] sm:$0xff]
        %v1357 = vld [vmem:[#allocation4 + $0xd8] sm:$0xff]
        %v1358 = vld [vmem:[#allocation4 + $0xe0] sm:$0xff]
        %v1359 = vld [vmem:[#allocation4 + $0xe8] sm:$0xff]
        %v1360 = vld [vmem:[#allocation4 + $0xf0] sm:$0xff]
        %v1361 = vld [vmem:[#allocation4 + $0xf8] sm:$0xff]
        %v1362 = vld [vmem:[#allocation4 + $0x100] sm:$0xff]
        %v1363 = vld [vmem:[#allocation4 + $0x108] sm:$0xff]
        %v1364 = vld [vmem:[#allocation4 + $0x110] sm:$0xff]
        %v1365 = vld [vmem:[#allocation4 + $0x118] sm:$0xff]
        %v1366 = vld [vmem:[#allocation4 + $0x120] sm:$0xff]
        %v1367 = vld [vmem:[#allocation4 + $0x128] sm:$0xff]
        %v1368 = vld [vmem:[#allocation4 + $0x130] sm:$0xff]
        %v1369 = vld [vmem:[#allocation4 + $0x138] sm:$0xff]
        %v1370 = vld [vmem:[#allocation4 + $0x140] sm:$0xff]
        %v1371 = vld [vmem:[#allocation4 + $0x148] sm:$0xff]
        %v1372 = vld [vmem:[#allocation4 + $0x150] sm:$0xff]
        %v1373 = vld [vmem:[#allocation4 + $0x158] sm:$0xff]
        %v1374 = vld [vmem:[#allocation4 + $0x160] sm:$0xff]
        %v1375 = vld [vmem:[#allocation4 + $0x168] sm:$0xff]
        %v1376 = vld [vmem:[#allocation4 + $0x170] sm:$0xff]
        %v1377 = vld [vmem:[#allocation4 + $0x178] sm:$0xff]
        %v1378 = vld [vmem:[#allocation4 + $0x180] sm:$0xff]
        %v1379 = vld [vmem:[#allocation4 + $0x188] sm:$0xff]
        %v1380 = vld [vmem:[#allocation4 + $0x190] sm:$0xff]
        %v1381 = vld [vmem:[#allocation4 + $0x198] sm:$0xff]
        %v1382 = vld [vmem:[#allocation4 + $0x1a0] sm:$0xff]
        %v1383 = vld [vmem:[#allocation4 + $0x1a8] sm:$0xff]
        %v1384 = vld [vmem:[#allocation4 + $0x1b0] sm:$0xff]
        %v1385 = vld [vmem:[#allocation4 + $0x1b8] sm:$0xff]
        %v1386 = vld [vmem:[#allocation4 + $0x1c0] sm:$0xff]
        %v1387 = vld [vmem:[#allocation4 + $0x1c8] sm:$0xff]
        %v1388 = vld [vmem:[#allocation4 + $0x1d0] sm:$0xff]
        %v1389 = vld [vmem:[#allocation4 + $0x1d8] sm:$0xff]
        %v1390 = vld [vmem:[#allocation4 + $0x1e0] sm:$0xff]
        %v1391 = vld [vmem:[#allocation4 + $0x1e8] sm:$0xff]
        %v1392 = vld [vmem:[#allocation4 + $0x1f0] sm:$0xff]
        %v1393 = vld [vmem:[#allocation4 + $0x1f8] sm:$0xff]
        %v1394 = vld [vmem:[#allocation4 + $0x200] sm:$0xff]
        %v1395 = vld [vmem:[#allocation4 + $0x208] sm:$0xff]
        %v1396 = vld [vmem:[#allocation4 + $0x210] sm:$0xff]
        %v1397 = vld [vmem:[#allocation4 + $0x218] sm:$0xff]
        %v1398 = vld [vmem:[#allocation4 + $0x220] sm:$0xff]
        %v1399 = vld [vmem:[#allocation4 + $0x228] sm:$0xff]
        %v1400 = vld [vmem:[#allocation4 + $0x230] sm:$0xff]
        %v1401 = vld [vmem:[#allocation4 + $0x238] sm:$0xff]
        %v1402 = vld [vmem:[#allocation4 + $0x240] sm:$0xff]
        %v1403 = vld [vmem:[#allocation4 + $0x248] sm:$0xff]
        %v1404 = vld [vmem:[#allocation4 + $0x250] sm:$0xff]
        %v1405 = vld [vmem:[#allocation4 + $0x258] sm:$0xff]
        %v1406 = vld [vmem:[#allocation4 + $0x260] sm:$0xff]
        %v1407 = vld [vmem:[#allocation4 + $0x268] sm:$0xff]
        %v1408 = vld [vmem:[#allocation4 + $0x270] sm:$0xff]
        %v1409 = vld [vmem:[#allocation4 + $0x278] sm:$0xff]
        %v1410 = vld [vmem:[#allocation4 + $0x280] sm:$0xff]
        %v1411 = vld [vmem:[#allocation4 + $0x288] sm:$0xff]
        %v1412 = vld [vmem:[#allocation4 + $0x290] sm:$0xff]
        %v1413 = vld [vmem:[#allocation4 + $0x298] sm:$0xff]
        %v1414 = vld [vmem:[#allocation4 + $0x2a0] sm:$0xff]
        %v1415 = vld [vmem:[#allocation4 + $0x2a8] sm:$0xff]
        %v1416 = vld [vmem:[#allocation4 + $0x2b0] sm:$0xff]
        %v1417 = vld [vmem:[#allocation4 + $0x2b8] sm:$0xff]
        %v1418 = vld [vmem:[#allocation4 + $0x2c0] sm:$0xff]
        %v1419 = vld [vmem:[#allocation4 + $0x2c8] sm:$0xff]
        %v1420 = vld [vmem:[#allocation4 + $0x2d0] sm:$0xff]
        %v1421 = vld [vmem:[#allocation4 + $0x2d8] sm:$0xff]
        %v1422 = vld [vmem:[#allocation4 + $0x2e0] sm:$0xff]
        %v1423 = vld [vmem:[#allocation4 + $0x2e8] sm:$0xff]
        %v1424 = vld [vmem:[#allocation4 + $0x2f0] sm:$0xff]
        %v1425 = vld [vmem:[#allocation4 + $0x2f8] sm:$0xff]
        %v1426 = vld [vmem:[#allocation4 + $0x300] sm:$0xff]
        %v1427 = vld [vmem:[#allocation4 + $0x308] sm:$0xff]
        %v1428 = vld [vmem:[#allocation4 + $0x310] sm:$0xff]
        %v1429 = vld [vmem:[#allocation4 + $0x318] sm:$0xff]
        %v1430 = vld [vmem:[#allocation4 + $0x320] sm:$0xff]
        %v1431 = vld [vmem:[#allocation4 + $0x328] sm:$0xff]
        %v1432 = vld [vmem:[#allocation4 + $0x330] sm:$0xff]
        %v1433 = vld [vmem:[#allocation4 + $0x338] sm:$0xff]
        %v1434 = vld [vmem:[#allocation4 + $0x340] sm:$0xff]
        %v1435 = vld [vmem:[#allocation4 + $0x348] sm:$0xff]
        %v1436 = vld [vmem:[#allocation4 + $0x350] sm:$0xff]
        %v1437 = vld [vmem:[#allocation4 + $0x358] sm:$0xff]
        %v1438 = vld [vmem:[#allocation4 + $0x360] sm:$0xff]
        %v1439 = vld [vmem:[#allocation4 + $0x368] sm:$0xff]
        %v1440 = vld [vmem:[#allocation4 + $0x370] sm:$0xff]
        %v1441 = vld [vmem:[#allocation4 + $0x378] sm:$0xff]
        %v1442 = vld [vmem:[#allocation4 + $0x380] sm:$0xff]
        %v1443 = vld [vmem:[#allocation4 + $0x388] sm:$0xff]
        %v1444 = vld [vmem:[#allocation4 + $0x390] sm:$0xff]
        %v1445 = vld [vmem:[#allocation4 + $0x398] sm:$0xff]
        %v1446 = vld [vmem:[#allocation4 + $0x3a0] sm:$0xff]
        %v1447 = vld [vmem:[#allocation4 + $0x3a8] sm:$0xff]
        %v1448 = vld [vmem:[#allocation4 + $0x3b0] sm:$0xff]
        %v1449 = vld [vmem:[#allocation4 + $0x3b8] sm:$0xff]
        %v1450 = vld [vmem:[#allocation4 + $0x3c0] sm:$0xff]
        %v1451 = vld [vmem:[#allocation4 + $0x3c8] sm:$0xff]
        %v1452 = vld [vmem:[#allocation4 + $0x3d0] sm:$0xff]
        %v1453 = vld [vmem:[#allocation4 + $0x3d8] sm:$0xff]
        %v1454 = vld [vmem:[#allocation4 + $0x3e0] sm:$0xff]
        %v1455 = vld [vmem:[#allocation4 + $0x3e8] sm:$0xff]
        %v1456 = vld [vmem:[#allocation4 + $0x3f0] sm:$0xff]
        %v1457 = vld [vmem:[#allocation4 + $0x3f8] sm:$0xff]
        %v1458 = vld [vmem:[#allocation4 + $0x400] sm:$0xff]
        %v1459 = vld [vmem:[#allocation4 + $0x408] sm:$0xff]
        %v1460 = vld [vmem:[#allocation4 + $0x410] sm:$0xff]
        %v1461 = vld [vmem:[#allocation4 + $0x418] sm:$0xff]
        %v1462 = vld [vmem:[#allocation4 + $0x420] sm:$0xff]
        %v1463 = vld [vmem:[#allocation4 + $0x428] sm:$0xff]
        %v1464 = vld [vmem:[#allocation4 + $0x430] sm:$0xff]
        %v1465 = vld [vmem:[#allocation4 + $0x438] sm:$0xff]
        %v1466 = vld [vmem:[#allocation4 + $0x440] sm:$0xff]
        %v1467 = vld [vmem:[#allocation4 + $0x448] sm:$0xff]
        %v1468 = vld [vmem:[#allocation4 + $0x450] sm:$0xff]
        %v1469 = vld [vmem:[#allocation4 + $0x458] sm:$0xff]
        %v1470 = vld [vmem:[#allocation4 + $0x460] sm:$0xff]
        %v1471 = vld [vmem:[#allocation4 + $0x468] sm:$0xff]
        %v1472 = vld [vmem:[#allocation4 + $0x470] sm:$0xff]
        %v1473 = vld [vmem:[#allocation4 + $0x478] sm:$0xff]
        %1474 = vmatpush.msra.mxu0 %v1345
        %1475 = vmatpush.msra.mxu0 %v1344
        %1476 = vmatpush.msra.mxu0 %v1343
        %1477 = vmatpush.msra.mxu0 %v1342
        %1478 = vmatpush.msra.mxu0 %v1341
        %1479 = vmatpush.msra.mxu0 %v1340
        %1480 = vmatpush.msra.mxu0 %v1339
        %1481 = vmatpush.msra.mxu0 %v1338
        %1482 = vmatpush.msra.mxu0 %v1337
        %1483 = vmatpush.msra.mxu0 %v1336
        %1484 = vmatpush.msra.mxu0 %v1335
        %1485 = vmatpush.msra.mxu0 %v1334
        %1486 = vmatpush.msra.mxu0 %v1333
        %1487 = vmatpush.msra.mxu0 %v1332
        %1488 = vmatpush.msra.mxu0 %v1331
        %1489 = vmatpush.msra.mxu0 %v1330
        %1490 = vmatmul.f32.gmra.mxu0 %v1042
        %v1491 = vpop.f32.mrf.mxu0
        %v1492 = vadd.f32 0.0, %v1491
        %1493 = vmatmul.f32.gmra.mxu0 %v1051
        %v1494 = vpop.f32.mrf.mxu0
        %v1495 = vadd.f32 0.0, %v1494
        %1496 = vmatmul.f32.gmra.mxu0 %v1060
        %v1497 = vpop.f32.mrf.mxu0
        %v1498 = vadd.f32 0.0, %v1497
        %1499 = vmatmul.f32.gmra.mxu0 %v1069
        %v1500 = vpop.f32.mrf.mxu0
        %v1501 = vadd.f32 0.0, %v1500
        %1502 = vmatmul.f32.gmra.mxu0 %v1078
        %v1503 = vpop.f32.mrf.mxu0
        %v1504 = vadd.f32 0.0, %v1503
        %1505 = vmatmul.f32.gmra.mxu0 %v1087
        %v1506 = vpop.f32.mrf.mxu0
        %v1507 = vadd.f32 0.0, %v1506
        %1508 = vmatmul.f32.gmra.mxu0 %v1096
        %v1509 = vpop.f32.mrf.mxu0
        %v1510 = vadd.f32 0.0, %v1509
        %1511 = vmatmul.f32.gmra.mxu0 %v1105
        %v1512 = vpop.f32.mrf.mxu0
        %v1513 = vadd.f32 0.0, %v1512
        %1514 = vmatmul.f32.gmra.mxu0 %v1114
        %v1515 = vpop.f32.mrf.mxu0
        %v1516 = vadd.f32 0.0, %v1515
        %1517 = vmatmul.f32.gmra.mxu0 %v1123
        %v1518 = vpop.f32.mrf.mxu0
        %v1519 = vadd.f32 0.0, %v1518
        %1520 = vmatmul.f32.gmra.mxu0 %v1132
        %v1521 = vpop.f32.mrf.mxu0
        %v1522 = vadd.f32 0.0, %v1521
        %1523 = vmatmul.f32.gmra.mxu0 %v1141
        %v1524 = vpop.f32.mrf.mxu0
        %v1525 = vadd.f32 0.0, %v1524
        %1526 = vmatmul.f32.gmra.mxu0 %v1150
        %v1527 = vpop.f32.mrf.mxu0
        %v1528 = vadd.f32 0.0, %v1527
        %1529 = vmatmul.f32.gmra.mxu0 %v1159
        %v1530 = vpop.f32.mrf.mxu0
        %v1531 = vadd.f32 0.0, %v1530
        %1532 = vmatmul.f32.gmra.mxu0 %v1168
        %v1533 = vpop.f32.mrf.mxu0
        %v1534 = vadd.f32 0.0, %v1533
        %1535 = vmatmul.f32.gmra.mxu0 %v1177
        %v1536 = vpop.f32.mrf.mxu0
        %v1537 = vadd.f32 0.0, %v1536
        %1538 = vmatmul.f32.gmra.mxu0 %v1186
        %v1539 = vpop.f32.mrf.mxu0
        %v1540 = vadd.f32 0.0, %v1539
        %1541 = vmatmul.f32.gmra.mxu0 %v1195
        %v1542 = vpop.f32.mrf.mxu0
        %v1543 = vadd.f32 0.0, %v1542
        %1544 = vmatmul.f32.gmra.mxu0 %v1204
        %v1545 = vpop.f32.mrf.mxu0
        %v1546 = vadd.f32 0.0, %v1545
        %1547 = vmatmul.f32.gmra.mxu0 %v1213
        %v1548 = vpop.f32.mrf.mxu0
        %v1549 = vadd.f32 0.0, %v1548
        %1550 = vmatmul.f32.gmra.mxu0 %v1222
        %v1551 = vpop.f32.mrf.mxu0
        %v1552 = vadd.f32 0.0, %v1551
        %1553 = vmatmul.f32.gmra.mxu0 %v1231
        %v1554 = vpop.f32.mrf.mxu0
        %v1555 = vadd.f32 0.0, %v1554
        %1556 = vmatmul.f32.gmra.mxu0 %v1240
        %v1557 = vpop.f32.mrf.mxu0
        %v1558 = vadd.f32 0.0, %v1557
        %1559 = vmatmul.f32.gmra.mxu0 %v1249
        %v1560 = vpop.f32.mrf.mxu0
        %v1561 = vadd.f32 0.0, %v1560
        %1562 = vmatmul.f32.gmra.mxu0 %v1258
        %v1563 = vpop.f32.mrf.mxu0
        %v1564 = vadd.f32 0.0, %v1563
        %1565 = vmatmul.f32.gmra.mxu0 %v1267
        %v1566 = vpop.f32.mrf.mxu0
        %v1567 = vadd.f32 0.0, %v1566
        %1568 = vmatmul.f32.gmra.mxu0 %v1276
        %v1569 = vpop.f32.mrf.mxu0
        %v1570 = vadd.f32 0.0, %v1569
        %1571 = vmatmul.f32.gmra.mxu0 %v1285
        %v1572 = vpop.f32.mrf.mxu0
        %v1573 = vadd.f32 0.0, %v1572
        %1574 = vmatmul.f32.gmra.mxu0 %v1294
        %v1575 = vpop.f32.mrf.mxu0
        %v1576 = vadd.f32 0.0, %v1575
        %1577 = vmatmul.f32.gmra.mxu0 %v1303
        %v1578 = vpop.f32.mrf.mxu0
        %v1579 = vadd.f32 0.0, %v1578
        %1580 = vmatmul.f32.gmra.mxu0 %v1312
        %v1581 = vpop.f32.mrf.mxu0
        %v1582 = vadd.f32 0.0, %v1581
        %1583 = vmatmul.f32.gmra.mxu0 %v1321
        %v1584 = vpop.f32.mrf.mxu0
        %v1585 = vadd.f32 0.0, %v1584
        %1586 = vdwg.mxu0
        %1587 = vmatpush.msra.mxu0 %v1361
        %1588 = vmatpush.msra.mxu0 %v1360
        %1589 = vmatpush.msra.mxu0 %v1359
        %1590 = vmatpush.msra.mxu0 %v1358
        %1591 = vmatpush.msra.mxu0 %v1357
        %1592 = vmatpush.msra.mxu0 %v1356
        %1593 = vmatpush.msra.mxu0 %v1355
        %1594 = vmatpush.msra.mxu0 %v1354
        %1595 = vmatpush.msra.mxu0 %v1353
        %1596 = vmatpush.msra.mxu0 %v1352
        %1597 = vmatpush.msra.mxu0 %v1351
        %1598 = vmatpush.msra.mxu0 %v1350
        %1599 = vmatpush.msra.mxu0 %v1349
        %1600 = vmatpush.msra.mxu0 %v1348
        %1601 = vmatpush.msra.mxu0 %v1347
        %1602 = vmatpush.msra.mxu0 %v1346
        %1603 = vmatmul.f32.gmra.mxu0 %v1043
        %v1604 = vpop.f32.mrf.mxu0
        %v1605 = vadd.f32 %v1492, %v1604
        %1606 = vmatmul.f32.gmra.mxu0 %v1052
        %v1607 = vpop.f32.mrf.mxu0
        %v1608 = vadd.f32 %v1495, %v1607
        %1609 = vmatmul.f32.gmra.mxu0 %v1061
        %v1610 = vpop.f32.mrf.mxu0
        %v1611 = vadd.f32 %v1498, %v1610
        %1612 = vmatmul.f32.gmra.mxu0 %v1070
        %v1613 = vpop.f32.mrf.mxu0
        %v1614 = vadd.f32 %v1501, %v1613
        %1615 = vmatmul.f32.gmra.mxu0 %v1079
        %v1616 = vpop.f32.mrf.mxu0
        %v1617 = vadd.f32 %v1504, %v1616
        %1618 = vmatmul.f32.gmra.mxu0 %v1088
        %v1619 = vpop.f32.mrf.mxu0
        %v1620 = vadd.f32 %v1507, %v1619
        %1621 = vmatmul.f32.gmra.mxu0 %v1097
        %v1622 = vpop.f32.mrf.mxu0
        %v1623 = vadd.f32 %v1510, %v1622
        %1624 = vmatmul.f32.gmra.mxu0 %v1106
        %v1625 = vpop.f32.mrf.mxu0
        %v1626 = vadd.f32 %v1513, %v1625
        %1627 = vmatmul.f32.gmra.mxu0 %v1115
        %v1628 = vpop.f32.mrf.mxu0
        %v1629 = vadd.f32 %v1516, %v1628
        %1630 = vmatmul.f32.gmra.mxu0 %v1124
        %v1631 = vpop.f32.mrf.mxu0
        %v1632 = vadd.f32 %v1519, %v1631
        %1633 = vmatmul.f32.gmra.mxu0 %v1133
        %v1634 = vpop.f32.mrf.mxu0
        %v1635 = vadd.f32 %v1522, %v1634
        %1636 = vmatmul.f32.gmra.mxu0 %v1142
        %v1637 = vpop.f32.mrf.mxu0
        %v1638 = vadd.f32 %v1525, %v1637
        %1639 = vmatmul.f32.gmra.mxu0 %v1151
        %v1640 = vpop.f32.mrf.mxu0
        %v1641 = vadd.f32 %v1528, %v1640
        %1642 = vmatmul.f32.gmra.mxu0 %v1160
        %v1643 = vpop.f32.mrf.mxu0
        %v1644 = vadd.f32 %v1531, %v1643
        %1645 = vmatmul.f32.gmra.mxu0 %v1169
        %v1646 = vpop.f32.mrf.mxu0
        %v1647 = vadd.f32 %v1534, %v1646
        %1648 = vmatmul.f32.gmra.mxu0 %v1178
        %v1649 = vpop.f32.mrf.mxu0
        %v1650 = vadd.f32 %v1537, %v1649
        %1651 = vmatmul.f32.gmra.mxu0 %v1187
        %v1652 = vpop.f32.mrf.mxu0
        %v1653 = vadd.f32 %v1540, %v1652
        %1654 = vmatmul.f32.gmra.mxu0 %v1196
        %v1655 = vpop.f32.mrf.mxu0
        %v1656 = vadd.f32 %v1543, %v1655
        %1657 = vmatmul.f32.gmra.mxu0 %v1205
        %v1658 = vpop.f32.mrf.mxu0
        %v1659 = vadd.f32 %v1546, %v1658
        %1660 = vmatmul.f32.gmra.mxu0 %v1214
        %v1661 = vpop.f32.mrf.mxu0
        %v1662 = vadd.f32 %v1549, %v1661
        %1663 = vmatmul.f32.gmra.mxu0 %v1223
        %v1664 = vpop.f32.mrf.mxu0
        %v1665 = vadd.f32 %v1552, %v1664
        %1666 = vmatmul.f32.gmra.mxu0 %v1232
        %v1667 = vpop.f32.mrf.mxu0
        %v1668 = vadd.f32 %v1555, %v1667
        %1669 = vmatmul.f32.gmra.mxu0 %v1241
        %v1670 = vpop.f32.mrf.mxu0
        %v1671 = vadd.f32 %v1558, %v1670
        %1672 = vmatmul.f32.gmra.mxu0 %v1250
        %v1673 = vpop.f32.mrf.mxu0
        %v1674 = vadd.f32 %v1561, %v1673
        %1675 = vmatmul.f32.gmra.mxu0 %v1259
        %v1676 = vpop.f32.mrf.mxu0
        %v1677 = vadd.f32 %v1564, %v1676
        %1678 = vmatmul.f32.gmra.mxu0 %v1268
        %v1679 = vpop.f32.mrf.mxu0
        %v1680 = vadd.f32 %v1567, %v1679
        %1681 = vmatmul.f32.gmra.mxu0 %v1277
        %v1682 = vpop.f32.mrf.mxu0
        %v1683 = vadd.f32 %v1570, %v1682
        %1684 = vmatmul.f32.gmra.mxu0 %v1286
        %v1685 = vpop.f32.mrf.mxu0
        %v1686 = vadd.f32 %v1573, %v1685
        %1687 = vmatmul.f32.gmra.mxu0 %v1295
        %v1688 = vpop.f32.mrf.mxu0
        %v1689 = vadd.f32 %v1576, %v1688
        %1690 = vmatmul.f32.gmra.mxu0 %v1304
        %v1691 = vpop.f32.mrf.mxu0
        %v1692 = vadd.f32 %v1579, %v1691
        %1693 = vmatmul.f32.gmra.mxu0 %v1313
        %v1694 = vpop.f32.mrf.mxu0
        %v1695 = vadd.f32 %v1582, %v1694
        %1696 = vmatmul.f32.gmra.mxu0 %v1322
        %v1697 = vpop.f32.mrf.mxu0
        %v1698 = vadd.f32 %v1585, %v1697
        %1699 = vdwg.mxu0
        %1700 = vmatpush.msra.mxu0 %v1377
        %1701 = vmatpush.msra.mxu0 %v1376
        %1702 = vmatpush.msra.mxu0 %v1375
        %1703 = vmatpush.msra.mxu0 %v1374
        %1704 = vmatpush.msra.mxu0 %v1373
        %1705 = vmatpush.msra.mxu0 %v1372
        %1706 = vmatpush.msra.mxu0 %v1371
        %1707 = vmatpush.msra.mxu0 %v1370
        %1708 = vmatpush.msra.mxu0 %v1369
        %1709 = vmatpush.msra.mxu0 %v1368
        %1710 = vmatpush.msra.mxu0 %v1367
        %1711 = vmatpush.msra.mxu0 %v1366
        %1712 = vmatpush.msra.mxu0 %v1365
        %1713 = vmatpush.msra.mxu0 %v1364
        %1714 = vmatpush.msra.mxu0 %v1363
        %1715 = vmatpush.msra.mxu0 %v1362
        %1716 = vmatmul.f32.gmra.mxu0 %v1044
        %v1717 = vpop.f32.mrf.mxu0
        %v1718 = vadd.f32 %v1605, %v1717
        %1719 = vmatmul.f32.gmra.mxu0 %v1053
        %v1720 = vpop.f32.mrf.mxu0
        %v1721 = vadd.f32 %v1608, %v1720
        %1722 = vmatmul.f32.gmra.mxu0 %v1062
        %v1723 = vpop.f32.mrf.mxu0
        %v1724 = vadd.f32 %v1611, %v1723
        %1725 = vmatmul.f32.gmra.mxu0 %v1071
        %v1726 = vpop.f32.mrf.mxu0
        %v1727 = vadd.f32 %v1614, %v1726
        %1728 = vmatmul.f32.gmra.mxu0 %v1080
        %v1729 = vpop.f32.mrf.mxu0
        %v1730 = vadd.f32 %v1617, %v1729
        %1731 = vmatmul.f32.gmra.mxu0 %v1089
        %v1732 = vpop.f32.mrf.mxu0
        %v1733 = vadd.f32 %v1620, %v1732
        %1734 = vmatmul.f32.gmra.mxu0 %v1098
        %v1735 = vpop.f32.mrf.mxu0
        %v1736 = vadd.f32 %v1623, %v1735
        %1737 = vmatmul.f32.gmra.mxu0 %v1107
        %v1738 = vpop.f32.mrf.mxu0
        %v1739 = vadd.f32 %v1626, %v1738
        %1740 = vmatmul.f32.gmra.mxu0 %v1116
        %v1741 = vpop.f32.mrf.mxu0
        %v1742 = vadd.f32 %v1629, %v1741
        %1743 = vmatmul.f32.gmra.mxu0 %v1125
        %v1744 = vpop.f32.mrf.mxu0
        %v1745 = vadd.f32 %v1632, %v1744
        %1746 = vmatmul.f32.gmra.mxu0 %v1134
        %v1747 = vpop.f32.mrf.mxu0
        %v1748 = vadd.f32 %v1635, %v1747
        %1749 = vmatmul.f32.gmra.mxu0 %v1143
        %v1750 = vpop.f32.mrf.mxu0
        %v1751 = vadd.f32 %v1638, %v1750
        %1752 = vmatmul.f32.gmra.mxu0 %v1152
        %v1753 = vpop.f32.mrf.mxu0
        %v1754 = vadd.f32 %v1641, %v1753
        %1755 = vmatmul.f32.gmra.mxu0 %v1161
        %v1756 = vpop.f32.mrf.mxu0
        %v1757 = vadd.f32 %v1644, %v1756
        %1758 = vmatmul.f32.gmra.mxu0 %v1170
        %v1759 = vpop.f32.mrf.mxu0
        %v1760 = vadd.f32 %v1647, %v1759
        %1761 = vmatmul.f32.gmra.mxu0 %v1179
        %v1762 = vpop.f32.mrf.mxu0
        %v1763 = vadd.f32 %v1650, %v1762
        %1764 = vmatmul.f32.gmra.mxu0 %v1188
        %v1765 = vpop.f32.mrf.mxu0
        %v1766 = vadd.f32 %v1653, %v1765
        %1767 = vmatmul.f32.gmra.mxu0 %v1197
        %v1768 = vpop.f32.mrf.mxu0
        %v1769 = vadd.f32 %v1656, %v1768
        %1770 = vmatmul.f32.gmra.mxu0 %v1206
        %v1771 = vpop.f32.mrf.mxu0
        %v1772 = vadd.f32 %v1659, %v1771
        %1773 = vmatmul.f32.gmra.mxu0 %v1215
        %v1774 = vpop.f32.mrf.mxu0
        %v1775 = vadd.f32 %v1662, %v1774
        %1776 = vmatmul.f32.gmra.mxu0 %v1224
        %v1777 = vpop.f32.mrf.mxu0
        %v1778 = vadd.f32 %v1665, %v1777
        %1779 = vmatmul.f32.gmra.mxu0 %v1233
        %v1780 = vpop.f32.mrf.mxu0
        %v1781 = vadd.f32 %v1668, %v1780
        %1782 = vmatmul.f32.gmra.mxu0 %v1242
        %v1783 = vpop.f32.mrf.mxu0
        %v1784 = vadd.f32 %v1671, %v1783
        %1785 = vmatmul.f32.gmra.mxu0 %v1251
        %v1786 = vpop.f32.mrf.mxu0
        %v1787 = vadd.f32 %v1674, %v1786
        %1788 = vmatmul.f32.gmra.mxu0 %v1260
        %v1789 = vpop.f32.mrf.mxu0
        %v1790 = vadd.f32 %v1677, %v1789
        %1791 = vmatmul.f32.gmra.mxu0 %v1269
        %v1792 = vpop.f32.mrf.mxu0
        %v1793 = vadd.f32 %v1680, %v1792
        %1794 = vmatmul.f32.gmra.mxu0 %v1278
        %v1795 = vpop.f32.mrf.mxu0
        %v1796 = vadd.f32 %v1683, %v1795
        %1797 = vmatmul.f32.gmra.mxu0 %v1287
        %v1798 = vpop.f32.mrf.mxu0
        %v1799 = vadd.f32 %v1686, %v1798
        %1800 = vmatmul.f32.gmra.mxu0 %v1296
        %v1801 = vpop.f32.mrf.mxu0
        %v1802 = vadd.f32 %v1689, %v1801
        %1803 = vmatmul.f32.gmra.mxu0 %v1305
        %v1804 = vpop.f32.mrf.mxu0
        %v1805 = vadd.f32 %v1692, %v1804
        %1806 = vmatmul.f32.gmra.mxu0 %v1314
        %v1807 = vpop.f32.mrf.mxu0
        %v1808 = vadd.f32 %v1695, %v1807
        %1809 = vmatmul.f32.gmra.mxu0 %v1323
        %v1810 = vpop.f32.mrf.mxu0
        %v1811 = vadd.f32 %v1698, %v1810
        %1812 = vdwg.mxu0
        %1813 = vmatpush.msra.mxu0 %v1393
        %1814 = vmatpush.msra.mxu0 %v1392
        %1815 = vmatpush.msra.mxu0 %v1391
        %1816 = vmatpush.msra.mxu0 %v1390
        %1817 = vmatpush.msra.mxu0 %v1389
        %1818 = vmatpush.msra.mxu0 %v1388
        %1819 = vmatpush.msra.mxu0 %v1387
        %1820 = vmatpush.msra.mxu0 %v1386
        %1821 = vmatpush.msra.mxu0 %v1385
        %1822 = vmatpush.msra.mxu0 %v1384
        %1823 = vmatpush.msra.mxu0 %v1383
        %1824 = vmatpush.msra.mxu0 %v1382
        %1825 = vmatpush.msra.mxu0 %v1381
        %1826 = vmatpush.msra.mxu0 %v1380
        %1827 = vmatpush.msra.mxu0 %v1379
        %1828 = vmatpush.msra.mxu0 %v1378
        %1829 = vmatmul.f32.gmra.mxu0 %v1045
        %v1830 = vpop.f32.mrf.mxu0
        %v1831 = vadd.f32 %v1718, %v1830
        %1832 = vmatmul.f32.gmra.mxu0 %v1054
        %v1833 = vpop.f32.mrf.mxu0
        %v1834 = vadd.f32 %v1721, %v1833
        %1835 = vmatmul.f32.gmra.mxu0 %v1063
        %v1836 = vpop.f32.mrf.mxu0
        %v1837 = vadd.f32 %v1724, %v1836
        %1838 = vmatmul.f32.gmra.mxu0 %v1072
        %v1839 = vpop.f32.mrf.mxu0
        %v1840 = vadd.f32 %v1727, %v1839
        %1841 = vmatmul.f32.gmra.mxu0 %v1081
        %v1842 = vpop.f32.mrf.mxu0
        %v1843 = vadd.f32 %v1730, %v1842
        %1844 = vmatmul.f32.gmra.mxu0 %v1090
        %v1845 = vpop.f32.mrf.mxu0
        %v1846 = vadd.f32 %v1733, %v1845
        %1847 = vmatmul.f32.gmra.mxu0 %v1099
        %v1848 = vpop.f32.mrf.mxu0
        %v1849 = vadd.f32 %v1736, %v1848
        %1850 = vmatmul.f32.gmra.mxu0 %v1108
        %v1851 = vpop.f32.mrf.mxu0
        %v1852 = vadd.f32 %v1739, %v1851
        %1853 = vmatmul.f32.gmra.mxu0 %v1117
        %v1854 = vpop.f32.mrf.mxu0
        %v1855 = vadd.f32 %v1742, %v1854
        %1856 = vmatmul.f32.gmra.mxu0 %v1126
        %v1857 = vpop.f32.mrf.mxu0
        %v1858 = vadd.f32 %v1745, %v1857
        %1859 = vmatmul.f32.gmra.mxu0 %v1135
        %v1860 = vpop.f32.mrf.mxu0
        %v1861 = vadd.f32 %v1748, %v1860
        %1862 = vmatmul.f32.gmra.mxu0 %v1144
        %v1863 = vpop.f32.mrf.mxu0
        %v1864 = vadd.f32 %v1751, %v1863
        %1865 = vmatmul.f32.gmra.mxu0 %v1153
        %v1866 = vpop.f32.mrf.mxu0
        %v1867 = vadd.f32 %v1754, %v1866
        %1868 = vmatmul.f32.gmra.mxu0 %v1162
        %v1869 = vpop.f32.mrf.mxu0
        %v1870 = vadd.f32 %v1757, %v1869
        %1871 = vmatmul.f32.gmra.mxu0 %v1171
        %v1872 = vpop.f32.mrf.mxu0
        %v1873 = vadd.f32 %v1760, %v1872
        %1874 = vmatmul.f32.gmra.mxu0 %v1180
        %v1875 = vpop.f32.mrf.mxu0
        %v1876 = vadd.f32 %v1763, %v1875
        %1877 = vmatmul.f32.gmra.mxu0 %v1189
        %v1878 = vpop.f32.mrf.mxu0
        %v1879 = vadd.f32 %v1766, %v1878
        %1880 = vmatmul.f32.gmra.mxu0 %v1198
        %v1881 = vpop.f32.mrf.mxu0
        %v1882 = vadd.f32 %v1769, %v1881
        %1883 = vmatmul.f32.gmra.mxu0 %v1207
        %v1884 = vpop.f32.mrf.mxu0
        %v1885 = vadd.f32 %v1772, %v1884
        %1886 = vmatmul.f32.gmra.mxu0 %v1216
        %v1887 = vpop.f32.mrf.mxu0
        %v1888 = vadd.f32 %v1775, %v1887
        %1889 = vmatmul.f32.gmra.mxu0 %v1225
        %v1890 = vpop.f32.mrf.mxu0
        %v1891 = vadd.f32 %v1778, %v1890
        %1892 = vmatmul.f32.gmra.mxu0 %v1234
        %v1893 = vpop.f32.mrf.mxu0
        %v1894 = vadd.f32 %v1781, %v1893
        %1895 = vmatmul.f32.gmra.mxu0 %v1243
        %v1896 = vpop.f32.mrf.mxu0
        %v1897 = vadd.f32 %v1784, %v1896
        %1898 = vmatmul.f32.gmra.mxu0 %v1252
        %v1899 = vpop.f32.mrf.mxu0
        %v1900 = vadd.f32 %v1787, %v1899
        %1901 = vmatmul.f32.gmra.mxu0 %v1261
        %v1902 = vpop.f32.mrf.mxu0
        %v1903 = vadd.f32 %v1790, %v1902
        %1904 = vmatmul.f32.gmra.mxu0 %v1270
        %v1905 = vpop.f32.mrf.mxu0
        %v1906 = vadd.f32 %v1793, %v1905
        %1907 = vmatmul.f32.gmra.mxu0 %v1279
        %v1908 = vpop.f32.mrf.mxu0
        %v1909 = vadd.f32 %v1796, %v1908
        %1910 = vmatmul.f32.gmra.mxu0 %v1288
        %v1911 = vpop.f32.mrf.mxu0
        %v1912 = vadd.f32 %v1799, %v1911
        %1913 = vmatmul.f32.gmra.mxu0 %v1297
        %v1914 = vpop.f32.mrf.mxu0
        %v1915 = vadd.f32 %v1802, %v1914
        %1916 = vmatmul.f32.gmra.mxu0 %v1306
        %v1917 = vpop.f32.mrf.mxu0
        %v1918 = vadd.f32 %v1805, %v1917
        %1919 = vmatmul.f32.gmra.mxu0 %v1315
        %v1920 = vpop.f32.mrf.mxu0
        %v1921 = vadd.f32 %v1808, %v1920
        %1922 = vmatmul.f32.gmra.mxu0 %v1324
        %v1923 = vpop.f32.mrf.mxu0
        %v1924 = vadd.f32 %v1811, %v1923
        %1925 = vdwg.mxu0
        %1926 = vmatpush.msra.mxu0 %v1409
        %1927 = vmatpush.msra.mxu0 %v1408
        %1928 = vmatpush.msra.mxu0 %v1407
        %1929 = vmatpush.msra.mxu0 %v1406
        %1930 = vmatpush.msra.mxu0 %v1405
        %1931 = vmatpush.msra.mxu0 %v1404
        %1932 = vmatpush.msra.mxu0 %v1403
        %1933 = vmatpush.msra.mxu0 %v1402
        %1934 = vmatpush.msra.mxu0 %v1401
        %1935 = vmatpush.msra.mxu0 %v1400
        %1936 = vmatpush.msra.mxu0 %v1399
        %1937 = vmatpush.msra.mxu0 %v1398
        %1938 = vmatpush.msra.mxu0 %v1397
        %1939 = vmatpush.msra.mxu0 %v1396
        %1940 = vmatpush.msra.mxu0 %v1395
        %1941 = vmatpush.msra.mxu0 %v1394
        %1942 = vmatmul.f32.gmra.mxu0 %v1046
        %v1943 = vpop.f32.mrf.mxu0
        %v1944 = vadd.f32 %v1831, %v1943
        %1945 = vmatmul.f32.gmra.mxu0 %v1055
        %v1946 = vpop.f32.mrf.mxu0
        %v1947 = vadd.f32 %v1834, %v1946
        %1948 = vmatmul.f32.gmra.mxu0 %v1064
        %v1949 = vpop.f32.mrf.mxu0
        %v1950 = vadd.f32 %v1837, %v1949
        %1951 = vmatmul.f32.gmra.mxu0 %v1073
        %v1952 = vpop.f32.mrf.mxu0
        %v1953 = vadd.f32 %v1840, %v1952
        %1954 = vmatmul.f32.gmra.mxu0 %v1082
        %v1955 = vpop.f32.mrf.mxu0
        %v1956 = vadd.f32 %v1843, %v1955
        %1957 = vmatmul.f32.gmra.mxu0 %v1091
        %v1958 = vpop.f32.mrf.mxu0
        %v1959 = vadd.f32 %v1846, %v1958
        %1960 = vmatmul.f32.gmra.mxu0 %v1100
        %v1961 = vpop.f32.mrf.mxu0
        %v1962 = vadd.f32 %v1849, %v1961
        %1963 = vmatmul.f32.gmra.mxu0 %v1109
        %v1964 = vpop.f32.mrf.mxu0
        %v1965 = vadd.f32 %v1852, %v1964
        %1966 = vmatmul.f32.gmra.mxu0 %v1118
        %v1967 = vpop.f32.mrf.mxu0
        %v1968 = vadd.f32 %v1855, %v1967
        %1969 = vmatmul.f32.gmra.mxu0 %v1127
        %v1970 = vpop.f32.mrf.mxu0
        %v1971 = vadd.f32 %v1858, %v1970
        %1972 = vmatmul.f32.gmra.mxu0 %v1136
        %v1973 = vpop.f32.mrf.mxu0
        %v1974 = vadd.f32 %v1861, %v1973
        %1975 = vmatmul.f32.gmra.mxu0 %v1145
        %v1976 = vpop.f32.mrf.mxu0
        %v1977 = vadd.f32 %v1864, %v1976
        %1978 = vmatmul.f32.gmra.mxu0 %v1154
        %v1979 = vpop.f32.mrf.mxu0
        %v1980 = vadd.f32 %v1867, %v1979
        %1981 = vmatmul.f32.gmra.mxu0 %v1163
        %v1982 = vpop.f32.mrf.mxu0
        %v1983 = vadd.f32 %v1870, %v1982
        %1984 = vmatmul.f32.gmra.mxu0 %v1172
        %v1985 = vpop.f32.mrf.mxu0
        %v1986 = vadd.f32 %v1873, %v1985
        %1987 = vmatmul.f32.gmra.mxu0 %v1181
        %v1988 = vpop.f32.mrf.mxu0
        %v1989 = vadd.f32 %v1876, %v1988
        %1990 = vmatmul.f32.gmra.mxu0 %v1190
        %v1991 = vpop.f32.mrf.mxu0
        %v1992 = vadd.f32 %v1879, %v1991
        %1993 = vmatmul.f32.gmra.mxu0 %v1199
        %v1994 = vpop.f32.mrf.mxu0
        %v1995 = vadd.f32 %v1882, %v1994
        %1996 = vmatmul.f32.gmra.mxu0 %v1208
        %v1997 = vpop.f32.mrf.mxu0
        %v1998 = vadd.f32 %v1885, %v1997
        %1999 = vmatmul.f32.gmra.mxu0 %v1217
        %v2000 = vpop.f32.mrf.mxu0
        %v2001 = vadd.f32 %v1888, %v2000
        %2002 = vmatmul.f32.gmra.mxu0 %v1226
        %v2003 = vpop.f32.mrf.mxu0
        %v2004 = vadd.f32 %v1891, %v2003
        %2005 = vmatmul.f32.gmra.mxu0 %v1235
        %v2006 = vpop.f32.mrf.mxu0
        %v2007 = vadd.f32 %v1894, %v2006
        %2008 = vmatmul.f32.gmra.mxu0 %v1244
        %v2009 = vpop.f32.mrf.mxu0
        %v2010 = vadd.f32 %v1897, %v2009
        %2011 = vmatmul.f32.gmra.mxu0 %v1253
        %v2012 = vpop.f32.mrf.mxu0
        %v2013 = vadd.f32 %v1900, %v2012
        %2014 = vmatmul.f32.gmra.mxu0 %v1262
        %v2015 = vpop.f32.mrf.mxu0
        %v2016 = vadd.f32 %v1903, %v2015
        %2017 = vmatmul.f32.gmra.mxu0 %v1271
        %v2018 = vpop.f32.mrf.mxu0
        %v2019 = vadd.f32 %v1906, %v2018
        %2020 = vmatmul.f32.gmra.mxu0 %v1280
        %v2021 = vpop.f32.mrf.mxu0
        %v2022 = vadd.f32 %v1909, %v2021
        %2023 = vmatmul.f32.gmra.mxu0 %v1289
        %v2024 = vpop.f32.mrf.mxu0
        %v2025 = vadd.f32 %v1912, %v2024
        %2026 = vmatmul.f32.gmra.mxu0 %v1298
        %v2027 = vpop.f32.mrf.mxu0
        %v2028 = vadd.f32 %v1915, %v2027
        %2029 = vmatmul.f32.gmra.mxu0 %v1307
        %v2030 = vpop.f32.mrf.mxu0
        %v2031 = vadd.f32 %v1918, %v2030
        %2032 = vmatmul.f32.gmra.mxu0 %v1316
        %v2033 = vpop.f32.mrf.mxu0
        %v2034 = vadd.f32 %v1921, %v2033
        %2035 = vmatmul.f32.gmra.mxu0 %v1325
        %v2036 = vpop.f32.mrf.mxu0
        %v2037 = vadd.f32 %v1924, %v2036
        %2038 = vdwg.mxu0
        %2039 = vmatpush.msra.mxu0 %v1425
        %2040 = vmatpush.msra.mxu0 %v1424
        %2041 = vmatpush.msra.mxu0 %v1423
        %2042 = vmatpush.msra.mxu0 %v1422
        %2043 = vmatpush.msra.mxu0 %v1421
        %2044 = vmatpush.msra.mxu0 %v1420
        %2045 = vmatpush.msra.mxu0 %v1419
        %2046 = vmatpush.msra.mxu0 %v1418
        %2047 = vmatpush.msra.mxu0 %v1417
        %2048 = vmatpush.msra.mxu0 %v1416
        %2049 = vmatpush.msra.mxu0 %v1415
        %2050 = vmatpush.msra.mxu0 %v1414
        %2051 = vmatpush.msra.mxu0 %v1413
        %2052 = vmatpush.msra.mxu0 %v1412
        %2053 = vmatpush.msra.mxu0 %v1411
        %2054 = vmatpush.msra.mxu0 %v1410
        %2055 = vmatmul.f32.gmra.mxu0 %v1047
        %v2056 = vpop.f32.mrf.mxu0
        %v2057 = vadd.f32 %v1944, %v2056
        %2058 = vmatmul.f32.gmra.mxu0 %v1056
        %v2059 = vpop.f32.mrf.mxu0
        %v2060 = vadd.f32 %v1947, %v2059
        %2061 = vmatmul.f32.gmra.mxu0 %v1065
        %v2062 = vpop.f32.mrf.mxu0
        %v2063 = vadd.f32 %v1950, %v2062
        %2064 = vmatmul.f32.gmra.mxu0 %v1074
        %v2065 = vpop.f32.mrf.mxu0
        %v2066 = vadd.f32 %v1953, %v2065
        %2067 = vmatmul.f32.gmra.mxu0 %v1083
        %v2068 = vpop.f32.mrf.mxu0
        %v2069 = vadd.f32 %v1956, %v2068
        %2070 = vmatmul.f32.gmra.mxu0 %v1092
        %v2071 = vpop.f32.mrf.mxu0
        %v2072 = vadd.f32 %v1959, %v2071
        %2073 = vmatmul.f32.gmra.mxu0 %v1101
        %v2074 = vpop.f32.mrf.mxu0
        %v2075 = vadd.f32 %v1962, %v2074
        %2076 = vmatmul.f32.gmra.mxu0 %v1110
        %v2077 = vpop.f32.mrf.mxu0
        %v2078 = vadd.f32 %v1965, %v2077
        %2079 = vmatmul.f32.gmra.mxu0 %v1119
        %v2080 = vpop.f32.mrf.mxu0
        %v2081 = vadd.f32 %v1968, %v2080
        %2082 = vmatmul.f32.gmra.mxu0 %v1128
        %v2083 = vpop.f32.mrf.mxu0
        %v2084 = vadd.f32 %v1971, %v2083
        %2085 = vmatmul.f32.gmra.mxu0 %v1137
        %v2086 = vpop.f32.mrf.mxu0
        %v2087 = vadd.f32 %v1974, %v2086
        %2088 = vmatmul.f32.gmra.mxu0 %v1146
        %v2089 = vpop.f32.mrf.mxu0
        %v2090 = vadd.f32 %v1977, %v2089
        %2091 = vmatmul.f32.gmra.mxu0 %v1155
        %v2092 = vpop.f32.mrf.mxu0
        %v2093 = vadd.f32 %v1980, %v2092
        %2094 = vmatmul.f32.gmra.mxu0 %v1164
        %v2095 = vpop.f32.mrf.mxu0
        %v2096 = vadd.f32 %v1983, %v2095
        %2097 = vmatmul.f32.gmra.mxu0 %v1173
        %v2098 = vpop.f32.mrf.mxu0
        %v2099 = vadd.f32 %v1986, %v2098
        %2100 = vmatmul.f32.gmra.mxu0 %v1182
        %v2101 = vpop.f32.mrf.mxu0
        %v2102 = vadd.f32 %v1989, %v2101
        %2103 = vmatmul.f32.gmra.mxu0 %v1191
        %v2104 = vpop.f32.mrf.mxu0
        %v2105 = vadd.f32 %v1992, %v2104
        %2106 = vmatmul.f32.gmra.mxu0 %v1200
        %v2107 = vpop.f32.mrf.mxu0
        %v2108 = vadd.f32 %v1995, %v2107
        %2109 = vmatmul.f32.gmra.mxu0 %v1209
        %v2110 = vpop.f32.mrf.mxu0
        %v2111 = vadd.f32 %v1998, %v2110
        %2112 = vmatmul.f32.gmra.mxu0 %v1218
        %v2113 = vpop.f32.mrf.mxu0
        %v2114 = vadd.f32 %v2001, %v2113
        %2115 = vmatmul.f32.gmra.mxu0 %v1227
        %v2116 = vpop.f32.mrf.mxu0
        %v2117 = vadd.f32 %v2004, %v2116
        %2118 = vmatmul.f32.gmra.mxu0 %v1236
        %v2119 = vpop.f32.mrf.mxu0
        %v2120 = vadd.f32 %v2007, %v2119
        %2121 = vmatmul.f32.gmra.mxu0 %v1245
        %v2122 = vpop.f32.mrf.mxu0
        %v2123 = vadd.f32 %v2010, %v2122
        %2124 = vmatmul.f32.gmra.mxu0 %v1254
        %v2125 = vpop.f32.mrf.mxu0
        %v2126 = vadd.f32 %v2013, %v2125
        %2127 = vmatmul.f32.gmra.mxu0 %v1263
        %v2128 = vpop.f32.mrf.mxu0
        %v2129 = vadd.f32 %v2016, %v2128
        %2130 = vmatmul.f32.gmra.mxu0 %v1272
        %v2131 = vpop.f32.mrf.mxu0
        %v2132 = vadd.f32 %v2019, %v2131
        %2133 = vmatmul.f32.gmra.mxu0 %v1281
        %v2134 = vpop.f32.mrf.mxu0
        %v2135 = vadd.f32 %v2022, %v2134
        %2136 = vmatmul.f32.gmra.mxu0 %v1290
        %v2137 = vpop.f32.mrf.mxu0
        %v2138 = vadd.f32 %v2025, %v2137
        %2139 = vmatmul.f32.gmra.mxu0 %v1299
        %v2140 = vpop.f32.mrf.mxu0
        %v2141 = vadd.f32 %v2028, %v2140
        %2142 = vmatmul.f32.gmra.mxu0 %v1308
        %v2143 = vpop.f32.mrf.mxu0
        %v2144 = vadd.f32 %v2031, %v2143
        %2145 = vmatmul.f32.gmra.mxu0 %v1317
        %v2146 = vpop.f32.mrf.mxu0
        %v2147 = vadd.f32 %v2034, %v2146
        %2148 = vmatmul.f32.gmra.mxu0 %v1326
        %v2149 = vpop.f32.mrf.mxu0
        %v2150 = vadd.f32 %v2037, %v2149
        %2151 = vdwg.mxu0
        %2152 = vmatpush.msra.mxu0 %v1441
        %2153 = vmatpush.msra.mxu0 %v1440
        %2154 = vmatpush.msra.mxu0 %v1439
        %2155 = vmatpush.msra.mxu0 %v1438
        %2156 = vmatpush.msra.mxu0 %v1437
        %2157 = vmatpush.msra.mxu0 %v1436
        %2158 = vmatpush.msra.mxu0 %v1435
        %2159 = vmatpush.msra.mxu0 %v1434
        %2160 = vmatpush.msra.mxu0 %v1433
        %2161 = vmatpush.msra.mxu0 %v1432
        %2162 = vmatpush.msra.mxu0 %v1431
        %2163 = vmatpush.msra.mxu0 %v1430
        %2164 = vmatpush.msra.mxu0 %v1429
        %2165 = vmatpush.msra.mxu0 %v1428
        %2166 = vmatpush.msra.mxu0 %v1427
        %2167 = vmatpush.msra.mxu0 %v1426
        %2168 = vmatmul.f32.gmra.mxu0 %v1048
        %v2169 = vpop.f32.mrf.mxu0
        %v2170 = vadd.f32 %v2057, %v2169
        %2171 = vmatmul.f32.gmra.mxu0 %v1057
        %v2172 = vpop.f32.mrf.mxu0
        %v2173 = vadd.f32 %v2060, %v2172
        %2174 = vmatmul.f32.gmra.mxu0 %v1066
        %v2175 = vpop.f32.mrf.mxu0
        %v2176 = vadd.f32 %v2063, %v2175
        %2177 = vmatmul.f32.gmra.mxu0 %v1075
        %v2178 = vpop.f32.mrf.mxu0
        %v2179 = vadd.f32 %v2066, %v2178
        %2180 = vmatmul.f32.gmra.mxu0 %v1084
        %v2181 = vpop.f32.mrf.mxu0
        %v2182 = vadd.f32 %v2069, %v2181
        %2183 = vmatmul.f32.gmra.mxu0 %v1093
        %v2184 = vpop.f32.mrf.mxu0
        %v2185 = vadd.f32 %v2072, %v2184
        %2186 = vmatmul.f32.gmra.mxu0 %v1102
        %v2187 = vpop.f32.mrf.mxu0
        %v2188 = vadd.f32 %v2075, %v2187
        %2189 = vmatmul.f32.gmra.mxu0 %v1111
        %v2190 = vpop.f32.mrf.mxu0
        %v2191 = vadd.f32 %v2078, %v2190
        %2192 = vmatmul.f32.gmra.mxu0 %v1120
        %v2193 = vpop.f32.mrf.mxu0
        %v2194 = vadd.f32 %v2081, %v2193
        %2195 = vmatmul.f32.gmra.mxu0 %v1129
        %v2196 = vpop.f32.mrf.mxu0
        %v2197 = vadd.f32 %v2084, %v2196
        %2198 = vmatmul.f32.gmra.mxu0 %v1138
        %v2199 = vpop.f32.mrf.mxu0
        %v2200 = vadd.f32 %v2087, %v2199
        %2201 = vmatmul.f32.gmra.mxu0 %v1147
        %v2202 = vpop.f32.mrf.mxu0
        %v2203 = vadd.f32 %v2090, %v2202
        %2204 = vmatmul.f32.gmra.mxu0 %v1156
        %v2205 = vpop.f32.mrf.mxu0
        %v2206 = vadd.f32 %v2093, %v2205
        %2207 = vmatmul.f32.gmra.mxu0 %v1165
        %v2208 = vpop.f32.mrf.mxu0
        %v2209 = vadd.f32 %v2096, %v2208
        %2210 = vmatmul.f32.gmra.mxu0 %v1174
        %v2211 = vpop.f32.mrf.mxu0
        %v2212 = vadd.f32 %v2099, %v2211
        %2213 = vmatmul.f32.gmra.mxu0 %v1183
        %v2214 = vpop.f32.mrf.mxu0
        %v2215 = vadd.f32 %v2102, %v2214
        %2216 = vmatmul.f32.gmra.mxu0 %v1192
        %v2217 = vpop.f32.mrf.mxu0
        %v2218 = vadd.f32 %v2105, %v2217
        %2219 = vmatmul.f32.gmra.mxu0 %v1201
        %v2220 = vpop.f32.mrf.mxu0
        %v2221 = vadd.f32 %v2108, %v2220
        %2222 = vmatmul.f32.gmra.mxu0 %v1210
        %v2223 = vpop.f32.mrf.mxu0
        %v2224 = vadd.f32 %v2111, %v2223
        %2225 = vmatmul.f32.gmra.mxu0 %v1219
        %v2226 = vpop.f32.mrf.mxu0
        %v2227 = vadd.f32 %v2114, %v2226
        %2228 = vmatmul.f32.gmra.mxu0 %v1228
        %v2229 = vpop.f32.mrf.mxu0
        %v2230 = vadd.f32 %v2117, %v2229
        %2231 = vmatmul.f32.gmra.mxu0 %v1237
        %v2232 = vpop.f32.mrf.mxu0
        %v2233 = vadd.f32 %v2120, %v2232
        %2234 = vmatmul.f32.gmra.mxu0 %v1246
        %v2235 = vpop.f32.mrf.mxu0
        %v2236 = vadd.f32 %v2123, %v2235
        %2237 = vmatmul.f32.gmra.mxu0 %v1255
        %v2238 = vpop.f32.mrf.mxu0
        %v2239 = vadd.f32 %v2126, %v2238
        %2240 = vmatmul.f32.gmra.mxu0 %v1264
        %v2241 = vpop.f32.mrf.mxu0
        %v2242 = vadd.f32 %v2129, %v2241
        %2243 = vmatmul.f32.gmra.mxu0 %v1273
        %v2244 = vpop.f32.mrf.mxu0
        %v2245 = vadd.f32 %v2132, %v2244
        %2246 = vmatmul.f32.gmra.mxu0 %v1282
        %v2247 = vpop.f32.mrf.mxu0
        %v2248 = vadd.f32 %v2135, %v2247
        %2249 = vmatmul.f32.gmra.mxu0 %v1291
        %v2250 = vpop.f32.mrf.mxu0
        %v2251 = vadd.f32 %v2138, %v2250
        %2252 = vmatmul.f32.gmra.mxu0 %v1300
        %v2253 = vpop.f32.mrf.mxu0
        %v2254 = vadd.f32 %v2141, %v2253
        %2255 = vmatmul.f32.gmra.mxu0 %v1309
        %v2256 = vpop.f32.mrf.mxu0
        %v2257 = vadd.f32 %v2144, %v2256
        %2258 = vmatmul.f32.gmra.mxu0 %v1318
        %v2259 = vpop.f32.mrf.mxu0
        %v2260 = vadd.f32 %v2147, %v2259
        %2261 = vmatmul.f32.gmra.mxu0 %v1327
        %v2262 = vpop.f32.mrf.mxu0
        %v2263 = vadd.f32 %v2150, %v2262
        %2264 = vdwg.mxu0
        %2265 = vmatpush.msra.mxu0 %v1457
        %2266 = vmatpush.msra.mxu0 %v1456
        %2267 = vmatpush.msra.mxu0 %v1455
        %2268 = vmatpush.msra.mxu0 %v1454
        %2269 = vmatpush.msra.mxu0 %v1453
        %2270 = vmatpush.msra.mxu0 %v1452
        %2271 = vmatpush.msra.mxu0 %v1451
        %2272 = vmatpush.msra.mxu0 %v1450
        %2273 = vmatpush.msra.mxu0 %v1449
        %2274 = vmatpush.msra.mxu0 %v1448
        %2275 = vmatpush.msra.mxu0 %v1447
        %2276 = vmatpush.msra.mxu0 %v1446
        %2277 = vmatpush.msra.mxu0 %v1445
        %2278 = vmatpush.msra.mxu0 %v1444
        %2279 = vmatpush.msra.mxu0 %v1443
        %2280 = vmatpush.msra.mxu0 %v1442
        %2281 = vmatmul.f32.gmra.mxu0 %v1049
        %v2282 = vpop.f32.mrf.mxu0
        %v2283 = vadd.f32 %v2170, %v2282
        %2284 = vmatmul.f32.gmra.mxu0 %v1058
        %v2285 = vpop.f32.mrf.mxu0
        %v2286 = vadd.f32 %v2173, %v2285
        %2287 = vmatmul.f32.gmra.mxu0 %v1067
        %v2288 = vpop.f32.mrf.mxu0
        %v2289 = vadd.f32 %v2176, %v2288
        %2290 = vmatmul.f32.gmra.mxu0 %v1076
        %v2291 = vpop.f32.mrf.mxu0
        %v2292 = vadd.f32 %v2179, %v2291
        %2293 = vmatmul.f32.gmra.mxu0 %v1085
        %v2294 = vpop.f32.mrf.mxu0
        %v2295 = vadd.f32 %v2182, %v2294
        %2296 = vmatmul.f32.gmra.mxu0 %v1094
        %v2297 = vpop.f32.mrf.mxu0
        %v2298 = vadd.f32 %v2185, %v2297
        %2299 = vmatmul.f32.gmra.mxu0 %v1103
        %v2300 = vpop.f32.mrf.mxu0
        %v2301 = vadd.f32 %v2188, %v2300
        %2302 = vmatmul.f32.gmra.mxu0 %v1112
        %v2303 = vpop.f32.mrf.mxu0
        %v2304 = vadd.f32 %v2191, %v2303
        %2305 = vmatmul.f32.gmra.mxu0 %v1121
        %v2306 = vpop.f32.mrf.mxu0
        %v2307 = vadd.f32 %v2194, %v2306
        %2308 = vmatmul.f32.gmra.mxu0 %v1130
        %v2309 = vpop.f32.mrf.mxu0
        %v2310 = vadd.f32 %v2197, %v2309
        %2311 = vmatmul.f32.gmra.mxu0 %v1139
        %v2312 = vpop.f32.mrf.mxu0
        %v2313 = vadd.f32 %v2200, %v2312
        %2314 = vmatmul.f32.gmra.mxu0 %v1148
        %v2315 = vpop.f32.mrf.mxu0
        %v2316 = vadd.f32 %v2203, %v2315
        %2317 = vmatmul.f32.gmra.mxu0 %v1157
        %v2318 = vpop.f32.mrf.mxu0
        %v2319 = vadd.f32 %v2206, %v2318
        %2320 = vmatmul.f32.gmra.mxu0 %v1166
        %v2321 = vpop.f32.mrf.mxu0
        %v2322 = vadd.f32 %v2209, %v2321
        %2323 = vmatmul.f32.gmra.mxu0 %v1175
        %v2324 = vpop.f32.mrf.mxu0
        %v2325 = vadd.f32 %v2212, %v2324
        %2326 = vmatmul.f32.gmra.mxu0 %v1184
        %v2327 = vpop.f32.mrf.mxu0
        %v2328 = vadd.f32 %v2215, %v2327
        %2329 = vmatmul.f32.gmra.mxu0 %v1193
        %v2330 = vpop.f32.mrf.mxu0
        %v2331 = vadd.f32 %v2218, %v2330
        %2332 = vmatmul.f32.gmra.mxu0 %v1202
        %v2333 = vpop.f32.mrf.mxu0
        %v2334 = vadd.f32 %v2221, %v2333
        %2335 = vmatmul.f32.gmra.mxu0 %v1211
        %v2336 = vpop.f32.mrf.mxu0
        %v2337 = vadd.f32 %v2224, %v2336
        %2338 = vmatmul.f32.gmra.mxu0 %v1220
        %v2339 = vpop.f32.mrf.mxu0
        %v2340 = vadd.f32 %v2227, %v2339
        %2341 = vmatmul.f32.gmra.mxu0 %v1229
        %v2342 = vpop.f32.mrf.mxu0
        %v2343 = vadd.f32 %v2230, %v2342
        %2344 = vmatmul.f32.gmra.mxu0 %v1238
        %v2345 = vpop.f32.mrf.mxu0
        %v2346 = vadd.f32 %v2233, %v2345
        %2347 = vmatmul.f32.gmra.mxu0 %v1247
        %v2348 = vpop.f32.mrf.mxu0
        %v2349 = vadd.f32 %v2236, %v2348
        %2350 = vmatmul.f32.gmra.mxu0 %v1256
        %v2351 = vpop.f32.mrf.mxu0
        %v2352 = vadd.f32 %v2239, %v2351
        %2353 = vmatmul.f32.gmra.mxu0 %v1265
        %v2354 = vpop.f32.mrf.mxu0
        %v2355 = vadd.f32 %v2242, %v2354
        %2356 = vmatmul.f32.gmra.mxu0 %v1274
        %v2357 = vpop.f32.mrf.mxu0
        %v2358 = vadd.f32 %v2245, %v2357
        %2359 = vmatmul.f32.gmra.mxu0 %v1283
        %v2360 = vpop.f32.mrf.mxu0
        %v2361 = vadd.f32 %v2248, %v2360
        %2362 = vmatmul.f32.gmra.mxu0 %v1292
        %v2363 = vpop.f32.mrf.mxu0
        %v2364 = vadd.f32 %v2251, %v2363
        %2365 = vmatmul.f32.gmra.mxu0 %v1301
        %v2366 = vpop.f32.mrf.mxu0
        %v2367 = vadd.f32 %v2254, %v2366
        %2368 = vmatmul.f32.gmra.mxu0 %v1310
        %v2369 = vpop.f32.mrf.mxu0
        %v2370 = vadd.f32 %v2257, %v2369
        %2371 = vmatmul.f32.gmra.mxu0 %v1319
        %v2372 = vpop.f32.mrf.mxu0
        %v2373 = vadd.f32 %v2260, %v2372
        %2374 = vmatmul.f32.gmra.mxu0 %v1328
        %v2375 = vpop.f32.mrf.mxu0
        %v2376 = vadd.f32 %v2263, %v2375
        %2377 = vdwg.mxu0
        %2378 = vmatpush.msra.mxu0 %v1473
        %2379 = vmatpush.msra.mxu0 %v1472
        %2380 = vmatpush.msra.mxu0 %v1471
        %2381 = vmatpush.msra.mxu0 %v1470
        %2382 = vmatpush.msra.mxu0 %v1469
        %2383 = vmatpush.msra.mxu0 %v1468
        %2384 = vmatpush.msra.mxu0 %v1467
        %2385 = vmatpush.msra.mxu0 %v1466
        %2386 = vmatpush.msra.mxu0 %v1465
        %2387 = vmatpush.msra.mxu0 %v1464
        %2388 = vmatpush.msra.mxu0 %v1463
        %2389 = vmatpush.msra.mxu0 %v1462
        %2390 = vmatpush.msra.mxu0 %v1461
        %2391 = vmatpush.msra.mxu0 %v1460
        %2392 = vmatpush.msra.mxu0 %v1459
        %2393 = vmatpush.msra.mxu0 %v1458
        %2394 = vmatmul.f32.gmra.mxu0 %v1050
        %v2395 = vpop.f32.mrf.mxu0
        %v2396 = vadd.f32 %v2283, %v2395
        %2397 = vmatmul.f32.gmra.mxu0 %v1059
        %v2398 = vpop.f32.mrf.mxu0
        %v2399 = vadd.f32 %v2286, %v2398
        %2400 = vmatmul.f32.gmra.mxu0 %v1068
        %v2401 = vpop.f32.mrf.mxu0
        %v2402 = vadd.f32 %v2289, %v2401
        %2403 = vmatmul.f32.gmra.mxu0 %v1077
        %v2404 = vpop.f32.mrf.mxu0
        %v2405 = vadd.f32 %v2292, %v2404
        %2406 = vmatmul.f32.gmra.mxu0 %v1086
        %v2407 = vpop.f32.mrf.mxu0
        %v2408 = vadd.f32 %v2295, %v2407
        %2409 = vmatmul.f32.gmra.mxu0 %v1095
        %v2410 = vpop.f32.mrf.mxu0
        %v2411 = vadd.f32 %v2298, %v2410
        %2412 = vmatmul.f32.gmra.mxu0 %v1104
        %v2413 = vpop.f32.mrf.mxu0
        %v2414 = vadd.f32 %v2301, %v2413
        %2415 = vmatmul.f32.gmra.mxu0 %v1113
        %v2416 = vpop.f32.mrf.mxu0
        %v2417 = vadd.f32 %v2304, %v2416
        %2418 = vmatmul.f32.gmra.mxu0 %v1122
        %v2419 = vpop.f32.mrf.mxu0
        %v2420 = vadd.f32 %v2307, %v2419
        %2421 = vmatmul.f32.gmra.mxu0 %v1131
        %v2422 = vpop.f32.mrf.mxu0
        %v2423 = vadd.f32 %v2310, %v2422
        %2424 = vmatmul.f32.gmra.mxu0 %v1140
        %v2425 = vpop.f32.mrf.mxu0
        %v2426 = vadd.f32 %v2313, %v2425
        %2427 = vmatmul.f32.gmra.mxu0 %v1149
        %v2428 = vpop.f32.mrf.mxu0
        %v2429 = vadd.f32 %v2316, %v2428
        %2430 = vmatmul.f32.gmra.mxu0 %v1158
        %v2431 = vpop.f32.mrf.mxu0
        %v2432 = vadd.f32 %v2319, %v2431
        %2433 = vmatmul.f32.gmra.mxu0 %v1167
        %v2434 = vpop.f32.mrf.mxu0
        %v2435 = vadd.f32 %v2322, %v2434
        %2436 = vmatmul.f32.gmra.mxu0 %v1176
        %v2437 = vpop.f32.mrf.mxu0
        %v2438 = vadd.f32 %v2325, %v2437
        %2439 = vmatmul.f32.gmra.mxu0 %v1185
        %v2440 = vpop.f32.mrf.mxu0
        %v2441 = vadd.f32 %v2328, %v2440
        %2442 = vmatmul.f32.gmra.mxu0 %v1194
        %v2443 = vpop.f32.mrf.mxu0
        %v2444 = vadd.f32 %v2331, %v2443
        %2445 = vmatmul.f32.gmra.mxu0 %v1203
        %v2446 = vpop.f32.mrf.mxu0
        %v2447 = vadd.f32 %v2334, %v2446
        %2448 = vmatmul.f32.gmra.mxu0 %v1212
        %v2449 = vpop.f32.mrf.mxu0
        %v2450 = vadd.f32 %v2337, %v2449
        %2451 = vmatmul.f32.gmra.mxu0 %v1221
        %v2452 = vpop.f32.mrf.mxu0
        %v2453 = vadd.f32 %v2340, %v2452
        %2454 = vmatmul.f32.gmra.mxu0 %v1230
        %v2455 = vpop.f32.mrf.mxu0
        %v2456 = vadd.f32 %v2343, %v2455
        %2457 = vmatmul.f32.gmra.mxu0 %v1239
        %v2458 = vpop.f32.mrf.mxu0
        %v2459 = vadd.f32 %v2346, %v2458
        %2460 = vmatmul.f32.gmra.mxu0 %v1248
        %v2461 = vpop.f32.mrf.mxu0
        %v2462 = vadd.f32 %v2349, %v2461
        %2463 = vmatmul.f32.gmra.mxu0 %v1257
        %v2464 = vpop.f32.mrf.mxu0
        %v2465 = vadd.f32 %v2352, %v2464
        %2466 = vmatmul.f32.gmra.mxu0 %v1266
        %v2467 = vpop.f32.mrf.mxu0
        %v2468 = vadd.f32 %v2355, %v2467
        %2469 = vmatmul.f32.gmra.mxu0 %v1275
        %v2470 = vpop.f32.mrf.mxu0
        %v2471 = vadd.f32 %v2358, %v2470
        %2472 = vmatmul.f32.gmra.mxu0 %v1284
        %v2473 = vpop.f32.mrf.mxu0
        %v2474 = vadd.f32 %v2361, %v2473
        %2475 = vmatmul.f32.gmra.mxu0 %v1293
        %v2476 = vpop.f32.mrf.mxu0
        %v2477 = vadd.f32 %v2364, %v2476
        %2478 = vmatmul.f32.gmra.mxu0 %v1302
        %v2479 = vpop.f32.mrf.mxu0
        %v2480 = vadd.f32 %v2367, %v2479
        %2481 = vmatmul.f32.gmra.mxu0 %v1311
        %v2482 = vpop.f32.mrf.mxu0
        %v2483 = vadd.f32 %v2370, %v2482
        %2484 = vmatmul.f32.gmra.mxu0 %v1320
        %v2485 = vpop.f32.mrf.mxu0
        %v2486 = vadd.f32 %v2373, %v2485
        %2487 = vmatmul.f32.gmra.mxu0 %v1329
        %v2488 = vpop.f32.mrf.mxu0
        %v2489 = vadd.f32 %v2376, %v2488
        %2490 = vdwg.mxu0
        %2491 = vst [vmem:[%s248] sm:$0xff] %v2396
        %2492 = vst [vmem:[%s248 + $0x8] sm:$0xff] %v2399
        %2493 = vst [vmem:[%s248 + $0x10] sm:$0xff] %v2402
        %2494 = vst [vmem:[%s248 + $0x18] sm:$0xff] %v2405
        %2495 = vst [vmem:[%s248 + $0x20] sm:$0xff] %v2408
        %2496 = vst [vmem:[%s248 + $0x28] sm:$0xff] %v2411
        %2497 = vst [vmem:[%s248 + $0x30] sm:$0xff] %v2414
        %2498 = vst [vmem:[%s248 + $0x38] sm:$0xff] %v2417
        %2499 = vst [vmem:[%s248 + $0x40] sm:$0xff] %v2420
        %2500 = vst [vmem:[%s248 + $0x48] sm:$0xff] %v2423
        %2501 = vst [vmem:[%s248 + $0x50] sm:$0xff] %v2426
        %2502 = vst [vmem:[%s248 + $0x58] sm:$0xff] %v2429
        %2503 = vst [vmem:[%s248 + $0x60] sm:$0xff] %v2432
        %2504 = vst [vmem:[%s248 + $0x68] sm:$0xff] %v2435
        %2505 = vst [vmem:[%s248 + $0x70] sm:$0xff] %v2438
        %2506 = vst [vmem:[%s248 + $0x78] sm:$0xff] %v2441
        %2507 = vst [vmem:[%s248 + $0x80] sm:$0xff] %v2444
        %2508 = vst [vmem:[%s248 + $0x88] sm:$0xff] %v2447
        %2509 = vst [vmem:[%s248 + $0x90] sm:$0xff] %v2450
        %2510 = vst [vmem:[%s248 + $0x98] sm:$0xff] %v2453
        %2511 = vst [vmem:[%s248 + $0xa0] sm:$0xff] %v2456
        %2512 = vst [vmem:[%s248 + $0xa8] sm:$0xff] %v2459
        %2513 = vst [vmem:[%s248 + $0xb0] sm:$0xff] %v2462
        %2514 = vst [vmem:[%s248 + $0xb8] sm:$0xff] %v2465
        %2515 = vst [vmem:[%s248 + $0xc0] sm:$0xff] %v2468
        %2516 = vst [vmem:[%s248 + $0xc8] sm:$0xff] %v2471
        %2517 = vst [vmem:[%s248 + $0xd0] sm:$0xff] %v2474
        %2518 = vst [vmem:[%s248 + $0xd8] sm:$0xff] %v2477
        %2519 = vst [vmem:[%s248 + $0xe0] sm:$0xff] %v2480
        %2520 = vst [vmem:[%s248 + $0xe8] sm:$0xff] %v2483
        %2521 = vst [vmem:[%s248 + $0xf0] sm:$0xff] %v2486
        %2522 = vst [vmem:[%s248 + $0xf8] sm:$0xff] %v2489
        %v2523 = vadd.f32 %v2396, %v2399
        %v2524 = vadd.f32 %v2523, %v2402
        %v2525 = vadd.f32 %v2524, %v2405
        %v2526 = vadd.f32 %v2525, %v2408
        %v2527 = vadd.f32 %v2526, %v2411
        %v2528 = vadd.f32 %v2527, %v2414
        %v2529 = vadd.f32 %v2528, %v2417
        %v2530 = vadd.f32 %v2529, %v2420
        %v2531 = vadd.f32 %v2530, %v2423
        %v2532 = vadd.f32 %v2531, %v2426
        %v2533 = vadd.f32 %v2532, %v2429
        %v2534 = vadd.f32 %v2533, %v2432
        %v2535 = vadd.f32 %v2534, %v2435
        %v2536 = vadd.f32 %v2535, %v2438
        %v2537 = vadd.f32 %v2536, %v2441
        %v2538 = vadd.f32 %v2537, %v2444
        %v2539 = vadd.f32 %v2538, %v2447
        %v2540 = vadd.f32 %v2539, %v2450
        %v2541 = vadd.f32 %v2540, %v2453
        %v2542 = vadd.f32 %v2541, %v2456
        %v2543 = vadd.f32 %v2542, %v2459
        %v2544 = vadd.f32 %v2543, %v2462
        %v2545 = vadd.f32 %v2544, %v2465
        %v2546 = vadd.f32 %v2545, %v2468
        %v2547 = vadd.f32 %v2546, %v2471
        %v2548 = vadd.f32 %v2547, %v2474
        %v2549 = vadd.f32 %v2548, %v2477
        %v2550 = vadd.f32 %v2549, %v2480
        %v2551 = vadd.f32 %v2550, %v2483
        %v2552 = vadd.f32 %v2551, %v2486
        %v2553 = vadd.f32 %v2552, %v2489
        %v2554 = vrot.slane %v2553, 4
        %v2555 = vadd.f32 %v2553, %v2554
        %v2556 = vrot.slane %v2555, 2
        %v2557 = vadd.f32 %v2555, %v2556
        %v2558 = vrot.slane %v2557, 1
        %v2559 = vadd.f32 %v2557, %v2558
        %v2560 = vlaneseq
        %vm2561 = vcmp.ge.s32.totalorder %v2560, 0
        %vm2562 = vcmp.lt.s32.totalorder %v2560, 128
        %vm2563 = vmand %vm2561, %vm2562
        %2564 = vst.msk [vmem:[%s252] sm:$0x1] %vm2563, %v2559
        %v2565 = vmul.f32 %v2396, %v2396
        %v2566 = vmul.f32 %v2399, %v2399
        %v2567 = vmul.f32 %v2402, %v2402
        %v2568 = vmul.f32 %v2405, %v2405
        %v2569 = vmul.f32 %v2408, %v2408
        %v2570 = vmul.f32 %v2411, %v2411
        %v2571 = vmul.f32 %v2414, %v2414
        %v2572 = vmul.f32 %v2417, %v2417
        %v2573 = vmul.f32 %v2420, %v2420
        %v2574 = vmul.f32 %v2423, %v2423
        %v2575 = vmul.f32 %v2426, %v2426
        %v2576 = vmul.f32 %v2429, %v2429
        %v2577 = vmul.f32 %v2432, %v2432
        %v2578 = vmul.f32 %v2435, %v2435
        %v2579 = vmul.f32 %v2438, %v2438
        %v2580 = vmul.f32 %v2441, %v2441
        %v2581 = vmul.f32 %v2444, %v2444
        %v2582 = vmul.f32 %v2447, %v2447
        %v2583 = vmul.f32 %v2450, %v2450
        %v2584 = vmul.f32 %v2453, %v2453
        %v2585 = vmul.f32 %v2456, %v2456
        %v2586 = vmul.f32 %v2459, %v2459
        %v2587 = vmul.f32 %v2462, %v2462
        %v2588 = vmul.f32 %v2465, %v2465
        %v2589 = vmul.f32 %v2468, %v2468
        %v2590 = vmul.f32 %v2471, %v2471
        %v2591 = vmul.f32 %v2474, %v2474
        %v2592 = vmul.f32 %v2477, %v2477
        %v2593 = vmul.f32 %v2480, %v2480
        %v2594 = vmul.f32 %v2483, %v2483
        %v2595 = vmul.f32 %v2486, %v2486
        %v2596 = vmul.f32 %v2489, %v2489
        %v2597 = vadd.f32 %v2565, %v2566
        %v2598 = vadd.f32 %v2597, %v2567
        %v2599 = vadd.f32 %v2598, %v2568
        %v2600 = vadd.f32 %v2599, %v2569
        %v2601 = vadd.f32 %v2600, %v2570
        %v2602 = vadd.f32 %v2601, %v2571
        %v2603 = vadd.f32 %v2602, %v2572
        %v2604 = vadd.f32 %v2603, %v2573
        %v2605 = vadd.f32 %v2604, %v2574
        %v2606 = vadd.f32 %v2605, %v2575
        %v2607 = vadd.f32 %v2606, %v2576
        %v2608 = vadd.f32 %v2607, %v2577
        %v2609 = vadd.f32 %v2608, %v2578
        %v2610 = vadd.f32 %v2609, %v2579
        %v2611 = vadd.f32 %v2610, %v2580
        %v2612 = vadd.f32 %v2611, %v2581
        %v2613 = vadd.f32 %v2612, %v2582
        %v2614 = vadd.f32 %v2613, %v2583
        %v2615 = vadd.f32 %v2614, %v2584
        %v2616 = vadd.f32 %v2615, %v2585
        %v2617 = vadd.f32 %v2616, %v2586
        %v2618 = vadd.f32 %v2617, %v2587
        %v2619 = vadd.f32 %v2618, %v2588
        %v2620 = vadd.f32 %v2619, %v2589
        %v2621 = vadd.f32 %v2620, %v2590
        %v2622 = vadd.f32 %v2621, %v2591
        %v2623 = vadd.f32 %v2622, %v2592
        %v2624 = vadd.f32 %v2623, %v2593
        %v2625 = vadd.f32 %v2624, %v2594
        %v2626 = vadd.f32 %v2625, %v2595
        %v2627 = vadd.f32 %v2626, %v2596
        %v2628 = vrot.slane %v2627, 4
        %v2629 = vadd.f32 %v2627, %v2628
        %v2630 = vrot.slane %v2629, 2
        %v2631 = vadd.f32 %v2629, %v2630
        %v2632 = vrot.slane %v2631, 1
        %v2633 = vadd.f32 %v2631, %v2632
        %2634 = vst.msk [vmem:[%s252 + $0x1] sm:$0x1] %vm2563, %v2633
        %p2635 = scmp.lt.s32.totalorder %s18, 1
        %s2636 = scalar_select %p2635, %s18, 1
        %s2637 = smul.addr %s2636, 32
        %s2638 = smul.addr %s2637, 8
        %s2639 = scalar_lea.vmem %s4, %s2638
        %p2640 = scmp.lt.s32.totalorder %s18, 1
        %s2641 = scalar_select %p2640, %s18, 1
        %s2642 = smul.addr %s2641, 2
        %s2643 = scalar_lea.vmem %s5, %s2642
        // Predicated region
        $region41: #{conv_block_forward.4} parent=35 // pred_check
          %p2644 = pneg %p125
        $region42: #{conv_block_forward.4} parent=35 // pred_check_branch
          %2646 = sbr.rel (%p2644) target = $region44
        $region43: #{conv_block_forward.4} parent=35 // pred_region
          _
        $region44: #{conv_block_forward.4} parent=35 // pred_fallthru
          _
        // Predicated region
        $region45: #{conv_block_forward.4} parent=35 // pred_check
          %p2647 = pneg %p151
        $region46: #{conv_block_forward.4} parent=35 // pred_check_branch
          %2649 = sbr.rel (%p2647) target = $region48
        $region47: #{conv_block_forward.4} parent=35 // pred_region
          _
        $region48: #{conv_block_forward.4} parent=35 // pred_fallthru
          _
      $region36: #{conv_block_forward.4} parent=5 // pred_fallthru
        _
      %p2650 = scmp.le.s32.totalorder 2, %s13
      // Predicated region
      $region49: #{conv_block_forward.4} parent=5 // pred_check
        %p2651 = pneg %p2650
      $region50: #{conv_block_forward.4} parent=5 // pred_check_branch
        %2653 = sbr.rel (%p2651) target = $region52
      $region51: #{conv_block_forward.4} parent=5 // pred_region
        %s2654 = ssub.s32 %s13, 2
        // Predicated region
        $region53: #{conv_block_forward.4} parent=51 // pred_check
          %p2655 = pneg %p131
        $region54: #{conv_block_forward.4} parent=51 // pred_check_branch
          %2657 = sbr.rel (%p2655) target = $region56
        $region55: #{conv_block_forward.4} parent=51 // pred_region
          %p2658 = scmp.lt.s32.totalorder %s19, 1
          %s2659 = scalar_select %p2658, %s19, 1
          %s2660 = smul.addr %s2659, 32
          %s2661 = smul.addr %s2660, 8
          %s2662 = scalar_lea.vmem %s4, %s2661
        $region56: #{conv_block_forward.4} parent=51 // pred_fallthru
          _
        // Predicated region
        $region57: #{conv_block_forward.4} parent=51 // pred_check
          %p2663 = pneg %p157
        $region58: #{conv_block_forward.4} parent=51 // pred_check_branch
          %2665 = sbr.rel (%p2663) target = $region60
        $region59: #{conv_block_forward.4} parent=51 // pred_region
          %p2666 = scmp.lt.s32.totalorder %s19, 1
          %s2667 = scalar_select %p2666, %s19, 1
          %s2668 = smul.addr %s2667, 2
          %s2669 = scalar_lea.vmem %s5, %s2668
        $region60: #{conv_block_forward.4} parent=51 // pred_fallthru
          _
      $region52: #{conv_block_forward.4} parent=5 // pred_fallthru
        _
    $region6: #{conv_block_forward.4} parent=1 // loop_footer
      %s17 = sadd.s32 1, %s13
    $region7: #{conv_block_forward.4} parent=1 // loop_footer_branch
      %12 = sbr.rel target = $region3
    $region8: #{conv_block_forward.4} parent=1 // loop_exit
      _
    %2670 = vsyncpa [#allocation5], 1
    %s2671 = scalar_lea.sflag [#allocation5], 1
    %2672 = vsyncpa %s2671, 1

</llo_original>
